<compile_context>
chip_gen: v7x
topology: tpu7x:2x2x1
jax: 0.10.0
libtpu: 0.0.40
codegen_flags: <defaults>
</compile_context>

<pallas_src>
import jax
import jax.numpy as jnp
from jax.experimental import pallas as pl
from jax.experimental.pallas import tpu as pltpu

NEG_SLOPE = 0.01  # F.leaky_relu default
FC3_PAD = 128     # pad the 10-wide fc3 input/weight K-dim to a lane-aligned 128


def _round_up(x, m):
    return ((x + m - 1) // m) * m


def _leaky_relu(x):
    return jnp.where(x > 0, x, NEG_SLOPE * x)


def whitebox_kernel(
    x1_ref, x2_ref,
    # hidden_fc2 (4096->128->64)
    w2a_ref, b2a_ref, w2b_ref, b2b_ref,
    # hidden_fc3 (padded 128->128->64)
    w3a_ref, b3a_ref, w3b_ref, b3b_ref,
    # encoder (64->256->128->64->2)
    we1_ref, be1_ref, we2_ref, be2_ref, we3_ref, be3_ref, we4_ref, be4_ref,
    o_ref,
):
    def lin(x_f32, w_ref, b_ref):
        # Cast activation to bf16 at the dot (weights are already bf16);
        # accumulate on the MXU in f32, bias add in f32.
        return jnp.dot(x_f32.astype(jnp.bfloat16), w_ref[...],
                       preferred_element_type=jnp.float32) + b_ref[...]

    x1 = x1_ref[...]  # (TB, 4096) f32 streamed from HBM; cast in lin()
    x2 = x2_ref[...]  # (TB, 128)  f32 (zero-padded fc3 input)

    # hidden_fc2 branch (dominant matmul)
    a = _leaky_relu(lin(x1, w2a_ref, b2a_ref))       # (TB, 128)
    a = _leaky_relu(lin(a, w2b_ref, b2b_ref))        # (TB, 64)

    # hidden_fc3 branch
    b = _leaky_relu(lin(x2, w3a_ref, b3a_ref))       # (TB, 128)
    b = _leaky_relu(lin(b, w3b_ref, b3b_ref))        # (TB, 64)

    x = a + b                                        # (TB, 64)

    # encoder
    x = _leaky_relu(lin(x, we1_ref, be1_ref))        # (TB, 256)
    x = _leaky_relu(lin(x, we2_ref, be2_ref))        # (TB, 128)
    x = _leaky_relu(lin(x, we3_ref, be3_ref))        # (TB, 64)
    logits = _leaky_relu(lin(x, we4_ref, be4_ref))   # (TB, 2) (PyTorch acts on fc4 too)

    # softmax over the 2-wide dim, as a sigmoid (no cross-lane reduce):
    #   p0 = exp(l0) / (exp(l0)+exp(l1)) = 1 / (1 + exp(l1 - l0)),  p1 = 1 - p0
    l0 = logits[:, 0:1]
    l1 = logits[:, 1:2]
    p0 = 1.0 / (1.0 + jnp.exp(l1 - l0))
    o_ref[:, 0:1] = p0
    o_ref[:, 1:2] = 1.0 - p0


def prepare_params(params):
    """One-time (hoisted out of the per-call path) weight prep:
    pad w3a's K-dim 10->128 and cast all weights to bf16; biases stay f32."""
    (w2a, b2a, w2b, b2b, w3a, b3a, w3b, b3b,
     we1, be1, we2, be2, we3, be3, we4, be4) = params
    w3a = jnp.pad(w3a, ((0, FC3_PAD - w3a.shape[0]), (0, 0)))
    weights = [w2a, w2b, w3a, w3b, we1, we2, we3, we4]
    biases = [b2a, b2b, b3a, b3b, be1, be2, be3, be4]
    out = []
    for w, b in zip(weights, biases):
        out += [w.astype(jnp.bfloat16), b.astype(jnp.float32)]
    return out


def whitebox_forward(x_fc2, x_fc3, kernel_params, tile_b=512):
    """x_fc2: (B, 4096) f32, x_fc3: (B, 10) f32; kernel_params from prepare_params()."""
    B = x_fc2.shape[0]

    # Batch tile: multiple of 16 (bf16 sublane packing of the in-kernel cast),
    # capped at tile_b (~8 MiB f32 per step -> grid overhead <5%).
    tb = min(tile_b, _round_up(B, 16))
    # v7x has 2 TensorCores: if a large batch would be a single grid step,
    # split it so the "parallel" axis can shard across both cores.
    if B >= 256 and _round_up(B, tb) // tb < 2:
        tb = max(128, _round_up((B + 1) // 2, 128))
    B_pad = _round_up(B, tb)

    x1 = x_fc2.astype(jnp.float32)
    x2 = jnp.pad(x_fc3.astype(jnp.float32),
                 ((0, 0), (0, FC3_PAD - x_fc3.shape[1])))
    if B_pad != B:
        x1 = jnp.pad(x1, ((0, B_pad - B), (0, 0)))
        x2 = jnp.pad(x2, ((0, B_pad - B), (0, 0)))

    grid = (B_pad // tb,)
    const_map = lambda i: (0, 0)  # weights/biases: same block -> VMEM-resident

    in_specs = [
        pl.BlockSpec((tb, 4096), lambda i: (i, 0)),     # x_fc2 tile (pipelined)
        pl.BlockSpec((tb, FC3_PAD), lambda i: (i, 0)),  # padded x_fc3 tile
    ]
    # Constant-index weight/bias blocks: single-buffered to free VMEM.
    in_specs += [
        pl.BlockSpec(p.shape, const_map, pipeline_mode=pl.Buffered(1))
        for p in kernel_params
    ]
    out_spec = pl.BlockSpec((tb, 2), lambda i: (i, 0))

    # Advisory cost model so XLA can schedule around the custom call.
    flops = 2 * B_pad * (4096 * 128 + 128 * 64 + FC3_PAD * 128 + 128 * 64
                         + 64 * 256 + 256 * 128 + 128 * 64 + 64 * 2)
    bytes_accessed = (
        int(x1.size) * 4 + int(x2.size) * 4
        + sum(int(p.size) * p.dtype.itemsize for p in kernel_params)
        + B_pad * 2 * 4
    )
    cost = pl.CostEstimate(flops=flops, transcendentals=B_pad,
                           bytes_accessed=bytes_accessed)

    out = pl.pallas_call(
        whitebox_kernel,
        out_shape=jax.ShapeDtypeStruct((B_pad, 2), jnp.float32),
        grid=grid,
        in_specs=in_specs,
        out_specs=out_spec,
        compiler_params=pltpu.CompilerParams(
            dimension_semantics=("parallel",),   # shard batch across v7x TCs
            vmem_limit_bytes=40 * 1024 * 1024,   # 2x8 MiB x1 bufs + cast + weights
        ),
        cost_estimate=cost,
    )(x1, x2, *kernel_params)
    return out[:B]


def init_linear(key, fan_in, fan_out):
    """PyTorch-style init: U(-1/sqrt(fan_in), 1/sqrt(fan_in)).
    Returns W as (fan_in, fan_out) and bias as (1, fan_out)."""
    kw, kb = jax.random.split(key)
    bound = 1.0 / jnp.sqrt(fan_in)
    w = jax.random.uniform(kw, (fan_in, fan_out), jnp.float32, -bound, bound)
    b = jax.random.uniform(kb, (1, fan_out), jnp.float32, -bound, bound)
    return w, b


def make_params(key):
    layer_dims = [
        (4096, 128), (128, 64),   # hidden_fc2
        (10, 128), (128, 64),     # hidden_fc3
        (64, 256), (256, 128),    # encoder fc1, fc2
        (128, 64), (64, 2),       # encoder fc3, fc4
    ]
    params = []
    keys = jax.random.split(key, len(layer_dims))
    for k, (fi, fo) in zip(keys, layer_dims):
        w, b = init_linear(k, fi, fo)
        params += [w, b]
    return params


def reference_forward(x_fc2, x_fc3, params):
    """Pure-JAX reference with identical semantics and identical quantization
    (bf16 operands into every matmul, f32 accumulation/bias/activation)."""
    (w2a, b2a, w2b, b2b, w3a, b3a, w3b, b3b,
     we1, be1, we2, be2, we3, be3, we4, be4) = params
    lr = lambda v: jnp.where(v > 0, v, NEG_SLOPE * v)
    hi = jax.lax.Precision.HIGHEST
    q = lambda v: v.astype(jnp.bfloat16).astype(jnp.float32)
    lin = lambda x, w, b: jnp.dot(q(x), q(w), precision=hi) + b
    a = lr(lin(x_fc2, w2a, b2a))
    a = lr(lin(a, w2b, b2b))
    b = lr(lin(x_fc3, w3a, b3a))
    b = lr(lin(b, w3b, b3b))
    x = a + b
    x = lr(lin(x, we1, be1))
    x = lr(lin(x, we2, be2))
    x = lr(lin(x, we3, be3))
    logits = lr(lin(x, we4, be4))
    return jax.nn.softmax(logits, axis=1)


if __name__ == "__main__":
    key = jax.random.PRNGKey(0)
    k_params, k_x1, k_x2 = jax.random.split(key, 3)

    B = 8
    params = make_params(k_params)
    kernel_params = prepare_params(params)  # one-time bf16 cast + K-pad, hoisted
    x_fc2 = jax.random.normal(k_x1, (B, 4096), jnp.float32)  # h['fc2.1']
    x_fc3 = jax.random.normal(k_x2, (B, 10), jnp.float32)    # h['fc3.1']

    out = whitebox_forward(x_fc2, x_fc3, kernel_params)
    out = jax.block_until_ready(out)

    ref = reference_forward(x_fc2, x_fc3, params)
    assert out.shape == (B, 2), out.shape
    assert jnp.allclose(out, ref, atol=1e-3, rtol=1e-3), "mismatch vs reference"
    assert jnp.allclose(jnp.sum(out, axis=1), 1.0, atol=1e-5), "softmax rows must sum to 1"

    print("KERNEL_OK")
</pallas_src>

<mosaic_0001>
module attributes {stable_mosaic.version = 11 : i64} {
  func.func @whitebox_kernel(%arg0: i32, %arg1: memref<16x4096xf32, #tpu.memory_space<vmem>>, %arg2: memref<16x128xf32, #tpu.memory_space<vmem>>, %arg3: memref<4096x128xbf16, #tpu.memory_space<vmem>>, %arg4: memref<1x128xf32, #tpu.memory_space<vmem>>, %arg5: memref<128x64xbf16, #tpu.memory_space<vmem>>, %arg6: memref<1x64xf32, #tpu.memory_space<vmem>>, %arg7: memref<128x128xbf16, #tpu.memory_space<vmem>>, %arg8: memref<1x128xf32, #tpu.memory_space<vmem>>, %arg9: memref<128x64xbf16, #tpu.memory_space<vmem>>, %arg10: memref<1x64xf32, #tpu.memory_space<vmem>>, %arg11: memref<64x256xbf16, #tpu.memory_space<vmem>>, %arg12: memref<1x256xf32, #tpu.memory_space<vmem>>, %arg13: memref<256x128xbf16, #tpu.memory_space<vmem>>, %arg14: memref<1x128xf32, #tpu.memory_space<vmem>>, %arg15: memref<128x64xbf16, #tpu.memory_space<vmem>>, %arg16: memref<1x64xf32, #tpu.memory_space<vmem>>, %arg17: memref<64x2xbf16, #tpu.memory_space<vmem>>, %arg18: memref<1x2xf32, #tpu.memory_space<vmem>>, %arg19: memref<16x2xf32, #tpu.memory_space<vmem>>) attributes {dimension_semantics = [#tpu.dimension_semantics<parallel>], iteration_bounds = array<i64: 1>, scalar_prefetch = 0 : i64, scratch_operands = 0 : i64, tpu.core_type = #tpu.core_type<tc>, window_params = [{transform_indices = @transform_0, window_bounds = array<i64: 16, 4096>}, {transform_indices = @transform_1, window_bounds = array<i64: 16, 128>}, {pipeline_mode = #tpu.pipeline_mode<synchronous>, transform_indices = @transform_2, window_bounds = array<i64: 4096, 128>}, {pipeline_mode = #tpu.pipeline_mode<synchronous>, transform_indices = @transform_3, window_bounds = array<i64: 1, 128>}, {pipeline_mode = #tpu.pipeline_mode<synchronous>, transform_indices = @transform_4, window_bounds = array<i64: 128, 64>}, {pipeline_mode = #tpu.pipeline_mode<synchronous>, transform_indices = @transform_5, window_bounds = array<i64: 1, 64>}, {pipeline_mode = #tpu.pipeline_mode<synchronous>, transform_indices = @transform_6, window_bounds = array<i64: 128, 128>}, {pipeline_mode = #tpu.pipeline_mode<synchronous>, transform_indices = @transform_7, window_bounds = array<i64: 1, 128>}, {pipeline_mode = #tpu.pipeline_mode<synchronous>, transform_indices = @transform_8, window_bounds = array<i64: 128, 64>}, {pipeline_mode = #tpu.pipeline_mode<synchronous>, transform_indices = @transform_9, window_bounds = array<i64: 1, 64>}, {pipeline_mode = #tpu.pipeline_mode<synchronous>, transform_indices = @transform_10, window_bounds = array<i64: 64, 256>}, {pipeline_mode = #tpu.pipeline_mode<synchronous>, transform_indices = @transform_11, window_bounds = array<i64: 1, 256>}, {pipeline_mode = #tpu.pipeline_mode<synchronous>, transform_indices = @transform_12, window_bounds = array<i64: 256, 128>}, {pipeline_mode = #tpu.pipeline_mode<synchronous>, transform_indices = @transform_13, window_bounds = array<i64: 1, 128>}, {pipeline_mode = #tpu.pipeline_mode<synchronous>, transform_indices = @transform_14, window_bounds = array<i64: 128, 64>}, {pipeline_mode = #tpu.pipeline_mode<synchronous>, transform_indices = @transform_15, window_bounds = array<i64: 1, 64>}, {pipeline_mode = #tpu.pipeline_mode<synchronous>, transform_indices = @transform_16, window_bounds = array<i64: 64, 2>}, {pipeline_mode = #tpu.pipeline_mode<synchronous>, transform_indices = @transform_17, window_bounds = array<i64: 1, 2>}, {transform_indices = @transform_18, window_bounds = array<i64: 16, 2>}]} {
    %c0 = arith.constant 0 : index
    %c0_0 = arith.constant 0 : index
    %0 = vector.load %arg1[%c0, %c0_0] : memref<16x4096xf32, #tpu.memory_space<vmem>>, vector<16x4096xf32>
    %c0_1 = arith.constant 0 : index
    %c0_2 = arith.constant 0 : index
    %1 = vector.load %arg2[%c0_1, %c0_2] : memref<16x128xf32, #tpu.memory_space<vmem>>, vector<16x128xf32>
    %2 = arith.truncf %0 : vector<16x4096xf32> to vector<16x4096xbf16>
    %c0_3 = arith.constant 0 : index
    %c0_4 = arith.constant 0 : index
    %3 = vector.load %arg3[%c0_3, %c0_4] : memref<4096x128xbf16, #tpu.memory_space<vmem>>, vector<4096x128xbf16>
    %cst = arith.constant dense<0.000000e+00> : vector<16x128xf32>
    %4 = tpu.matmul %2, %3, %cst {dimension_numbers = #tpu.dot_dimension_numbers<[1], [0], [0], [1], [0, 0, 1, 1], [], []>} : vector<16x4096xbf16>, vector<4096x128xbf16>, vector<16x128xf32> -> vector<16x128xf32>
    %c0_5 = arith.constant 0 : index
    %c0_6 = arith.constant 0 : index
    %5 = vector.load %arg4[%c0_5, %c0_6] : memref<1x128xf32, #tpu.memory_space<vmem>>, vector<1x128xf32>
    %6 = vector.broadcast %5 : vector<1x128xf32> to vector<16x128xf32>
    %7 = arith.addf %4, %6 : vector<16x128xf32>
    %cst_7 = arith.constant 0.000000e+00 : f32
    %8 = vector.broadcast %cst_7 : f32 to vector<16x128xf32>
    %9 = arith.cmpf ogt, %7, %8 : vector<16x128xf32>
    %cst_8 = arith.constant 0.00999999977 : f32
    %10 = vector.broadcast %cst_8 : f32 to vector<16x128xf32>
    %11 = arith.mulf %10, %7 : vector<16x128xf32>
    %12 = arith.select %9, %7, %11 : vector<16x128xi1>, vector<16x128xf32>
    %13 = arith.truncf %12 : vector<16x128xf32> to vector<16x128xbf16>
    %c0_9 = arith.constant 0 : index
    %c0_10 = arith.constant 0 : index
    %14 = vector.load %arg5[%c0_9, %c0_10] : memref<128x64xbf16, #tpu.memory_space<vmem>>, vector<128x64xbf16>
    %cst_11 = arith.constant dense<0.000000e+00> : vector<16x64xf32>
    %15 = tpu.matmul %13, %14, %cst_11 {dimension_numbers = #tpu.dot_dimension_numbers<[1], [0], [0], [1], [0, 0, 1, 1], [], []>} : vector<16x128xbf16>, vector<128x64xbf16>, vector<16x64xf32> -> vector<16x64xf32>
    %c0_12 = arith.constant 0 : index
    %c0_13 = arith.constant 0 : index
    %16 = vector.load %arg6[%c0_12, %c0_13] : memref<1x64xf32, #tpu.memory_space<vmem>>, vector<1x64xf32>
    %17 = vector.broadcast %16 : vector<1x64xf32> to vector<16x64xf32>
    %18 = arith.addf %15, %17 : vector<16x64xf32>
    %cst_14 = arith.constant 0.000000e+00 : f32
    %19 = vector.broadcast %cst_14 : f32 to vector<16x64xf32>
    %20 = arith.cmpf ogt, %18, %19 : vector<16x64xf32>
    %cst_15 = arith.constant 0.00999999977 : f32
    %21 = vector.broadcast %cst_15 : f32 to vector<16x64xf32>
    %22 = arith.mulf %21, %18 : vector<16x64xf32>
    %23 = arith.select %20, %18, %22 : vector<16x64xi1>, vector<16x64xf32>
    %24 = arith.truncf %1 : vector<16x128xf32> to vector<16x128xbf16>
    %c0_16 = arith.constant 0 : index
    %c0_17 = arith.constant 0 : index
    %25 = vector.load %arg7[%c0_16, %c0_17] : memref<128x128xbf16, #tpu.memory_space<vmem>>, vector<128x128xbf16>
    %cst_18 = arith.constant dense<0.000000e+00> : vector<16x128xf32>
    %26 = tpu.matmul %24, %25, %cst_18 {dimension_numbers = #tpu.dot_dimension_numbers<[1], [0], [0], [1], [0, 0, 1, 1], [], []>} : vector<16x128xbf16>, vector<128x128xbf16>, vector<16x128xf32> -> vector<16x128xf32>
    %c0_19 = arith.constant 0 : index
    %c0_20 = arith.constant 0 : index
    %27 = vector.load %arg8[%c0_19, %c0_20] : memref<1x128xf32, #tpu.memory_space<vmem>>, vector<1x128xf32>
    %28 = vector.broadcast %27 : vector<1x128xf32> to vector<16x128xf32>
    %29 = arith.addf %26, %28 : vector<16x128xf32>
    %cst_21 = arith.constant 0.000000e+00 : f32
    %30 = vector.broadcast %cst_21 : f32 to vector<16x128xf32>
    %31 = arith.cmpf ogt, %29, %30 : vector<16x128xf32>
    %cst_22 = arith.constant 0.00999999977 : f32
    %32 = vector.broadcast %cst_22 : f32 to vector<16x128xf32>
    %33 = arith.mulf %32, %29 : vector<16x128xf32>
    %34 = arith.select %31, %29, %33 : vector<16x128xi1>, vector<16x128xf32>
    %35 = arith.truncf %34 : vector<16x128xf32> to vector<16x128xbf16>
    %c0_23 = arith.constant 0 : index
    %c0_24 = arith.constant 0 : index
    %36 = vector.load %arg9[%c0_23, %c0_24] : memref<128x64xbf16, #tpu.memory_space<vmem>>, vector<128x64xbf16>
    %cst_25 = arith.constant dense<0.000000e+00> : vector<16x64xf32>
    %37 = tpu.matmul %35, %36, %cst_25 {dimension_numbers = #tpu.dot_dimension_numbers<[1], [0], [0], [1], [0, 0, 1, 1], [], []>} : vector<16x128xbf16>, vector<128x64xbf16>, vector<16x64xf32> -> vector<16x64xf32>
    %c0_26 = arith.constant 0 : index
    %c0_27 = arith.constant 0 : index
    %38 = vector.load %arg10[%c0_26, %c0_27] : memref<1x64xf32, #tpu.memory_space<vmem>>, vector<1x64xf32>
    %39 = vector.broadcast %38 : vector<1x64xf32> to vector<16x64xf32>
    %40 = arith.addf %37, %39 : vector<16x64xf32>
    %cst_28 = arith.constant 0.000000e+00 : f32
    %41 = vector.broadcast %cst_28 : f32 to vector<16x64xf32>
    %42 = arith.cmpf ogt, %40, %41 : vector<16x64xf32>
    %cst_29 = arith.constant 0.00999999977 : f32
    %43 = vector.broadcast %cst_29 : f32 to vector<16x64xf32>
    %44 = arith.mulf %43, %40 : vector<16x64xf32>
    %45 = arith.select %42, %40, %44 : vector<16x64xi1>, vector<16x64xf32>
    %46 = arith.addf %23, %45 : vector<16x64xf32>
    %47 = arith.truncf %46 : vector<16x64xf32> to vector<16x64xbf16>
    %c0_30 = arith.constant 0 : index
    %c0_31 = arith.constant 0 : index
    %48 = vector.load %arg11[%c0_30, %c0_31] : memref<64x256xbf16, #tpu.memory_space<vmem>>, vector<64x256xbf16>
    %cst_32 = arith.constant dense<0.000000e+00> : vector<16x256xf32>
    %49 = tpu.matmul %47, %48, %cst_32 {dimension_numbers = #tpu.dot_dimension_numbers<[1], [0], [0], [1], [0, 0, 1, 1], [], []>} : vector<16x64xbf16>, vector<64x256xbf16>, vector<16x256xf32> -> vector<16x256xf32>
    %c0_33 = arith.constant 0 : index
    %c0_34 = arith.constant 0 : index
    %50 = vector.load %arg12[%c0_33, %c0_34] : memref<1x256xf32, #tpu.memory_space<vmem>>, vector<1x256xf32>
    %51 = vector.broadcast %50 : vector<1x256xf32> to vector<16x256xf32>
    %52 = arith.addf %49, %51 : vector<16x256xf32>
    %cst_35 = arith.constant 0.000000e+00 : f32
    %53 = vector.broadcast %cst_35 : f32 to vector<16x256xf32>
    %54 = arith.cmpf ogt, %52, %53 : vector<16x256xf32>
    %cst_36 = arith.constant 0.00999999977 : f32
    %55 = vector.broadcast %cst_36 : f32 to vector<16x256xf32>
    %56 = arith.mulf %55, %52 : vector<16x256xf32>
    %57 = arith.select %54, %52, %56 : vector<16x256xi1>, vector<16x256xf32>
    %58 = arith.truncf %57 : vector<16x256xf32> to vector<16x256xbf16>
    %c0_37 = arith.constant 0 : index
    %c0_38 = arith.constant 0 : index
    %59 = vector.load %arg13[%c0_37, %c0_38] : memref<256x128xbf16, #tpu.memory_space<vmem>>, vector<256x128xbf16>
    %cst_39 = arith.constant dense<0.000000e+00> : vector<16x128xf32>
    %60 = tpu.matmul %58, %59, %cst_39 {dimension_numbers = #tpu.dot_dimension_numbers<[1], [0], [0], [1], [0, 0, 1, 1], [], []>} : vector<16x256xbf16>, vector<256x128xbf16>, vector<16x128xf32> -> vector<16x128xf32>
    %c0_40 = arith.constant 0 : index
    %c0_41 = arith.constant 0 : index
    %61 = vector.load %arg14[%c0_40, %c0_41] : memref<1x128xf32, #tpu.memory_space<vmem>>, vector<1x128xf32>
    %62 = vector.broadcast %61 : vector<1x128xf32> to vector<16x128xf32>
    %63 = arith.addf %60, %62 : vector<16x128xf32>
    %cst_42 = arith.constant 0.000000e+00 : f32
    %64 = vector.broadcast %cst_42 : f32 to vector<16x128xf32>
    %65 = arith.cmpf ogt, %63, %64 : vector<16x128xf32>
    %cst_43 = arith.constant 0.00999999977 : f32
    %66 = vector.broadcast %cst_43 : f32 to vector<16x128xf32>
    %67 = arith.mulf %66, %63 : vector<16x128xf32>
    %68 = arith.select %65, %63, %67 : vector<16x128xi1>, vector<16x128xf32>
    %69 = arith.truncf %68 : vector<16x128xf32> to vector<16x128xbf16>
    %c0_44 = arith.constant 0 : index
    %c0_45 = arith.constant 0 : index
    %70 = vector.load %arg15[%c0_44, %c0_45] : memref<128x64xbf16, #tpu.memory_space<vmem>>, vector<128x64xbf16>
    %cst_46 = arith.constant dense<0.000000e+00> : vector<16x64xf32>
    %71 = tpu.matmul %69, %70, %cst_46 {dimension_numbers = #tpu.dot_dimension_numbers<[1], [0], [0], [1], [0, 0, 1, 1], [], []>} : vector<16x128xbf16>, vector<128x64xbf16>, vector<16x64xf32> -> vector<16x64xf32>
    %c0_47 = arith.constant 0 : index
    %c0_48 = arith.constant 0 : index
    %72 = vector.load %arg16[%c0_47, %c0_48] : memref<1x64xf32, #tpu.memory_space<vmem>>, vector<1x64xf32>
    %73 = vector.broadcast %72 : vector<1x64xf32> to vector<16x64xf32>
    %74 = arith.addf %71, %73 : vector<16x64xf32>
    %cst_49 = arith.constant 0.000000e+00 : f32
    %75 = vector.broadcast %cst_49 : f32 to vector<16x64xf32>
    %76 = arith.cmpf ogt, %74, %75 : vector<16x64xf32>
    %cst_50 = arith.constant 0.00999999977 : f32
    %77 = vector.broadcast %cst_50 : f32 to vector<16x64xf32>
    %78 = arith.mulf %77, %74 : vector<16x64xf32>
    %79 = arith.select %76, %74, %78 : vector<16x64xi1>, vector<16x64xf32>
    %80 = arith.truncf %79 : vector<16x64xf32> to vector<16x64xbf16>
    %c0_51 = arith.constant 0 : index
    %c0_52 = arith.constant 0 : index
    %81 = vector.load %arg17[%c0_51, %c0_52] : memref<64x2xbf16, #tpu.memory_space<vmem>>, vector<64x2xbf16>
    %cst_53 = arith.constant dense<0.000000e+00> : vector<16x2xf32>
    %82 = tpu.matmul %80, %81, %cst_53 {dimension_numbers = #tpu.dot_dimension_numbers<[1], [0], [0], [1], [0, 0, 1, 1], [], []>} : vector<16x64xbf16>, vector<64x2xbf16>, vector<16x2xf32> -> vector<16x2xf32>
    %c0_54 = arith.constant 0 : index
    %c0_55 = arith.constant 0 : index
    %83 = vector.load %arg18[%c0_54, %c0_55] : memref<1x2xf32, #tpu.memory_space<vmem>>, vector<1x2xf32>
    %84 = vector.broadcast %83 : vector<1x2xf32> to vector<16x2xf32>
    %85 = arith.addf %82, %84 : vector<16x2xf32>
    %cst_56 = arith.constant 0.000000e+00 : f32
    %86 = vector.broadcast %cst_56 : f32 to vector<16x2xf32>
    %87 = arith.cmpf ogt, %85, %86 : vector<16x2xf32>
    %cst_57 = arith.constant 0.00999999977 : f32
    %88 = vector.broadcast %cst_57 : f32 to vector<16x2xf32>
    %89 = arith.mulf %88, %85 : vector<16x2xf32>
    %90 = arith.select %87, %85, %89 : vector<16x2xi1>, vector<16x2xf32>
    %91 = vector.extract_strided_slice %90 {offsets = [0, 0], sizes = [16, 1], strides = [1, 1]} : vector<16x2xf32> to vector<16x1xf32>
    %92 = vector.extract_strided_slice %90 {offsets = [0, 1], sizes = [16, 1], strides = [1, 1]} : vector<16x2xf32> to vector<16x1xf32>
    %93 = arith.subf %92, %91 : vector<16x1xf32>
    %94 = math.exp %93 : vector<16x1xf32>
    %cst_58 = arith.constant 1.000000e+00 : f32
    %95 = vector.broadcast %cst_58 : f32 to vector<16x1xf32>
    %96 = arith.addf %95, %94 : vector<16x1xf32>
    %cst_59 = arith.constant 1.000000e+00 : f32
    %97 = vector.broadcast %cst_59 : f32 to vector<16x1xf32>
    %98 = arith.divf %97, %96 : vector<16x1xf32>
    %c0_60 = arith.constant 0 : index
    %c0_61 = arith.constant 0 : index
    %99 = vector.load %arg19[%c0_60, %c0_61] : memref<16x2xf32, #tpu.memory_space<vmem>>, vector<16x1xf32>
    tpu.vector_store %arg19[%c0_60, %c0_61], %98 {strides = array<i32>} : memref<16x2xf32, #tpu.memory_space<vmem>>, vector<16x1xf32>,
    %cst_62 = arith.constant 1.000000e+00 : f32
    %100 = vector.broadcast %cst_62 : f32 to vector<16x1xf32>
    %101 = arith.subf %100, %98 : vector<16x1xf32>
    %c0_63 = arith.constant 0 : index
    %c1 = arith.constant 1 : index
    %102 = vector.load %arg19[%c0_63, %c1] : memref<16x2xf32, #tpu.memory_space<vmem>>, vector<16x1xf32>
    tpu.vector_store %arg19[%c0_63, %c1], %101 {strides = array<i32>} : memref<16x2xf32, #tpu.memory_space<vmem>>, vector<16x1xf32>,
    return
  }
  func.func @transform_0(%arg0: i32) -> (i32, i32) {
    %c0_i32 = arith.constant 0 : i32
    %c0_i32_0 = arith.constant 0 : i32
    return %arg0, %c0_i32 : i32, i32
  }
  func.func @transform_1(%arg0: i32) -> (i32, i32) {
    %c0_i32 = arith.constant 0 : i32
    %c0_i32_0 = arith.constant 0 : i32
    return %arg0, %c0_i32 : i32, i32
  }
  func.func @transform_2(%arg0: i32) -> (i32, i32) {
    %c0_i32 = arith.constant 0 : i32
    %c0_i32_0 = arith.constant 0 : i32
    %c0_i32_1 = arith.constant 0 : i32
    return %c0_i32, %c0_i32_0 : i32, i32
  }
  func.func @transform_3(%arg0: i32) -> (i32, i32) {
    %c0_i32 = arith.constant 0 : i32
    %c0_i32_0 = arith.constant 0 : i32
    %c0_i32_1 = arith.constant 0 : i32
    return %c0_i32, %c0_i32_0 : i32, i32
  }
  func.func @transform_4(%arg0: i32) -> (i32, i32) {
    %c0_i32 = arith.constant 0 : i32
    %c0_i32_0 = arith.constant 0 : i32
    %c0_i32_1 = arith.constant 0 : i32
    return %c0_i32, %c0_i32_0 : i32, i32
  }
  func.func @transform_5(%arg0: i32) -> (i32, i32) {
    %c0_i32 = arith.constant 0 : i32
    %c0_i32_0 = arith.constant 0 : i32
    %c0_i32_1 = arith.constant 0 : i32
    return %c0_i32, %c0_i32_0 : i32, i32
  }
  func.func @transform_6(%arg0: i32) -> (i32, i32) {
    %c0_i32 = arith.constant 0 : i32
    %c0_i32_0 = arith.constant 0 : i32
    %c0_i32_1 = arith.constant 0 : i32
    return %c0_i32, %c0_i32_0 : i32, i32
  }
  func.func @transform_7(%arg0: i32) -> (i32, i32) {
    %c0_i32 = arith.constant 0 : i32
    %c0_i32_0 = arith.constant 0 : i32
    %c0_i32_1 = arith.constant 0 : i32
    return %c0_i32, %c0_i32_0 : i32, i32
  }
  func.func @transform_8(%arg0: i32) -> (i32, i32) {
    %c0_i32 = arith.constant 0 : i32
    %c0_i32_0 = arith.constant 0 : i32
    %c0_i32_1 = arith.constant 0 : i32
    return %c0_i32, %c0_i32_0 : i32, i32
  }
  func.func @transform_9(%arg0: i32) -> (i32, i32) {
    %c0_i32 = arith.constant 0 : i32
    %c0_i32_0 = arith.constant 0 : i32
    %c0_i32_1 = arith.constant 0 : i32
    return %c0_i32, %c0_i32_0 : i32, i32
  }
  func.func @transform_10(%arg0: i32) -> (i32, i32) {
    %c0_i32 = arith.constant 0 : i32
    %c0_i32_0 = arith.constant 0 : i32
    %c0_i32_1 = arith.constant 0 : i32
    return %c0_i32, %c0_i32_0 : i32, i32
  }
  func.func @transform_11(%arg0: i32) -> (i32, i32) {
    %c0_i32 = arith.constant 0 : i32
    %c0_i32_0 = arith.constant 0 : i32
    %c0_i32_1 = arith.constant 0 : i32
    return %c0_i32, %c0_i32_0 : i32, i32
  }
  func.func @transform_12(%arg0: i32) -> (i32, i32) {
    %c0_i32 = arith.constant 0 : i32
    %c0_i32_0 = arith.constant 0 : i32
    %c0_i32_1 = arith.constant 0 : i32
    return %c0_i32, %c0_i32_0 : i32, i32
  }
  func.func @transform_13(%arg0: i32) -> (i32, i32) {
    %c0_i32 = arith.constant 0 : i32
    %c0_i32_0 = arith.constant 0 : i32
    %c0_i32_1 = arith.constant 0 : i32
    return %c0_i32, %c0_i32_0 : i32, i32
  }
  func.func @transform_14(%arg0: i32) -> (i32, i32) {
    %c0_i32 = arith.constant 0 : i32
    %c0_i32_0 = arith.constant 0 : i32
    %c0_i32_1 = arith.constant 0 : i32
    return %c0_i32, %c0_i32_0 : i32, i32
  }
  func.func @transform_15(%arg0: i32) -> (i32, i32) {
    %c0_i32 = arith.constant 0 : i32
    %c0_i32_0 = arith.constant 0 : i32
    %c0_i32_1 = arith.constant 0 : i32
    return %c0_i32, %c0_i32_0 : i32, i32
  }
  func.func @transform_16(%arg0: i32) -> (i32, i32) {
    %c0_i32 = arith.constant 0 : i32
    %c0_i32_0 = arith.constant 0 : i32
    %c0_i32_1 = arith.constant 0 : i32
    return %c0_i32, %c0_i32_0 : i32, i32
  }
  func.func @transform_17(%arg0: i32) -> (i32, i32) {
    %c0_i32 = arith.constant 0 : i32
    %c0_i32_0 = arith.constant 0 : i32
    %c0_i32_1 = arith.constant 0 : i32
    return %c0_i32, %c0_i32_0 : i32, i32
  }
  func.func @transform_18(%arg0: i32) -> (i32, i32) {
    %c0_i32 = arith.constant 0 : i32
    %c0_i32_0 = arith.constant 0 : i32
    return %arg0, %c0_i32 : i32, i32
  }
}

</mosaic_0001>

<llo_original>
// kernel: tpu_custom_call.1
$region0: #{tpu_custom_call.1}
  #allocation0 [shape = 'u32[]', space=smem, size = 0x4, offset = 0x4, fixed_abs, tag = 'smem constant byte address 0x4 - core index']
  #allocation1 [shape = 'u32[144,128]{1,0:T(1,128)}', space=vmem, size = 0x12000, scoped, tag = 'internal scratch']
  %s0 = inlined_call_operand.hbm [shape: f32[16,4096], index: 0, kind: input, shape index: {}]
  %s1 = inlined_call_operand.hbm [shape: f32[16,128], index: 1, kind: input, shape index: {}]
  %s2 = inlined_call_operand.hbm [shape: bf16[4096,128], index: 2, kind: input, shape index: {}]
  %s3 = inlined_call_operand.vmem [shape: f32[1,128], index: 3, kind: input, shape index: {}]
  %s4 = inlined_call_operand.vmem [shape: bf16[128,64], index: 4, kind: input, shape index: {}]
  %s5 = inlined_call_operand.hbm [shape: f32[1,64], index: 5, kind: input, shape index: {}]
  %s6 = inlined_call_operand.vmem [shape: bf16[128,128], index: 6, kind: input, shape index: {}]
  %s7 = inlined_call_operand.hbm [shape: f32[1,128], index: 7, kind: input, shape index: {}]
  %s8 = inlined_call_operand.vmem [shape: bf16[128,64], index: 8, kind: input, shape index: {}]
  %s9 = inlined_call_operand.hbm [shape: f32[1,64], index: 9, kind: input, shape index: {}]
  %s10 = inlined_call_operand.vmem [shape: bf16[64,256], index: 10, kind: input, shape index: {}]
  %s11 = inlined_call_operand.vmem [shape: f32[1,256], index: 11, kind: input, shape index: {}]
  %s12 = inlined_call_operand.vmem [shape: bf16[256,128], index: 12, kind: input, shape index: {}]
  %s13 = inlined_call_operand.vmem [shape: f32[1,128], index: 13, kind: input, shape index: {}]
  %s14 = inlined_call_operand.vmem [shape: bf16[128,64], index: 14, kind: input, shape index: {}]
  %s15 = inlined_call_operand.vmem [shape: f32[1,64], index: 15, kind: input, shape index: {}]
  %s16 = inlined_call_operand.vmem [shape: bf16[64,2], index: 16, kind: input, shape index: {}]
  %s17 = inlined_call_operand.vmem [shape: f32[1,2], index: 17, kind: input, shape index: {}]
  %s18 = inlined_call_operand.vmem [shape: f32[16,2], index: 18, kind: output, shape index: {}]
  %s19 = sld [smem:[#allocation0]]
  $region106: #{tpu_custom_call.1} parent=0
    _
  %s21 = ssub.s32 1, %s19
  %s22 = scalar_select 0, %s21, %s19
  $region1: #{tpu_custom_call.1} parent=0
    #allocation2 [shape = 'u8[262144]{0}', space=vmem, size = 0x40000, scoped, tag = 'input window, operand 0, single buffered']
    #allocation3 [shape = 's32[1]{0}', space=sflag, size = 0x4, scoped, tag = 'scoped memory for tpu_custom_call.1']
    #allocation4 [shape = 'u8[8192]{0}', space=vmem, size = 0x2000, scoped, tag = 'input window, operand 1, single buffered']
    #allocation5 [shape = 's32[1]{0}', space=sflag, size = 0x4, scoped, tag = 'scoped memory for tpu_custom_call.1']
    #allocation6 [shape = 'u8[1048576]{0}', space=vmem, size = 0x100000, scoped, tag = 'input window, operand 2, single buffered']
    #allocation7 [shape = 'u8[512]{0}', space=vmem, size = 0x400, scoped, tag = 'input window, operand 5, single buffered']
    #allocation8 [shape = 's32[1]{0}', space=sflag, size = 0x4, scoped, tag = 'scoped memory for tpu_custom_call.1']
    #allocation9 [shape = 'u8[512]{0}', space=vmem, size = 0x400, scoped, tag = 'input window, operand 7, single buffered']
    #allocation10 [shape = 'u8[512]{0}', space=vmem, size = 0x400, scoped, tag = 'input window, operand 9, single buffered']
    #allocation11 [shape = 's32[1]{0}', space=sflag, size = 0x4, scoped, tag = 'scoped memory for tpu_custom_call.1']
    %23 = vsyncpa [#allocation3], 0
    %24 = vsyncpa [#allocation5], 0
    %25 = vsyncpa [#allocation8], 0
    %26 = vsyncpa [#allocation11], 0
    // Predicated region
    $region2: #{tpu_custom_call.1} parent=1 // pred_check
      _
    $region3: #{tpu_custom_call.1} parent=1 // pred_check_branch
      %28 = sbr.rel (0) target = $region5
    $region4: #{tpu_custom_call.1} parent=1 // pred_region
      %s30 = ssub.s32 8192, 8192
      %31 = vsyncadd [#allocation3], %s30
      %s32 = sshll.u32 [#allocation2], 4
      %s33 = int_to_ptr.vmem [resolvable:$true] %s32
      %38 = dma.hbm_to_vmem [thread:$0]  %s0, 8192, %s33, [#allocation3], 4096, 4096, 256
    $region5: #{tpu_custom_call.1} parent=1 // pred_fallthru
      _
    // Predicated region
    $region6: #{tpu_custom_call.1} parent=1 // pred_check
      _
    $region7: #{tpu_custom_call.1} parent=1 // pred_check_branch
      %40 = sbr.rel (0) target = $region9
    $region8: #{tpu_custom_call.1} parent=1 // pred_region
      %s42 = ssub.s32 256, 256
      %43 = vsyncadd [#allocation5], %s42
      %s44 = sshll.u32 [#allocation4], 4
      %s45 = int_to_ptr.vmem [resolvable:$true] %s44
      %50 = dma.hbm_to_vmem [thread:$0]  %s1, 256, %s45, [#allocation5], 128, 128, 8
    $region9: #{tpu_custom_call.1} parent=1 // pred_fallthru
      _
    // Predicated region
    $region10: #{tpu_custom_call.1} parent=1 // pred_check
      _
    $region11: #{tpu_custom_call.1} parent=1 // pred_check_branch
      %52 = sbr.rel (0) target = $region13
    $region12: #{tpu_custom_call.1} parent=1 // pred_region
      %s54 = ssub.s32 32768, 32768
      %55 = vsyncadd [#allocation5], %s54
      %s56 = sshll.u32 [#allocation6], 4
      %s57 = int_to_ptr.vmem [resolvable:$true] %s56
      %62 = dma.hbm_to_vmem [thread:$0]  %s2, 32768, %s57, [#allocation5], 64, 64, 4
    $region13: #{tpu_custom_call.1} parent=1 // pred_fallthru
      _
    // Predicated region
    $region14: #{tpu_custom_call.1} parent=1 // pred_check
      _
    $region15: #{tpu_custom_call.1} parent=1 // pred_check_branch
      %64 = sbr.rel (0) target = $region17
    $region16: #{tpu_custom_call.1} parent=1 // pred_region
      _
    $region17: #{tpu_custom_call.1} parent=1 // pred_fallthru
      _
    // Predicated region
    $region18: #{tpu_custom_call.1} parent=1 // pred_check
      _
    $region19: #{tpu_custom_call.1} parent=1 // pred_check_branch
      %66 = sbr.rel (0) target = $region21
    $region20: #{tpu_custom_call.1} parent=1 // pred_region
      _
    $region21: #{tpu_custom_call.1} parent=1 // pred_fallthru
      _
    // Predicated region
    $region22: #{tpu_custom_call.1} parent=1 // pred_check
      _
    $region23: #{tpu_custom_call.1} parent=1 // pred_check_branch
      %68 = sbr.rel (0) target = $region25
    $region24: #{tpu_custom_call.1} parent=1 // pred_region
      %s70 = ssub.s32 16, 16
      %71 = vsyncadd [#allocation8], %s70
      %s73 = sshll.u32 [#allocation7], 4
      %s74 = int_to_ptr.vmem [resolvable:$true] %s73
      %76 = dma.hbm_to_vmem [thread:$0]  %s5, 16, %s74, [#allocation8]
    $region25: #{tpu_custom_call.1} parent=1 // pred_fallthru
      _
    // Predicated region
    $region26: #{tpu_custom_call.1} parent=1 // pred_check
      _
    $region27: #{tpu_custom_call.1} parent=1 // pred_check_branch
      %78 = sbr.rel (0) target = $region29
    $region28: #{tpu_custom_call.1} parent=1 // pred_region
      _
    $region29: #{tpu_custom_call.1} parent=1 // pred_fallthru
      _
    // Predicated region
    $region30: #{tpu_custom_call.1} parent=1 // pred_check
      _
    $region31: #{tpu_custom_call.1} parent=1 // pred_check_branch
      %80 = sbr.rel (0) target = $region33
    $region32: #{tpu_custom_call.1} parent=1 // pred_region
      %s82 = ssub.s32 16, 16
      %83 = vsyncadd [#allocation8], %s82
      %s85 = sshll.u32 [#allocation9], 4
      %s86 = int_to_ptr.vmem [resolvable:$true] %s85
      %88 = dma.hbm_to_vmem [thread:$0]  %s7, 16, %s86, [#allocation8]
    $region33: #{tpu_custom_call.1} parent=1 // pred_fallthru
      _
    // Predicated region
    $region34: #{tpu_custom_call.1} parent=1 // pred_check
      _
    $region35: #{tpu_custom_call.1} parent=1 // pred_check_branch
      %90 = sbr.rel (0) target = $region37
    $region36: #{tpu_custom_call.1} parent=1 // pred_region
      _
    $region37: #{tpu_custom_call.1} parent=1 // pred_fallthru
      _
    // Predicated region
    $region38: #{tpu_custom_call.1} parent=1 // pred_check
      _
    $region39: #{tpu_custom_call.1} parent=1 // pred_check_branch
      %92 = sbr.rel (0) target = $region41
    $region40: #{tpu_custom_call.1} parent=1 // pred_region
      %s94 = ssub.s32 16, 16
      %95 = vsyncadd [#allocation11], %s94
      %s97 = sshll.u32 [#allocation10], 4
      %s98 = int_to_ptr.vmem [resolvable:$true] %s97
      %100 = dma.hbm_to_vmem [thread:$0]  %s9, 16, %s98, [#allocation11]
    $region41: #{tpu_custom_call.1} parent=1 // pred_fallthru
      _
    // Predicated region
    $region42: #{tpu_custom_call.1} parent=1 // pred_check
      _
    $region43: #{tpu_custom_call.1} parent=1 // pred_check_branch
      %102 = sbr.rel (0) target = $region45
    $region44: #{tpu_custom_call.1} parent=1 // pred_region
      _
    $region45: #{tpu_custom_call.1} parent=1 // pred_fallthru
      _
    // Predicated region
    $region46: #{tpu_custom_call.1} parent=1 // pred_check
      _
    $region47: #{tpu_custom_call.1} parent=1 // pred_check_branch
      %104 = sbr.rel (0) target = $region49
    $region48: #{tpu_custom_call.1} parent=1 // pred_region
      _
    $region49: #{tpu_custom_call.1} parent=1 // pred_fallthru
      _
    // Predicated region
    $region50: #{tpu_custom_call.1} parent=1 // pred_check
      _
    $region51: #{tpu_custom_call.1} parent=1 // pred_check_branch
      %106 = sbr.rel (0) target = $region53
    $region52: #{tpu_custom_call.1} parent=1 // pred_region
      _
    $region53: #{tpu_custom_call.1} parent=1 // pred_fallthru
      _
    // Predicated region
    $region54: #{tpu_custom_call.1} parent=1 // pred_check
      _
    $region55: #{tpu_custom_call.1} parent=1 // pred_check_branch
      %108 = sbr.rel (0) target = $region57
    $region56: #{tpu_custom_call.1} parent=1 // pred_region
      _
    $region57: #{tpu_custom_call.1} parent=1 // pred_fallthru
      _
    // Predicated region
    $region58: #{tpu_custom_call.1} parent=1 // pred_check
      _
    $region59: #{tpu_custom_call.1} parent=1 // pred_check_branch
      %110 = sbr.rel (0) target = $region61
    $region60: #{tpu_custom_call.1} parent=1 // pred_region
      _
    $region61: #{tpu_custom_call.1} parent=1 // pred_fallthru
      _
    // Predicated region
    $region62: #{tpu_custom_call.1} parent=1 // pred_check
      _
    $region63: #{tpu_custom_call.1} parent=1 // pred_check_branch
      %112 = sbr.rel (0) target = $region65
    $region64: #{tpu_custom_call.1} parent=1 // pred_region
      _
    $region65: #{tpu_custom_call.1} parent=1 // pred_fallthru
      _
    // Predicated region
    $region66: #{tpu_custom_call.1} parent=1 // pred_check
      _
    $region67: #{tpu_custom_call.1} parent=1 // pred_check_branch
      %114 = sbr.rel (0) target = $region69
    $region68: #{tpu_custom_call.1} parent=1 // pred_region
      _
    $region69: #{tpu_custom_call.1} parent=1 // pred_fallthru
      _
    // Predicated region
    $region70: #{tpu_custom_call.1} parent=1 // pred_check
      _
    $region71: #{tpu_custom_call.1} parent=1 // pred_check_branch
      %116 = sbr.rel (0) target = $region73
    $region72: #{tpu_custom_call.1} parent=1 // pred_region
      _
    $region73: #{tpu_custom_call.1} parent=1 // pred_fallthru
      _
    // Predicated region
    $region74: #{tpu_custom_call.1} parent=1 // pred_check
      _
    $region75: #{tpu_custom_call.1} parent=1 // pred_check_branch
      %118 = sbr.rel (0) target = $region77
    $region76: #{tpu_custom_call.1} parent=1 // pred_region
      %119 = dma.done [#allocation3], 8192
    $region77: #{tpu_custom_call.1} parent=1 // pred_fallthru
      _
    // Predicated region
    $region78: #{tpu_custom_call.1} parent=1 // pred_check
      _
    $region79: #{tpu_custom_call.1} parent=1 // pred_check_branch
      %121 = sbr.rel (0) target = $region81
    $region80: #{tpu_custom_call.1} parent=1 // pred_region
      %122 = dma.done [#allocation5], 256
    $region81: #{tpu_custom_call.1} parent=1 // pred_fallthru
      _
    // Predicated region
    $region82: #{tpu_custom_call.1} parent=1 // pred_check
      _
    $region83: #{tpu_custom_call.1} parent=1 // pred_check_branch
      %124 = sbr.rel (0) target = $region85
    $region84: #{tpu_custom_call.1} parent=1 // pred_region
      %125 = dma.done [#allocation5], 32768
    $region85: #{tpu_custom_call.1} parent=1 // pred_fallthru
      _
    // Predicated region
    $region86: #{tpu_custom_call.1} parent=1 // pred_check
      _
    $region87: #{tpu_custom_call.1} parent=1 // pred_check_branch
      %127 = sbr.rel (0) target = $region89
    $region88: #{tpu_custom_call.1} parent=1 // pred_region
      %128 = dma.done [#allocation8], 16
    $region89: #{tpu_custom_call.1} parent=1 // pred_fallthru
      _
    // Predicated region
    $region90: #{tpu_custom_call.1} parent=1 // pred_check
      _
    $region91: #{tpu_custom_call.1} parent=1 // pred_check_branch
      %130 = sbr.rel (0) target = $region93
    $region92: #{tpu_custom_call.1} parent=1 // pred_region
      %131 = dma.done [#allocation8], 16
    $region93: #{tpu_custom_call.1} parent=1 // pred_fallthru
      _
    // Predicated region
    $region94: #{tpu_custom_call.1} parent=1 // pred_check
      _
    $region95: #{tpu_custom_call.1} parent=1 // pred_check_branch
      %133 = sbr.rel (0) target = $region97
    $region96: #{tpu_custom_call.1} parent=1 // pred_region
      %134 = dma.done [#allocation11], 16
    $region97: #{tpu_custom_call.1} parent=1 // pred_fallthru
      _
    %v136 = vld [vmem:[#allocation2] sm:$0xff]
    %v137 = vld [vmem:[#allocation2 + $0x8] sm:$0xff]
    %v138 = vld [vmem:[#allocation2 + $0x10] sm:$0xff]
    %v139 = vld [vmem:[#allocation2 + $0x18] sm:$0xff]
    %v140 = vld [vmem:[#allocation2 + $0x20] sm:$0xff]
    %v141 = vld [vmem:[#allocation2 + $0x28] sm:$0xff]
    %v142 = vld [vmem:[#allocation2 + $0x30] sm:$0xff]
    %v143 = vld [vmem:[#allocation2 + $0x38] sm:$0xff]
    %v144 = vld [vmem:[#allocation2 + $0x40] sm:$0xff]
    %v145 = vld [vmem:[#allocation2 + $0x48] sm:$0xff]
    %v146 = vld [vmem:[#allocation2 + $0x50] sm:$0xff]
    %v147 = vld [vmem:[#allocation2 + $0x58] sm:$0xff]
    %v148 = vld [vmem:[#allocation2 + $0x60] sm:$0xff]
    %v149 = vld [vmem:[#allocation2 + $0x68] sm:$0xff]
    %v150 = vld [vmem:[#allocation2 + $0x70] sm:$0xff]
    %v151 = vld [vmem:[#allocation2 + $0x78] sm:$0xff]
    %v152 = vld [vmem:[#allocation2 + $0x80] sm:$0xff]
    %v153 = vld [vmem:[#allocation2 + $0x88] sm:$0xff]
    %v154 = vld [vmem:[#allocation2 + $0x90] sm:$0xff]
    %v155 = vld [vmem:[#allocation2 + $0x98] sm:$0xff]
    %v156 = vld [vmem:[#allocation2 + $0xa0] sm:$0xff]
    %v157 = vld [vmem:[#allocation2 + $0xa8] sm:$0xff]
    %v158 = vld [vmem:[#allocation2 + $0xb0] sm:$0xff]
    %v159 = vld [vmem:[#allocation2 + $0xb8] sm:$0xff]
    %v160 = vld [vmem:[#allocation2 + $0xc0] sm:$0xff]
    %v161 = vld [vmem:[#allocation2 + $0xc8] sm:$0xff]
    %v162 = vld [vmem:[#allocation2 + $0xd0] sm:$0xff]
    %v163 = vld [vmem:[#allocation2 + $0xd8] sm:$0xff]
    %v164 = vld [vmem:[#allocation2 + $0xe0] sm:$0xff]
    %v165 = vld [vmem:[#allocation2 + $0xe8] sm:$0xff]
    %v166 = vld [vmem:[#allocation2 + $0xf0] sm:$0xff]
    %v167 = vld [vmem:[#allocation2 + $0xf8] sm:$0xff]
    %v168 = vld [vmem:[#allocation2 + $0x100] sm:$0xff]
    %v169 = vld [vmem:[#allocation2 + $0x108] sm:$0xff]
    %v170 = vld [vmem:[#allocation2 + $0x110] sm:$0xff]
    %v171 = vld [vmem:[#allocation2 + $0x118] sm:$0xff]
    %v172 = vld [vmem:[#allocation2 + $0x120] sm:$0xff]
    %v173 = vld [vmem:[#allocation2 + $0x128] sm:$0xff]
    %v174 = vld [vmem:[#allocation2 + $0x130] sm:$0xff]
    %v175 = vld [vmem:[#allocation2 + $0x138] sm:$0xff]
    %v176 = vld [vmem:[#allocation2 + $0x140] sm:$0xff]
    %v177 = vld [vmem:[#allocation2 + $0x148] sm:$0xff]
    %v178 = vld [vmem:[#allocation2 + $0x150] sm:$0xff]
    %v179 = vld [vmem:[#allocation2 + $0x158] sm:$0xff]
    %v180 = vld [vmem:[#allocation2 + $0x160] sm:$0xff]
    %v181 = vld [vmem:[#allocation2 + $0x168] sm:$0xff]
    %v182 = vld [vmem:[#allocation2 + $0x170] sm:$0xff]
    %v183 = vld [vmem:[#allocation2 + $0x178] sm:$0xff]
    %v184 = vld [vmem:[#allocation2 + $0x180] sm:$0xff]
    %v185 = vld [vmem:[#allocation2 + $0x188] sm:$0xff]
    %v186 = vld [vmem:[#allocation2 + $0x190] sm:$0xff]
    %v187 = vld [vmem:[#allocation2 + $0x198] sm:$0xff]
    %v188 = vld [vmem:[#allocation2 + $0x1a0] sm:$0xff]
    %v189 = vld [vmem:[#allocation2 + $0x1a8] sm:$0xff]
    %v190 = vld [vmem:[#allocation2 + $0x1b0] sm:$0xff]
    %v191 = vld [vmem:[#allocation2 + $0x1b8] sm:$0xff]
    %v192 = vld [vmem:[#allocation2 + $0x1c0] sm:$0xff]
    %v193 = vld [vmem:[#allocation2 + $0x1c8] sm:$0xff]
    %v194 = vld [vmem:[#allocation2 + $0x1d0] sm:$0xff]
    %v195 = vld [vmem:[#allocation2 + $0x1d8] sm:$0xff]
    %v196 = vld [vmem:[#allocation2 + $0x1e0] sm:$0xff]
    %v197 = vld [vmem:[#allocation2 + $0x1e8] sm:$0xff]
    %v198 = vld [vmem:[#allocation2 + $0x1f0] sm:$0xff]
    %v199 = vld [vmem:[#allocation2 + $0x1f8] sm:$0xff]
    %v200 = vld [vmem:[#allocation4] sm:$0xff]
    %v201 = vld [vmem:[#allocation4 + $0x8] sm:$0xff]
    %v202 = vpack.c.bf16 %v168, %v136
    %v203 = vpack.c.bf16 %v169, %v137
    %v204 = vpack.c.bf16 %v170, %v138
    %v205 = vpack.c.bf16 %v171, %v139
    %v206 = vpack.c.bf16 %v172, %v140
    %v207 = vpack.c.bf16 %v173, %v141
    %v208 = vpack.c.bf16 %v174, %v142
    %v209 = vpack.c.bf16 %v175, %v143
    %v210 = vpack.c.bf16 %v176, %v144
    %v211 = vpack.c.bf16 %v177, %v145
    %v212 = vpack.c.bf16 %v178, %v146
    %v213 = vpack.c.bf16 %v179, %v147
    %v214 = vpack.c.bf16 %v180, %v148
    %v215 = vpack.c.bf16 %v181, %v149
    %v216 = vpack.c.bf16 %v182, %v150
    %v217 = vpack.c.bf16 %v183, %v151
    %v218 = vpack.c.bf16 %v184, %v152
    %v219 = vpack.c.bf16 %v185, %v153
    %v220 = vpack.c.bf16 %v186, %v154
    %v221 = vpack.c.bf16 %v187, %v155
    %v222 = vpack.c.bf16 %v188, %v156
    %v223 = vpack.c.bf16 %v189, %v157
    %v224 = vpack.c.bf16 %v190, %v158
    %v225 = vpack.c.bf16 %v191, %v159
    %v226 = vpack.c.bf16 %v192, %v160
    %v227 = vpack.c.bf16 %v193, %v161
    %v228 = vpack.c.bf16 %v194, %v162
    %v229 = vpack.c.bf16 %v195, %v163
    %v230 = vpack.c.bf16 %v196, %v164
    %v231 = vpack.c.bf16 %v197, %v165
    %v232 = vpack.c.bf16 %v198, %v166
    %v233 = vpack.c.bf16 %v199, %v167
    %v234 = vld [vmem:[#allocation6] sm:$0xf]
    %v235 = vld [vmem:[#allocation6 + $0x4] sm:$0xf]
    %v236 = vld [vmem:[#allocation6 + $0x8] sm:$0xf]
    %v237 = vld [vmem:[#allocation6 + $0xc] sm:$0xf]
    %v238 = vld [vmem:[#allocation6 + $0x10] sm:$0xf]
    %v239 = vld [vmem:[#allocation6 + $0x14] sm:$0xf]
    %v240 = vld [vmem:[#allocation6 + $0x18] sm:$0xf]
    %v241 = vld [vmem:[#allocation6 + $0x1c] sm:$0xf]
    %v242 = vld [vmem:[#allocation6 + $0x20] sm:$0xf]
    %v243 = vld [vmem:[#allocation6 + $0x24] sm:$0xf]
    %v244 = vld [vmem:[#allocation6 + $0x28] sm:$0xf]
    %v245 = vld [vmem:[#allocation6 + $0x2c] sm:$0xf]
    %v246 = vld [vmem:[#allocation6 + $0x30] sm:$0xf]
    %v247 = vld [vmem:[#allocation6 + $0x34] sm:$0xf]
    %v248 = vld [vmem:[#allocation6 + $0x38] sm:$0xf]
    %v249 = vld [vmem:[#allocation6 + $0x3c] sm:$0xf]
    %v250 = vld [vmem:[#allocation6 + $0x40] sm:$0xf]
    %v251 = vld [vmem:[#allocation6 + $0x44] sm:$0xf]
    %v252 = vld [vmem:[#allocation6 + $0x48] sm:$0xf]
    %v253 = vld [vmem:[#allocation6 + $0x4c] sm:$0xf]
    %v254 = vld [vmem:[#allocation6 + $0x50] sm:$0xf]
    %v255 = vld [vmem:[#allocation6 + $0x54] sm:$0xf]
    %v256 = vld [vmem:[#allocation6 + $0x58] sm:$0xf]
    %v257 = vld [vmem:[#allocation6 + $0x5c] sm:$0xf]
    %v258 = vld [vmem:[#allocation6 + $0x60] sm:$0xf]
    %v259 = vld [vmem:[#allocation6 + $0x64] sm:$0xf]
    %v260 = vld [vmem:[#allocation6 + $0x68] sm:$0xf]
    %v261 = vld [vmem:[#allocation6 + $0x6c] sm:$0xf]
    %v262 = vld [vmem:[#allocation6 + $0x70] sm:$0xf]
    %v263 = vld [vmem:[#allocation6 + $0x74] sm:$0xf]
    %v264 = vld [vmem:[#allocation6 + $0x78] sm:$0xf]
    %v265 = vld [vmem:[#allocation6 + $0x7c] sm:$0xf]
    %v266 = vld [vmem:[#allocation6 + $0x80] sm:$0xf]
    %v267 = vld [vmem:[#allocation6 + $0x84] sm:$0xf]
    %v268 = vld [vmem:[#allocation6 + $0x88] sm:$0xf]
    %v269 = vld [vmem:[#allocation6 + $0x8c] sm:$0xf]
    %v270 = vld [vmem:[#allocation6 + $0x90] sm:$0xf]
    %v271 = vld [vmem:[#allocation6 + $0x94] sm:$0xf]
    %v272 = vld [vmem:[#allocation6 + $0x98] sm:$0xf]
    %v273 = vld [vmem:[#allocation6 + $0x9c] sm:$0xf]
    %v274 = vld [vmem:[#allocation6 + $0xa0] sm:$0xf]
    %v275 = vld [vmem:[#allocation6 + $0xa4] sm:$0xf]
    %v276 = vld [vmem:[#allocation6 + $0xa8] sm:$0xf]
    %v277 = vld [vmem:[#allocation6 + $0xac] sm:$0xf]
    %v278 = vld [vmem:[#allocation6 + $0xb0] sm:$0xf]
    %v279 = vld [vmem:[#allocation6 + $0xb4] sm:$0xf]
    %v280 = vld [vmem:[#allocation6 + $0xb8] sm:$0xf]
    %v281 = vld [vmem:[#allocation6 + $0xbc] sm:$0xf]
    %v282 = vld [vmem:[#allocation6 + $0xc0] sm:$0xf]
    %v283 = vld [vmem:[#allocation6 + $0xc4] sm:$0xf]
    %v284 = vld [vmem:[#allocation6 + $0xc8] sm:$0xf]
    %v285 = vld [vmem:[#allocation6 + $0xcc] sm:$0xf]
    %v286 = vld [vmem:[#allocation6 + $0xd0] sm:$0xf]
    %v287 = vld [vmem:[#allocation6 + $0xd4] sm:$0xf]
    %v288 = vld [vmem:[#allocation6 + $0xd8] sm:$0xf]
    %v289 = vld [vmem:[#allocation6 + $0xdc] sm:$0xf]
    %v290 = vld [vmem:[#allocation6 + $0xe0] sm:$0xf]
    %v291 = vld [vmem:[#allocation6 + $0xe4] sm:$0xf]
    %v292 = vld [vmem:[#allocation6 + $0xe8] sm:$0xf]
    %v293 = vld [vmem:[#allocation6 + $0xec] sm:$0xf]
    %v294 = vld [vmem:[#allocation6 + $0xf0] sm:$0xf]
    %v295 = vld [vmem:[#allocation6 + $0xf4] sm:$0xf]
    %v296 = vld [vmem:[#allocation6 + $0xf8] sm:$0xf]
    %v297 = vld [vmem:[#allocation6 + $0xfc] sm:$0xf]
    %v298 = vld [vmem:[#allocation6 + $0x100] sm:$0xf]
    %v299 = vld [vmem:[#allocation6 + $0x104] sm:$0xf]
    %v300 = vld [vmem:[#allocation6 + $0x108] sm:$0xf]
    %v301 = vld [vmem:[#allocation6 + $0x10c] sm:$0xf]
    %v302 = vld [vmem:[#allocation6 + $0x110] sm:$0xf]
    %v303 = vld [vmem:[#allocation6 + $0x114] sm:$0xf]
    %v304 = vld [vmem:[#allocation6 + $0x118] sm:$0xf]
    %v305 = vld [vmem:[#allocation6 + $0x11c] sm:$0xf]
    %v306 = vld [vmem:[#allocation6 + $0x120] sm:$0xf]
    %v307 = vld [vmem:[#allocation6 + $0x124] sm:$0xf]
    %v308 = vld [vmem:[#allocation6 + $0x128] sm:$0xf]
    %v309 = vld [vmem:[#allocation6 + $0x12c] sm:$0xf]
    %v310 = vld [vmem:[#allocation6 + $0x130] sm:$0xf]
    %v311 = vld [vmem:[#allocation6 + $0x134] sm:$0xf]
    %v312 = vld [vmem:[#allocation6 + $0x138] sm:$0xf]
    %v313 = vld [vmem:[#allocation6 + $0x13c] sm:$0xf]
    %v314 = vld [vmem:[#allocation6 + $0x140] sm:$0xf]
    %v315 = vld [vmem:[#allocation6 + $0x144] sm:$0xf]
    %v316 = vld [vmem:[#allocation6 + $0x148] sm:$0xf]
    %v317 = vld [vmem:[#allocation6 + $0x14c] sm:$0xf]
    %v318 = vld [vmem:[#allocation6 + $0x150] sm:$0xf]
    %v319 = vld [vmem:[#allocation6 + $0x154] sm:$0xf]
    %v320 = vld [vmem:[#allocation6 + $0x158] sm:$0xf]
    %v321 = vld [vmem:[#allocation6 + $0x15c] sm:$0xf]
    %v322 = vld [vmem:[#allocation6 + $0x160] sm:$0xf]
    %v323 = vld [vmem:[#allocation6 + $0x164] sm:$0xf]
    %v324 = vld [vmem:[#allocation6 + $0x168] sm:$0xf]
    %v325 = vld [vmem:[#allocation6 + $0x16c] sm:$0xf]
    %v326 = vld [vmem:[#allocation6 + $0x170] sm:$0xf]
    %v327 = vld [vmem:[#allocation6 + $0x174] sm:$0xf]
    %v328 = vld [vmem:[#allocation6 + $0x178] sm:$0xf]
    %v329 = vld [vmem:[#allocation6 + $0x17c] sm:$0xf]
    %v330 = vld [vmem:[#allocation6 + $0x180] sm:$0xf]
    %v331 = vld [vmem:[#allocation6 + $0x184] sm:$0xf]
    %v332 = vld [vmem:[#allocation6 + $0x188] sm:$0xf]
    %v333 = vld [vmem:[#allocation6 + $0x18c] sm:$0xf]
    %v334 = vld [vmem:[#allocation6 + $0x190] sm:$0xf]
    %v335 = vld [vmem:[#allocation6 + $0x194] sm:$0xf]
    %v336 = vld [vmem:[#allocation6 + $0x198] sm:$0xf]
    %v337 = vld [vmem:[#allocation6 + $0x19c] sm:$0xf]
    %v338 = vld [vmem:[#allocation6 + $0x1a0] sm:$0xf]
    %v339 = vld [vmem:[#allocation6 + $0x1a4] sm:$0xf]
    %v340 = vld [vmem:[#allocation6 + $0x1a8] sm:$0xf]
    %v341 = vld [vmem:[#allocation6 + $0x1ac] sm:$0xf]
    %v342 = vld [vmem:[#allocation6 + $0x1b0] sm:$0xf]
    %v343 = vld [vmem:[#allocation6 + $0x1b4] sm:$0xf]
    %v344 = vld [vmem:[#allocation6 + $0x1b8] sm:$0xf]
    %v345 = vld [vmem:[#allocation6 + $0x1bc] sm:$0xf]
    %v346 = vld [vmem:[#allocation6 + $0x1c0] sm:$0xf]
    %v347 = vld [vmem:[#allocation6 + $0x1c4] sm:$0xf]
    %v348 = vld [vmem:[#allocation6 + $0x1c8] sm:$0xf]
    %v349 = vld [vmem:[#allocation6 + $0x1cc] sm:$0xf]
    %v350 = vld [vmem:[#allocation6 + $0x1d0] sm:$0xf]
    %v351 = vld [vmem:[#allocation6 + $0x1d4] sm:$0xf]
    %v352 = vld [vmem:[#allocation6 + $0x1d8] sm:$0xf]
    %v353 = vld [vmem:[#allocation6 + $0x1dc] sm:$0xf]
    %v354 = vld [vmem:[#allocation6 + $0x1e0] sm:$0xf]
    %v355 = vld [vmem:[#allocation6 + $0x1e4] sm:$0xf]
    %v356 = vld [vmem:[#allocation6 + $0x1e8] sm:$0xf]
    %v357 = vld [vmem:[#allocation6 + $0x1ec] sm:$0xf]
    %v358 = vld [vmem:[#allocation6 + $0x1f0] sm:$0xf]
    %v359 = vld [vmem:[#allocation6 + $0x1f4] sm:$0xf]
    %v360 = vld [vmem:[#allocation6 + $0x1f8] sm:$0xf]
    %v361 = vld [vmem:[#allocation6 + $0x1fc] sm:$0xf]
    %v362 = vld [vmem:[#allocation6 + $0x200] sm:$0xf]
    %v363 = vld [vmem:[#allocation6 + $0x204] sm:$0xf]
    %v364 = vld [vmem:[#allocation6 + $0x208] sm:$0xf]
    %v365 = vld [vmem:[#allocation6 + $0x20c] sm:$0xf]
    %v366 = vld [vmem:[#allocation6 + $0x210] sm:$0xf]
    %v367 = vld [vmem:[#allocation6 + $0x214] sm:$0xf]
    %v368 = vld [vmem:[#allocation6 + $0x218] sm:$0xf]
    %v369 = vld [vmem:[#allocation6 + $0x21c] sm:$0xf]
    %v370 = vld [vmem:[#allocation6 + $0x220] sm:$0xf]
    %v371 = vld [vmem:[#allocation6 + $0x224] sm:$0xf]
    %v372 = vld [vmem:[#allocation6 + $0x228] sm:$0xf]
    %v373 = vld [vmem:[#allocation6 + $0x22c] sm:$0xf]
    %v374 = vld [vmem:[#allocation6 + $0x230] sm:$0xf]
    %v375 = vld [vmem:[#allocation6 + $0x234] sm:$0xf]
    %v376 = vld [vmem:[#allocation6 + $0x238] sm:$0xf]
    %v377 = vld [vmem:[#allocation6 + $0x23c] sm:$0xf]
    %v378 = vld [vmem:[#allocation6 + $0x240] sm:$0xf]
    %v379 = vld [vmem:[#allocation6 + $0x244] sm:$0xf]
    %v380 = vld [vmem:[#allocation6 + $0x248] sm:$0xf]
    %v381 = vld [vmem:[#allocation6 + $0x24c] sm:$0xf]
    %v382 = vld [vmem:[#allocation6 + $0x250] sm:$0xf]
    %v383 = vld [vmem:[#allocation6 + $0x254] sm:$0xf]
    %v384 = vld [vmem:[#allocation6 + $0x258] sm:$0xf]
    %v385 = vld [vmem:[#allocation6 + $0x25c] sm:$0xf]
    %v386 = vld [vmem:[#allocation6 + $0x260] sm:$0xf]
    %v387 = vld [vmem:[#allocation6 + $0x264] sm:$0xf]
    %v388 = vld [vmem:[#allocation6 + $0x268] sm:$0xf]
    %v389 = vld [vmem:[#allocation6 + $0x26c] sm:$0xf]
    %v390 = vld [vmem:[#allocation6 + $0x270] sm:$0xf]
    %v391 = vld [vmem:[#allocation6 + $0x274] sm:$0xf]
    %v392 = vld [vmem:[#allocation6 + $0x278] sm:$0xf]
    %v393 = vld [vmem:[#allocation6 + $0x27c] sm:$0xf]
    %v394 = vld [vmem:[#allocation6 + $0x280] sm:$0xf]
    %v395 = vld [vmem:[#allocation6 + $0x284] sm:$0xf]
    %v396 = vld [vmem:[#allocation6 + $0x288] sm:$0xf]
    %v397 = vld [vmem:[#allocation6 + $0x28c] sm:$0xf]
    %v398 = vld [vmem:[#allocation6 + $0x290] sm:$0xf]
    %v399 = vld [vmem:[#allocation6 + $0x294] sm:$0xf]
    %v400 = vld [vmem:[#allocation6 + $0x298] sm:$0xf]
    %v401 = vld [vmem:[#allocation6 + $0x29c] sm:$0xf]
    %v402 = vld [vmem:[#allocation6 + $0x2a0] sm:$0xf]
    %v403 = vld [vmem:[#allocation6 + $0x2a4] sm:$0xf]
    %v404 = vld [vmem:[#allocation6 + $0x2a8] sm:$0xf]
    %v405 = vld [vmem:[#allocation6 + $0x2ac] sm:$0xf]
    %v406 = vld [vmem:[#allocation6 + $0x2b0] sm:$0xf]
    %v407 = vld [vmem:[#allocation6 + $0x2b4] sm:$0xf]
    %v408 = vld [vmem:[#allocation6 + $0x2b8] sm:$0xf]
    %v409 = vld [vmem:[#allocation6 + $0x2bc] sm:$0xf]
    %v410 = vld [vmem:[#allocation6 + $0x2c0] sm:$0xf]
    %v411 = vld [vmem:[#allocation6 + $0x2c4] sm:$0xf]
    %v412 = vld [vmem:[#allocation6 + $0x2c8] sm:$0xf]
    %v413 = vld [vmem:[#allocation6 + $0x2cc] sm:$0xf]
    %v414 = vld [vmem:[#allocation6 + $0x2d0] sm:$0xf]
    %v415 = vld [vmem:[#allocation6 + $0x2d4] sm:$0xf]
    %v416 = vld [vmem:[#allocation6 + $0x2d8] sm:$0xf]
    %v417 = vld [vmem:[#allocation6 + $0x2dc] sm:$0xf]
    %v418 = vld [vmem:[#allocation6 + $0x2e0] sm:$0xf]
    %v419 = vld [vmem:[#allocation6 + $0x2e4] sm:$0xf]
    %v420 = vld [vmem:[#allocation6 + $0x2e8] sm:$0xf]
    %v421 = vld [vmem:[#allocation6 + $0x2ec] sm:$0xf]
    %v422 = vld [vmem:[#allocation6 + $0x2f0] sm:$0xf]
    %v423 = vld [vmem:[#allocation6 + $0x2f4] sm:$0xf]
    %v424 = vld [vmem:[#allocation6 + $0x2f8] sm:$0xf]
    %v425 = vld [vmem:[#allocation6 + $0x2fc] sm:$0xf]
    %v426 = vld [vmem:[#allocation6 + $0x300] sm:$0xf]
    %v427 = vld [vmem:[#allocation6 + $0x304] sm:$0xf]
    %v428 = vld [vmem:[#allocation6 + $0x308] sm:$0xf]
    %v429 = vld [vmem:[#allocation6 + $0x30c] sm:$0xf]
    %v430 = vld [vmem:[#allocation6 + $0x310] sm:$0xf]
    %v431 = vld [vmem:[#allocation6 + $0x314] sm:$0xf]
    %v432 = vld [vmem:[#allocation6 + $0x318] sm:$0xf]
    %v433 = vld [vmem:[#allocation6 + $0x31c] sm:$0xf]
    %v434 = vld [vmem:[#allocation6 + $0x320] sm:$0xf]
    %v435 = vld [vmem:[#allocation6 + $0x324] sm:$0xf]
    %v436 = vld [vmem:[#allocation6 + $0x328] sm:$0xf]
    %v437 = vld [vmem:[#allocation6 + $0x32c] sm:$0xf]
    %v438 = vld [vmem:[#allocation6 + $0x330] sm:$0xf]
    %v439 = vld [vmem:[#allocation6 + $0x334] sm:$0xf]
    %v440 = vld [vmem:[#allocation6 + $0x338] sm:$0xf]
    %v441 = vld [vmem:[#allocation6 + $0x33c] sm:$0xf]
    %v442 = vld [vmem:[#allocation6 + $0x340] sm:$0xf]
    %v443 = vld [vmem:[#allocation6 + $0x344] sm:$0xf]
    %v444 = vld [vmem:[#allocation6 + $0x348] sm:$0xf]
    %v445 = vld [vmem:[#allocation6 + $0x34c] sm:$0xf]
    %v446 = vld [vmem:[#allocation6 + $0x350] sm:$0xf]
    %v447 = vld [vmem:[#allocation6 + $0x354] sm:$0xf]
    %v448 = vld [vmem:[#allocation6 + $0x358] sm:$0xf]
    %v449 = vld [vmem:[#allocation6 + $0x35c] sm:$0xf]
    %v450 = vld [vmem:[#allocation6 + $0x360] sm:$0xf]
    %v451 = vld [vmem:[#allocation6 + $0x364] sm:$0xf]
    %v452 = vld [vmem:[#allocation6 + $0x368] sm:$0xf]
    %v453 = vld [vmem:[#allocation6 + $0x36c] sm:$0xf]
    %v454 = vld [vmem:[#allocation6 + $0x370] sm:$0xf]
    %v455 = vld [vmem:[#allocation6 + $0x374] sm:$0xf]
    %v456 = vld [vmem:[#allocation6 + $0x378] sm:$0xf]
    %v457 = vld [vmem:[#allocation6 + $0x37c] sm:$0xf]
    %v458 = vld [vmem:[#allocation6 + $0x380] sm:$0xf]
    %v459 = vld [vmem:[#allocation6 + $0x384] sm:$0xf]
    %v460 = vld [vmem:[#allocation6 + $0x388] sm:$0xf]
    %v461 = vld [vmem:[#allocation6 + $0x38c] sm:$0xf]
    %v462 = vld [vmem:[#allocation6 + $0x390] sm:$0xf]
    %v463 = vld [vmem:[#allocation6 + $0x394] sm:$0xf]
    %v464 = vld [vmem:[#allocation6 + $0x398] sm:$0xf]
    %v465 = vld [vmem:[#allocation6 + $0x39c] sm:$0xf]
    %v466 = vld [vmem:[#allocation6 + $0x3a0] sm:$0xf]
    %v467 = vld [vmem:[#allocation6 + $0x3a4] sm:$0xf]
    %v468 = vld [vmem:[#allocation6 + $0x3a8] sm:$0xf]
    %v469 = vld [vmem:[#allocation6 + $0x3ac] sm:$0xf]
    %v470 = vld [vmem:[#allocation6 + $0x3b0] sm:$0xf]
    %v471 = vld [vmem:[#allocation6 + $0x3b4] sm:$0xf]
    %v472 = vld [vmem:[#allocation6 + $0x3b8] sm:$0xf]
    %v473 = vld [vmem:[#allocation6 + $0x3bc] sm:$0xf]
    %v474 = vld [vmem:[#allocation6 + $0x3c0] sm:$0xf]
    %v475 = vld [vmem:[#allocation6 + $0x3c4] sm:$0xf]
    %v476 = vld [vmem:[#allocation6 + $0x3c8] sm:$0xf]
    %v477 = vld [vmem:[#allocation6 + $0x3cc] sm:$0xf]
    %v478 = vld [vmem:[#allocation6 + $0x3d0] sm:$0xf]
    %v479 = vld [vmem:[#allocation6 + $0x3d4] sm:$0xf]
    %v480 = vld [vmem:[#allocation6 + $0x3d8] sm:$0xf]
    %v481 = vld [vmem:[#allocation6 + $0x3dc] sm:$0xf]
    %v482 = vld [vmem:[#allocation6 + $0x3e0] sm:$0xf]
    %v483 = vld [vmem:[#allocation6 + $0x3e4] sm:$0xf]
    %v484 = vld [vmem:[#allocation6 + $0x3e8] sm:$0xf]
    %v485 = vld [vmem:[#allocation6 + $0x3ec] sm:$0xf]
    %v486 = vld [vmem:[#allocation6 + $0x3f0] sm:$0xf]
    %v487 = vld [vmem:[#allocation6 + $0x3f4] sm:$0xf]
    %v488 = vld [vmem:[#allocation6 + $0x3f8] sm:$0xf]
    %v489 = vld [vmem:[#allocation6 + $0x3fc] sm:$0xf]
    %v490 = vld [vmem:[#allocation6 + $0x400] sm:$0xf]
    %v491 = vld [vmem:[#allocation6 + $0x404] sm:$0xf]
    %v492 = vld [vmem:[#allocation6 + $0x408] sm:$0xf]
    %v493 = vld [vmem:[#allocation6 + $0x40c] sm:$0xf]
    %v494 = vld [vmem:[#allocation6 + $0x410] sm:$0xf]
    %v495 = vld [vmem:[#allocation6 + $0x414] sm:$0xf]
    %v496 = vld [vmem:[#allocation6 + $0x418] sm:$0xf]
    %v497 = vld [vmem:[#allocation6 + $0x41c] sm:$0xf]
    %v498 = vld [vmem:[#allocation6 + $0x420] sm:$0xf]
    %v499 = vld [vmem:[#allocation6 + $0x424] sm:$0xf]
    %v500 = vld [vmem:[#allocation6 + $0x428] sm:$0xf]
    %v501 = vld [vmem:[#allocation6 + $0x42c] sm:$0xf]
    %v502 = vld [vmem:[#allocation6 + $0x430] sm:$0xf]
    %v503 = vld [vmem:[#allocation6 + $0x434] sm:$0xf]
    %v504 = vld [vmem:[#allocation6 + $0x438] sm:$0xf]
    %v505 = vld [vmem:[#allocation6 + $0x43c] sm:$0xf]
    %v506 = vld [vmem:[#allocation6 + $0x440] sm:$0xf]
    %v507 = vld [vmem:[#allocation6 + $0x444] sm:$0xf]
    %v508 = vld [vmem:[#allocation6 + $0x448] sm:$0xf]
    %v509 = vld [vmem:[#allocation6 + $0x44c] sm:$0xf]
    %v510 = vld [vmem:[#allocation6 + $0x450] sm:$0xf]
    %v511 = vld [vmem:[#allocation6 + $0x454] sm:$0xf]
    %v512 = vld [vmem:[#allocation6 + $0x458] sm:$0xf]
    %v513 = vld [vmem:[#allocation6 + $0x45c] sm:$0xf]
    %v514 = vld [vmem:[#allocation6 + $0x460] sm:$0xf]
    %v515 = vld [vmem:[#allocation6 + $0x464] sm:$0xf]
    %v516 = vld [vmem:[#allocation6 + $0x468] sm:$0xf]
    %v517 = vld [vmem:[#allocation6 + $0x46c] sm:$0xf]
    %v518 = vld [vmem:[#allocation6 + $0x470] sm:$0xf]
    %v519 = vld [vmem:[#allocation6 + $0x474] sm:$0xf]
    %v520 = vld [vmem:[#allocation6 + $0x478] sm:$0xf]
    %v521 = vld [vmem:[#allocation6 + $0x47c] sm:$0xf]
    %v522 = vld [vmem:[#allocation6 + $0x480] sm:$0xf]
    %v523 = vld [vmem:[#allocation6 + $0x484] sm:$0xf]
    %v524 = vld [vmem:[#allocation6 + $0x488] sm:$0xf]
    %v525 = vld [vmem:[#allocation6 + $0x48c] sm:$0xf]
    %v526 = vld [vmem:[#allocation6 + $0x490] sm:$0xf]
    %v527 = vld [vmem:[#allocation6 + $0x494] sm:$0xf]
    %v528 = vld [vmem:[#allocation6 + $0x498] sm:$0xf]
    %v529 = vld [vmem:[#allocation6 + $0x49c] sm:$0xf]
    %v530 = vld [vmem:[#allocation6 + $0x4a0] sm:$0xf]
    %v531 = vld [vmem:[#allocation6 + $0x4a4] sm:$0xf]
    %v532 = vld [vmem:[#allocation6 + $0x4a8] sm:$0xf]
    %v533 = vld [vmem:[#allocation6 + $0x4ac] sm:$0xf]
    %v534 = vld [vmem:[#allocation6 + $0x4b0] sm:$0xf]
    %v535 = vld [vmem:[#allocation6 + $0x4b4] sm:$0xf]
    %v536 = vld [vmem:[#allocation6 + $0x4b8] sm:$0xf]
    %v537 = vld [vmem:[#allocation6 + $0x4bc] sm:$0xf]
    %v538 = vld [vmem:[#allocation6 + $0x4c0] sm:$0xf]
    %v539 = vld [vmem:[#allocation6 + $0x4c4] sm:$0xf]
    %v540 = vld [vmem:[#allocation6 + $0x4c8] sm:$0xf]
    %v541 = vld [vmem:[#allocation6 + $0x4cc] sm:$0xf]
    %v542 = vld [vmem:[#allocation6 + $0x4d0] sm:$0xf]
    %v543 = vld [vmem:[#allocation6 + $0x4d4] sm:$0xf]
    %v544 = vld [vmem:[#allocation6 + $0x4d8] sm:$0xf]
    %v545 = vld [vmem:[#allocation6 + $0x4dc] sm:$0xf]
    %v546 = vld [vmem:[#allocation6 + $0x4e0] sm:$0xf]
    %v547 = vld [vmem:[#allocation6 + $0x4e4] sm:$0xf]
    %v548 = vld [vmem:[#allocation6 + $0x4e8] sm:$0xf]
    %v549 = vld [vmem:[#allocation6 + $0x4ec] sm:$0xf]
    %v550 = vld [vmem:[#allocation6 + $0x4f0] sm:$0xf]
    %v551 = vld [vmem:[#allocation6 + $0x4f4] sm:$0xf]
    %v552 = vld [vmem:[#allocation6 + $0x4f8] sm:$0xf]
    %v553 = vld [vmem:[#allocation6 + $0x4fc] sm:$0xf]
    %v554 = vld [vmem:[#allocation6 + $0x500] sm:$0xf]
    %v555 = vld [vmem:[#allocation6 + $0x504] sm:$0xf]
    %v556 = vld [vmem:[#allocation6 + $0x508] sm:$0xf]
    %v557 = vld [vmem:[#allocation6 + $0x50c] sm:$0xf]
    %v558 = vld [vmem:[#allocation6 + $0x510] sm:$0xf]
    %v559 = vld [vmem:[#allocation6 + $0x514] sm:$0xf]
    %v560 = vld [vmem:[#allocation6 + $0x518] sm:$0xf]
    %v561 = vld [vmem:[#allocation6 + $0x51c] sm:$0xf]
    %v562 = vld [vmem:[#allocation6 + $0x520] sm:$0xf]
    %v563 = vld [vmem:[#allocation6 + $0x524] sm:$0xf]
    %v564 = vld [vmem:[#allocation6 + $0x528] sm:$0xf]
    %v565 = vld [vmem:[#allocation6 + $0x52c] sm:$0xf]
    %v566 = vld [vmem:[#allocation6 + $0x530] sm:$0xf]
    %v567 = vld [vmem:[#allocation6 + $0x534] sm:$0xf]
    %v568 = vld [vmem:[#allocation6 + $0x538] sm:$0xf]
    %v569 = vld [vmem:[#allocation6 + $0x53c] sm:$0xf]
    %v570 = vld [vmem:[#allocation6 + $0x540] sm:$0xf]
    %v571 = vld [vmem:[#allocation6 + $0x544] sm:$0xf]
    %v572 = vld [vmem:[#allocation6 + $0x548] sm:$0xf]
    %v573 = vld [vmem:[#allocation6 + $0x54c] sm:$0xf]
    %v574 = vld [vmem:[#allocation6 + $0x550] sm:$0xf]
    %v575 = vld [vmem:[#allocation6 + $0x554] sm:$0xf]
    %v576 = vld [vmem:[#allocation6 + $0x558] sm:$0xf]
    %v577 = vld [vmem:[#allocation6 + $0x55c] sm:$0xf]
    %v578 = vld [vmem:[#allocation6 + $0x560] sm:$0xf]
    %v579 = vld [vmem:[#allocation6 + $0x564] sm:$0xf]
    %v580 = vld [vmem:[#allocation6 + $0x568] sm:$0xf]
    %v581 = vld [vmem:[#allocation6 + $0x56c] sm:$0xf]
    %v582 = vld [vmem:[#allocation6 + $0x570] sm:$0xf]
    %v583 = vld [vmem:[#allocation6 + $0x574] sm:$0xf]
    %v584 = vld [vmem:[#allocation6 + $0x578] sm:$0xf]
    %v585 = vld [vmem:[#allocation6 + $0x57c] sm:$0xf]
    %v586 = vld [vmem:[#allocation6 + $0x580] sm:$0xf]
    %v587 = vld [vmem:[#allocation6 + $0x584] sm:$0xf]
    %v588 = vld [vmem:[#allocation6 + $0x588] sm:$0xf]
    %v589 = vld [vmem:[#allocation6 + $0x58c] sm:$0xf]
    %v590 = vld [vmem:[#allocation6 + $0x590] sm:$0xf]
    %v591 = vld [vmem:[#allocation6 + $0x594] sm:$0xf]
    %v592 = vld [vmem:[#allocation6 + $0x598] sm:$0xf]
    %v593 = vld [vmem:[#allocation6 + $0x59c] sm:$0xf]
    %v594 = vld [vmem:[#allocation6 + $0x5a0] sm:$0xf]
    %v595 = vld [vmem:[#allocation6 + $0x5a4] sm:$0xf]
    %v596 = vld [vmem:[#allocation6 + $0x5a8] sm:$0xf]
    %v597 = vld [vmem:[#allocation6 + $0x5ac] sm:$0xf]
    %v598 = vld [vmem:[#allocation6 + $0x5b0] sm:$0xf]
    %v599 = vld [vmem:[#allocation6 + $0x5b4] sm:$0xf]
    %v600 = vld [vmem:[#allocation6 + $0x5b8] sm:$0xf]
    %v601 = vld [vmem:[#allocation6 + $0x5bc] sm:$0xf]
    %v602 = vld [vmem:[#allocation6 + $0x5c0] sm:$0xf]
    %v603 = vld [vmem:[#allocation6 + $0x5c4] sm:$0xf]
    %v604 = vld [vmem:[#allocation6 + $0x5c8] sm:$0xf]
    %v605 = vld [vmem:[#allocation6 + $0x5cc] sm:$0xf]
    %v606 = vld [vmem:[#allocation6 + $0x5d0] sm:$0xf]
    %v607 = vld [vmem:[#allocation6 + $0x5d4] sm:$0xf]
    %v608 = vld [vmem:[#allocation6 + $0x5d8] sm:$0xf]
    %v609 = vld [vmem:[#allocation6 + $0x5dc] sm:$0xf]
    %v610 = vld [vmem:[#allocation6 + $0x5e0] sm:$0xf]
    %v611 = vld [vmem:[#allocation6 + $0x5e4] sm:$0xf]
    %v612 = vld [vmem:[#allocation6 + $0x5e8] sm:$0xf]
    %v613 = vld [vmem:[#allocation6 + $0x5ec] sm:$0xf]
    %v614 = vld [vmem:[#allocation6 + $0x5f0] sm:$0xf]
    %v615 = vld [vmem:[#allocation6 + $0x5f4] sm:$0xf]
    %v616 = vld [vmem:[#allocation6 + $0x5f8] sm:$0xf]
    %v617 = vld [vmem:[#allocation6 + $0x5fc] sm:$0xf]
    %v618 = vld [vmem:[#allocation6 + $0x600] sm:$0xf]
    %v619 = vld [vmem:[#allocation6 + $0x604] sm:$0xf]
    %v620 = vld [vmem:[#allocation6 + $0x608] sm:$0xf]
    %v621 = vld [vmem:[#allocation6 + $0x60c] sm:$0xf]
    %v622 = vld [vmem:[#allocation6 + $0x610] sm:$0xf]
    %v623 = vld [vmem:[#allocation6 + $0x614] sm:$0xf]
    %v624 = vld [vmem:[#allocation6 + $0x618] sm:$0xf]
    %v625 = vld [vmem:[#allocation6 + $0x61c] sm:$0xf]
    %v626 = vld [vmem:[#allocation6 + $0x620] sm:$0xf]
    %v627 = vld [vmem:[#allocation6 + $0x624] sm:$0xf]
    %v628 = vld [vmem:[#allocation6 + $0x628] sm:$0xf]
    %v629 = vld [vmem:[#allocation6 + $0x62c] sm:$0xf]
    %v630 = vld [vmem:[#allocation6 + $0x630] sm:$0xf]
    %v631 = vld [vmem:[#allocation6 + $0x634] sm:$0xf]
    %v632 = vld [vmem:[#allocation6 + $0x638] sm:$0xf]
    %v633 = vld [vmem:[#allocation6 + $0x63c] sm:$0xf]
    %v634 = vld [vmem:[#allocation6 + $0x640] sm:$0xf]
    %v635 = vld [vmem:[#allocation6 + $0x644] sm:$0xf]
    %v636 = vld [vmem:[#allocation6 + $0x648] sm:$0xf]
    %v637 = vld [vmem:[#allocation6 + $0x64c] sm:$0xf]
    %v638 = vld [vmem:[#allocation6 + $0x650] sm:$0xf]
    %v639 = vld [vmem:[#allocation6 + $0x654] sm:$0xf]
    %v640 = vld [vmem:[#allocation6 + $0x658] sm:$0xf]
    %v641 = vld [vmem:[#allocation6 + $0x65c] sm:$0xf]
    %v642 = vld [vmem:[#allocation6 + $0x660] sm:$0xf]
    %v643 = vld [vmem:[#allocation6 + $0x664] sm:$0xf]
    %v644 = vld [vmem:[#allocation6 + $0x668] sm:$0xf]
    %v645 = vld [vmem:[#allocation6 + $0x66c] sm:$0xf]
    %v646 = vld [vmem:[#allocation6 + $0x670] sm:$0xf]
    %v647 = vld [vmem:[#allocation6 + $0x674] sm:$0xf]
    %v648 = vld [vmem:[#allocation6 + $0x678] sm:$0xf]
    %v649 = vld [vmem:[#allocation6 + $0x67c] sm:$0xf]
    %v650 = vld [vmem:[#allocation6 + $0x680] sm:$0xf]
    %v651 = vld [vmem:[#allocation6 + $0x684] sm:$0xf]
    %v652 = vld [vmem:[#allocation6 + $0x688] sm:$0xf]
    %v653 = vld [vmem:[#allocation6 + $0x68c] sm:$0xf]
    %v654 = vld [vmem:[#allocation6 + $0x690] sm:$0xf]
    %v655 = vld [vmem:[#allocation6 + $0x694] sm:$0xf]
    %v656 = vld [vmem:[#allocation6 + $0x698] sm:$0xf]
    %v657 = vld [vmem:[#allocation6 + $0x69c] sm:$0xf]
    %v658 = vld [vmem:[#allocation6 + $0x6a0] sm:$0xf]
    %v659 = vld [vmem:[#allocation6 + $0x6a4] sm:$0xf]
    %v660 = vld [vmem:[#allocation6 + $0x6a8] sm:$0xf]
    %v661 = vld [vmem:[#allocation6 + $0x6ac] sm:$0xf]
    %v662 = vld [vmem:[#allocation6 + $0x6b0] sm:$0xf]
    %v663 = vld [vmem:[#allocation6 + $0x6b4] sm:$0xf]
    %v664 = vld [vmem:[#allocation6 + $0x6b8] sm:$0xf]
    %v665 = vld [vmem:[#allocation6 + $0x6bc] sm:$0xf]
    %v666 = vld [vmem:[#allocation6 + $0x6c0] sm:$0xf]
    %v667 = vld [vmem:[#allocation6 + $0x6c4] sm:$0xf]
    %v668 = vld [vmem:[#allocation6 + $0x6c8] sm:$0xf]
    %v669 = vld [vmem:[#allocation6 + $0x6cc] sm:$0xf]
    %v670 = vld [vmem:[#allocation6 + $0x6d0] sm:$0xf]
    %v671 = vld [vmem:[#allocation6 + $0x6d4] sm:$0xf]
    %v672 = vld [vmem:[#allocation6 + $0x6d8] sm:$0xf]
    %v673 = vld [vmem:[#allocation6 + $0x6dc] sm:$0xf]
    %v674 = vld [vmem:[#allocation6 + $0x6e0] sm:$0xf]
    %v675 = vld [vmem:[#allocation6 + $0x6e4] sm:$0xf]
    %v676 = vld [vmem:[#allocation6 + $0x6e8] sm:$0xf]
    %v677 = vld [vmem:[#allocation6 + $0x6ec] sm:$0xf]
    %v678 = vld [vmem:[#allocation6 + $0x6f0] sm:$0xf]
    %v679 = vld [vmem:[#allocation6 + $0x6f4] sm:$0xf]
    %v680 = vld [vmem:[#allocation6 + $0x6f8] sm:$0xf]
    %v681 = vld [vmem:[#allocation6 + $0x6fc] sm:$0xf]
    %v682 = vld [vmem:[#allocation6 + $0x700] sm:$0xf]
    %v683 = vld [vmem:[#allocation6 + $0x704] sm:$0xf]
    %v684 = vld [vmem:[#allocation6 + $0x708] sm:$0xf]
    %v685 = vld [vmem:[#allocation6 + $0x70c] sm:$0xf]
    %v686 = vld [vmem:[#allocation6 + $0x710] sm:$0xf]
    %v687 = vld [vmem:[#allocation6 + $0x714] sm:$0xf]
    %v688 = vld [vmem:[#allocation6 + $0x718] sm:$0xf]
    %v689 = vld [vmem:[#allocation6 + $0x71c] sm:$0xf]
    %v690 = vld [vmem:[#allocation6 + $0x720] sm:$0xf]
    %v691 = vld [vmem:[#allocation6 + $0x724] sm:$0xf]
    %v692 = vld [vmem:[#allocation6 + $0x728] sm:$0xf]
    %v693 = vld [vmem:[#allocation6 + $0x72c] sm:$0xf]
    %v694 = vld [vmem:[#allocation6 + $0x730] sm:$0xf]
    %v695 = vld [vmem:[#allocation6 + $0x734] sm:$0xf]
    %v696 = vld [vmem:[#allocation6 + $0x738] sm:$0xf]
    %v697 = vld [vmem:[#allocation6 + $0x73c] sm:$0xf]
    %v698 = vld [vmem:[#allocation6 + $0x740] sm:$0xf]
    %v699 = vld [vmem:[#allocation6 + $0x744] sm:$0xf]
    %v700 = vld [vmem:[#allocation6 + $0x748] sm:$0xf]
    %v701 = vld [vmem:[#allocation6 + $0x74c] sm:$0xf]
    %v702 = vld [vmem:[#allocation6 + $0x750] sm:$0xf]
    %v703 = vld [vmem:[#allocation6 + $0x754] sm:$0xf]
    %v704 = vld [vmem:[#allocation6 + $0x758] sm:$0xf]
    %v705 = vld [vmem:[#allocation6 + $0x75c] sm:$0xf]
    %v706 = vld [vmem:[#allocation6 + $0x760] sm:$0xf]
    %v707 = vld [vmem:[#allocation6 + $0x764] sm:$0xf]
    %v708 = vld [vmem:[#allocation6 + $0x768] sm:$0xf]
    %v709 = vld [vmem:[#allocation6 + $0x76c] sm:$0xf]
    %v710 = vld [vmem:[#allocation6 + $0x770] sm:$0xf]
    %v711 = vld [vmem:[#allocation6 + $0x774] sm:$0xf]
    %v712 = vld [vmem:[#allocation6 + $0x778] sm:$0xf]
    %v713 = vld [vmem:[#allocation6 + $0x77c] sm:$0xf]
    %v714 = vld [vmem:[#allocation6 + $0x780] sm:$0xf]
    %v715 = vld [vmem:[#allocation6 + $0x784] sm:$0xf]
    %v716 = vld [vmem:[#allocation6 + $0x788] sm:$0xf]
    %v717 = vld [vmem:[#allocation6 + $0x78c] sm:$0xf]
    %v718 = vld [vmem:[#allocation6 + $0x790] sm:$0xf]
    %v719 = vld [vmem:[#allocation6 + $0x794] sm:$0xf]
    %v720 = vld [vmem:[#allocation6 + $0x798] sm:$0xf]
    %v721 = vld [vmem:[#allocation6 + $0x79c] sm:$0xf]
    %v722 = vld [vmem:[#allocation6 + $0x7a0] sm:$0xf]
    %v723 = vld [vmem:[#allocation6 + $0x7a4] sm:$0xf]
    %v724 = vld [vmem:[#allocation6 + $0x7a8] sm:$0xf]
    %v725 = vld [vmem:[#allocation6 + $0x7ac] sm:$0xf]
    %v726 = vld [vmem:[#allocation6 + $0x7b0] sm:$0xf]
    %v727 = vld [vmem:[#allocation6 + $0x7b4] sm:$0xf]
    %v728 = vld [vmem:[#allocation6 + $0x7b8] sm:$0xf]
    %v729 = vld [vmem:[#allocation6 + $0x7bc] sm:$0xf]
    %v730 = vld [vmem:[#allocation6 + $0x7c0] sm:$0xf]
    %v731 = vld [vmem:[#allocation6 + $0x7c4] sm:$0xf]
    %v732 = vld [vmem:[#allocation6 + $0x7c8] sm:$0xf]
    %v733 = vld [vmem:[#allocation6 + $0x7cc] sm:$0xf]
    %v734 = vld [vmem:[#allocation6 + $0x7d0] sm:$0xf]
    %v735 = vld [vmem:[#allocation6 + $0x7d4] sm:$0xf]
    %v736 = vld [vmem:[#allocation6 + $0x7d8] sm:$0xf]
    %v737 = vld [vmem:[#allocation6 + $0x7dc] sm:$0xf]
    %v738 = vld [vmem:[#allocation6 + $0x7e0] sm:$0xf]
    %v739 = vld [vmem:[#allocation6 + $0x7e4] sm:$0xf]
    %v740 = vld [vmem:[#allocation6 + $0x7e8] sm:$0xf]
    %v741 = vld [vmem:[#allocation6 + $0x7ec] sm:$0xf]
    %v742 = vld [vmem:[#allocation6 + $0x7f0] sm:$0xf]
    %v743 = vld [vmem:[#allocation6 + $0x7f4] sm:$0xf]
    %v744 = vld [vmem:[#allocation6 + $0x7f8] sm:$0xf]
    %v745 = vld [vmem:[#allocation6 + $0x7fc] sm:$0xf]
    %v746 = vld [vmem:[%s3] sm:$0x1]
    %v748 = vlaneseq
    %v749 = vshrl.u32 %v748, 7
    %v750 = vsub.s32 0, %v749
    %v751 = vrot.slane %v746, %v750
    %v1265 = vunpack.c.l.b16 %v234
    %v1266 = vunpack.c.l.b16 %v235
    %v1267 = vunpack.c.l.b16 %v236
    %v1268 = vunpack.c.l.b16 %v237
    %v1269 = vunpack.c.l.b16 %v238
    %v1270 = vunpack.c.l.b16 %v239
    %v1271 = vunpack.c.l.b16 %v240
    %v1272 = vunpack.c.l.b16 %v241
    %v1273 = vunpack.c.l.b16 %v242
    %v1274 = vunpack.c.l.b16 %v243
    %v1275 = vunpack.c.l.b16 %v244
    %v1276 = vunpack.c.l.b16 %v245
    %v1277 = vunpack.c.l.b16 %v246
    %v1278 = vunpack.c.l.b16 %v247
    %v1279 = vunpack.c.l.b16 %v248
    %v1280 = vunpack.c.l.b16 %v249
    %v1281 = vunpack.c.l.b16 %v250
    %v1282 = vunpack.c.l.b16 %v251
    %v1283 = vunpack.c.l.b16 %v252
    %v1284 = vunpack.c.l.b16 %v253
    %v1285 = vunpack.c.l.b16 %v254
    %v1286 = vunpack.c.l.b16 %v255
    %v1287 = vunpack.c.l.b16 %v256
    %v1288 = vunpack.c.l.b16 %v257
    %v1289 = vunpack.c.l.b16 %v258
    %v1290 = vunpack.c.l.b16 %v259
    %v1291 = vunpack.c.l.b16 %v260
    %v1292 = vunpack.c.l.b16 %v261
    %v1293 = vunpack.c.l.b16 %v262
    %v1294 = vunpack.c.l.b16 %v263
    %v1295 = vunpack.c.l.b16 %v264
    %v1296 = vunpack.c.l.b16 %v265
    %v1297 = vunpack.c.l.b16 %v266
    %v1298 = vunpack.c.l.b16 %v267
    %v1299 = vunpack.c.l.b16 %v268
    %v1300 = vunpack.c.l.b16 %v269
    %v1301 = vunpack.c.l.b16 %v270
    %v1302 = vunpack.c.l.b16 %v271
    %v1303 = vunpack.c.l.b16 %v272
    %v1304 = vunpack.c.l.b16 %v273
    %v1305 = vunpack.c.l.b16 %v274
    %v1306 = vunpack.c.l.b16 %v275
    %v1307 = vunpack.c.l.b16 %v276
    %v1308 = vunpack.c.l.b16 %v277
    %v1309 = vunpack.c.l.b16 %v278
    %v1310 = vunpack.c.l.b16 %v279
    %v1311 = vunpack.c.l.b16 %v280
    %v1312 = vunpack.c.l.b16 %v281
    %v1313 = vunpack.c.l.b16 %v282
    %v1314 = vunpack.c.l.b16 %v283
    %v1315 = vunpack.c.l.b16 %v284
    %v1316 = vunpack.c.l.b16 %v285
    %v1317 = vunpack.c.l.b16 %v286
    %v1318 = vunpack.c.l.b16 %v287
    %v1319 = vunpack.c.l.b16 %v288
    %v1320 = vunpack.c.l.b16 %v289
    %v1321 = vunpack.c.l.b16 %v290
    %v1322 = vunpack.c.l.b16 %v291
    %v1323 = vunpack.c.l.b16 %v292
    %v1324 = vunpack.c.l.b16 %v293
    %v1325 = vunpack.c.l.b16 %v294
    %v1326 = vunpack.c.l.b16 %v295
    %v1327 = vunpack.c.l.b16 %v296
    %v1328 = vunpack.c.l.b16 %v297
    %v1329 = vunpack.c.l.b16 %v298
    %v1330 = vunpack.c.l.b16 %v299
    %v1331 = vunpack.c.l.b16 %v300
    %v1332 = vunpack.c.l.b16 %v301
    %v1333 = vunpack.c.l.b16 %v302
    %v1334 = vunpack.c.l.b16 %v303
    %v1335 = vunpack.c.l.b16 %v304
    %v1336 = vunpack.c.l.b16 %v305
    %v1337 = vunpack.c.l.b16 %v306
    %v1338 = vunpack.c.l.b16 %v307
    %v1339 = vunpack.c.l.b16 %v308
    %v1340 = vunpack.c.l.b16 %v309
    %v1341 = vunpack.c.l.b16 %v310
    %v1342 = vunpack.c.l.b16 %v311
    %v1343 = vunpack.c.l.b16 %v312
    %v1344 = vunpack.c.l.b16 %v313
    %v1345 = vunpack.c.l.b16 %v314
    %v1346 = vunpack.c.l.b16 %v315
    %v1347 = vunpack.c.l.b16 %v316
    %v1348 = vunpack.c.l.b16 %v317
    %v1349 = vunpack.c.l.b16 %v318
    %v1350 = vunpack.c.l.b16 %v319
    %v1351 = vunpack.c.l.b16 %v320
    %v1352 = vunpack.c.l.b16 %v321
    %v1353 = vunpack.c.l.b16 %v322
    %v1354 = vunpack.c.l.b16 %v323
    %v1355 = vunpack.c.l.b16 %v324
    %v1356 = vunpack.c.l.b16 %v325
    %v1357 = vunpack.c.l.b16 %v326
    %v1358 = vunpack.c.l.b16 %v327
    %v1359 = vunpack.c.l.b16 %v328
    %v1360 = vunpack.c.l.b16 %v329
    %v1361 = vunpack.c.l.b16 %v330
    %v1362 = vunpack.c.l.b16 %v331
    %v1363 = vunpack.c.l.b16 %v332
    %v1364 = vunpack.c.l.b16 %v333
    %v1365 = vunpack.c.l.b16 %v334
    %v1366 = vunpack.c.l.b16 %v335
    %v1367 = vunpack.c.l.b16 %v336
    %v1368 = vunpack.c.l.b16 %v337
    %v1369 = vunpack.c.l.b16 %v338
    %v1370 = vunpack.c.l.b16 %v339
    %v1371 = vunpack.c.l.b16 %v340
    %v1372 = vunpack.c.l.b16 %v341
    %v1373 = vunpack.c.l.b16 %v342
    %v1374 = vunpack.c.l.b16 %v343
    %v1375 = vunpack.c.l.b16 %v344
    %v1376 = vunpack.c.l.b16 %v345
    %v1377 = vunpack.c.l.b16 %v346
    %v1378 = vunpack.c.l.b16 %v347
    %v1379 = vunpack.c.l.b16 %v348
    %v1380 = vunpack.c.l.b16 %v349
    %v1381 = vunpack.c.l.b16 %v350
    %v1382 = vunpack.c.l.b16 %v351
    %v1383 = vunpack.c.l.b16 %v352
    %v1384 = vunpack.c.l.b16 %v353
    %v1385 = vunpack.c.l.b16 %v354
    %v1386 = vunpack.c.l.b16 %v355
    %v1387 = vunpack.c.l.b16 %v356
    %v1388 = vunpack.c.l.b16 %v357
    %v1389 = vunpack.c.l.b16 %v358
    %v1390 = vunpack.c.l.b16 %v359
    %v1391 = vunpack.c.l.b16 %v360
    %v1392 = vunpack.c.l.b16 %v361
    %v1393 = vunpack.c.l.b16 %v362
    %v1394 = vunpack.c.l.b16 %v363
    %v1395 = vunpack.c.l.b16 %v364
    %v1396 = vunpack.c.l.b16 %v365
    %v1397 = vunpack.c.l.b16 %v366
    %v1398 = vunpack.c.l.b16 %v367
    %v1399 = vunpack.c.l.b16 %v368
    %v1400 = vunpack.c.l.b16 %v369
    %v1401 = vunpack.c.l.b16 %v370
    %v1402 = vunpack.c.l.b16 %v371
    %v1403 = vunpack.c.l.b16 %v372
    %v1404 = vunpack.c.l.b16 %v373
    %v1405 = vunpack.c.l.b16 %v374
    %v1406 = vunpack.c.l.b16 %v375
    %v1407 = vunpack.c.l.b16 %v376
    %v1408 = vunpack.c.l.b16 %v377
    %v1409 = vunpack.c.l.b16 %v378
    %v1410 = vunpack.c.l.b16 %v379
    %v1411 = vunpack.c.l.b16 %v380
    %v1412 = vunpack.c.l.b16 %v381
    %v1413 = vunpack.c.l.b16 %v382
    %v1414 = vunpack.c.l.b16 %v383
    %v1415 = vunpack.c.l.b16 %v384
    %v1416 = vunpack.c.l.b16 %v385
    %v1417 = vunpack.c.l.b16 %v386
    %v1418 = vunpack.c.l.b16 %v387
    %v1419 = vunpack.c.l.b16 %v388
    %v1420 = vunpack.c.l.b16 %v389
    %v1421 = vunpack.c.l.b16 %v390
    %v1422 = vunpack.c.l.b16 %v391
    %v1423 = vunpack.c.l.b16 %v392
    %v1424 = vunpack.c.l.b16 %v393
    %v1425 = vunpack.c.l.b16 %v394
    %v1426 = vunpack.c.l.b16 %v395
    %v1427 = vunpack.c.l.b16 %v396
    %v1428 = vunpack.c.l.b16 %v397
    %v1429 = vunpack.c.l.b16 %v398
    %v1430 = vunpack.c.l.b16 %v399
    %v1431 = vunpack.c.l.b16 %v400
    %v1432 = vunpack.c.l.b16 %v401
    %v1433 = vunpack.c.l.b16 %v402
    %v1434 = vunpack.c.l.b16 %v403
    %v1435 = vunpack.c.l.b16 %v404
    %v1436 = vunpack.c.l.b16 %v405
    %v1437 = vunpack.c.l.b16 %v406
    %v1438 = vunpack.c.l.b16 %v407
    %v1439 = vunpack.c.l.b16 %v408
    %v1440 = vunpack.c.l.b16 %v409
    %v1441 = vunpack.c.l.b16 %v410
    %v1442 = vunpack.c.l.b16 %v411
    %v1443 = vunpack.c.l.b16 %v412
    %v1444 = vunpack.c.l.b16 %v413
    %v1445 = vunpack.c.l.b16 %v414
    %v1446 = vunpack.c.l.b16 %v415
    %v1447 = vunpack.c.l.b16 %v416
    %v1448 = vunpack.c.l.b16 %v417
    %v1449 = vunpack.c.l.b16 %v418
    %v1450 = vunpack.c.l.b16 %v419
    %v1451 = vunpack.c.l.b16 %v420
    %v1452 = vunpack.c.l.b16 %v421
    %v1453 = vunpack.c.l.b16 %v422
    %v1454 = vunpack.c.l.b16 %v423
    %v1455 = vunpack.c.l.b16 %v424
    %v1456 = vunpack.c.l.b16 %v425
    %v1457 = vunpack.c.l.b16 %v426
    %v1458 = vunpack.c.l.b16 %v427
    %v1459 = vunpack.c.l.b16 %v428
    %v1460 = vunpack.c.l.b16 %v429
    %v1461 = vunpack.c.l.b16 %v430
    %v1462 = vunpack.c.l.b16 %v431
    %v1463 = vunpack.c.l.b16 %v432
    %v1464 = vunpack.c.l.b16 %v433
    %v1465 = vunpack.c.l.b16 %v434
    %v1466 = vunpack.c.l.b16 %v435
    %v1467 = vunpack.c.l.b16 %v436
    %v1468 = vunpack.c.l.b16 %v437
    %v1469 = vunpack.c.l.b16 %v438
    %v1470 = vunpack.c.l.b16 %v439
    %v1471 = vunpack.c.l.b16 %v440
    %v1472 = vunpack.c.l.b16 %v441
    %v1473 = vunpack.c.l.b16 %v442
    %v1474 = vunpack.c.l.b16 %v443
    %v1475 = vunpack.c.l.b16 %v444
    %v1476 = vunpack.c.l.b16 %v445
    %v1477 = vunpack.c.l.b16 %v446
    %v1478 = vunpack.c.l.b16 %v447
    %v1479 = vunpack.c.l.b16 %v448
    %v1480 = vunpack.c.l.b16 %v449
    %v1481 = vunpack.c.l.b16 %v450
    %v1482 = vunpack.c.l.b16 %v451
    %v1483 = vunpack.c.l.b16 %v452
    %v1484 = vunpack.c.l.b16 %v453
    %v1485 = vunpack.c.l.b16 %v454
    %v1486 = vunpack.c.l.b16 %v455
    %v1487 = vunpack.c.l.b16 %v456
    %v1488 = vunpack.c.l.b16 %v457
    %v1489 = vunpack.c.l.b16 %v458
    %v1490 = vunpack.c.l.b16 %v459
    %v1491 = vunpack.c.l.b16 %v460
    %v1492 = vunpack.c.l.b16 %v461
    %v1493 = vunpack.c.l.b16 %v462
    %v1494 = vunpack.c.l.b16 %v463
    %v1495 = vunpack.c.l.b16 %v464
    %v1496 = vunpack.c.l.b16 %v465
    %v1497 = vunpack.c.l.b16 %v466
    %v1498 = vunpack.c.l.b16 %v467
    %v1499 = vunpack.c.l.b16 %v468
    %v1500 = vunpack.c.l.b16 %v469
    %v1501 = vunpack.c.l.b16 %v470
    %v1502 = vunpack.c.l.b16 %v471
    %v1503 = vunpack.c.l.b16 %v472
    %v1504 = vunpack.c.l.b16 %v473
    %v1505 = vunpack.c.l.b16 %v474
    %v1506 = vunpack.c.l.b16 %v475
    %v1507 = vunpack.c.l.b16 %v476
    %v1508 = vunpack.c.l.b16 %v477
    %v1509 = vunpack.c.l.b16 %v478
    %v1510 = vunpack.c.l.b16 %v479
    %v1511 = vunpack.c.l.b16 %v480
    %v1512 = vunpack.c.l.b16 %v481
    %v1513 = vunpack.c.l.b16 %v482
    %v1514 = vunpack.c.l.b16 %v483
    %v1515 = vunpack.c.l.b16 %v484
    %v1516 = vunpack.c.l.b16 %v485
    %v1517 = vunpack.c.l.b16 %v486
    %v1518 = vunpack.c.l.b16 %v487
    %v1519 = vunpack.c.l.b16 %v488
    %v1520 = vunpack.c.l.b16 %v489
    %v1521 = vunpack.c.l.b16 %v490
    %v1522 = vunpack.c.l.b16 %v491
    %v1523 = vunpack.c.l.b16 %v492
    %v1524 = vunpack.c.l.b16 %v493
    %v1525 = vunpack.c.l.b16 %v494
    %v1526 = vunpack.c.l.b16 %v495
    %v1527 = vunpack.c.l.b16 %v496
    %v1528 = vunpack.c.l.b16 %v497
    %v1529 = vunpack.c.l.b16 %v498
    %v1530 = vunpack.c.l.b16 %v499
    %v1531 = vunpack.c.l.b16 %v500
    %v1532 = vunpack.c.l.b16 %v501
    %v1533 = vunpack.c.l.b16 %v502
    %v1534 = vunpack.c.l.b16 %v503
    %v1535 = vunpack.c.l.b16 %v504
    %v1536 = vunpack.c.l.b16 %v505
    %v1537 = vunpack.c.l.b16 %v506
    %v1538 = vunpack.c.l.b16 %v507
    %v1539 = vunpack.c.l.b16 %v508
    %v1540 = vunpack.c.l.b16 %v509
    %v1541 = vunpack.c.l.b16 %v510
    %v1542 = vunpack.c.l.b16 %v511
    %v1543 = vunpack.c.l.b16 %v512
    %v1544 = vunpack.c.l.b16 %v513
    %v1545 = vunpack.c.l.b16 %v514
    %v1546 = vunpack.c.l.b16 %v515
    %v1547 = vunpack.c.l.b16 %v516
    %v1548 = vunpack.c.l.b16 %v517
    %v1549 = vunpack.c.l.b16 %v518
    %v1550 = vunpack.c.l.b16 %v519
    %v1551 = vunpack.c.l.b16 %v520
    %v1552 = vunpack.c.l.b16 %v521
    %v1553 = vunpack.c.l.b16 %v522
    %v1554 = vunpack.c.l.b16 %v523
    %v1555 = vunpack.c.l.b16 %v524
    %v1556 = vunpack.c.l.b16 %v525
    %v1557 = vunpack.c.l.b16 %v526
    %v1558 = vunpack.c.l.b16 %v527
    %v1559 = vunpack.c.l.b16 %v528
    %v1560 = vunpack.c.l.b16 %v529
    %v1561 = vunpack.c.l.b16 %v530
    %v1562 = vunpack.c.l.b16 %v531
    %v1563 = vunpack.c.l.b16 %v532
    %v1564 = vunpack.c.l.b16 %v533
    %v1565 = vunpack.c.l.b16 %v534
    %v1566 = vunpack.c.l.b16 %v535
    %v1567 = vunpack.c.l.b16 %v536
    %v1568 = vunpack.c.l.b16 %v537
    %v1569 = vunpack.c.l.b16 %v538
    %v1570 = vunpack.c.l.b16 %v539
    %v1571 = vunpack.c.l.b16 %v540
    %v1572 = vunpack.c.l.b16 %v541
    %v1573 = vunpack.c.l.b16 %v542
    %v1574 = vunpack.c.l.b16 %v543
    %v1575 = vunpack.c.l.b16 %v544
    %v1576 = vunpack.c.l.b16 %v545
    %v1577 = vunpack.c.l.b16 %v546
    %v1578 = vunpack.c.l.b16 %v547
    %v1579 = vunpack.c.l.b16 %v548
    %v1580 = vunpack.c.l.b16 %v549
    %v1581 = vunpack.c.l.b16 %v550
    %v1582 = vunpack.c.l.b16 %v551
    %v1583 = vunpack.c.l.b16 %v552
    %v1584 = vunpack.c.l.b16 %v553
    %v1585 = vunpack.c.l.b16 %v554
    %v1586 = vunpack.c.l.b16 %v555
    %v1587 = vunpack.c.l.b16 %v556
    %v1588 = vunpack.c.l.b16 %v557
    %v1589 = vunpack.c.l.b16 %v558
    %v1590 = vunpack.c.l.b16 %v559
    %v1591 = vunpack.c.l.b16 %v560
    %v1592 = vunpack.c.l.b16 %v561
    %v1593 = vunpack.c.l.b16 %v562
    %v1594 = vunpack.c.l.b16 %v563
    %v1595 = vunpack.c.l.b16 %v564
    %v1596 = vunpack.c.l.b16 %v565
    %v1597 = vunpack.c.l.b16 %v566
    %v1598 = vunpack.c.l.b16 %v567
    %v1599 = vunpack.c.l.b16 %v568
    %v1600 = vunpack.c.l.b16 %v569
    %v1601 = vunpack.c.l.b16 %v570
    %v1602 = vunpack.c.l.b16 %v571
    %v1603 = vunpack.c.l.b16 %v572
    %v1604 = vunpack.c.l.b16 %v573
    %v1605 = vunpack.c.l.b16 %v574
    %v1606 = vunpack.c.l.b16 %v575
    %v1607 = vunpack.c.l.b16 %v576
    %v1608 = vunpack.c.l.b16 %v577
    %v1609 = vunpack.c.l.b16 %v578
    %v1610 = vunpack.c.l.b16 %v579
    %v1611 = vunpack.c.l.b16 %v580
    %v1612 = vunpack.c.l.b16 %v581
    %v1613 = vunpack.c.l.b16 %v582
    %v1614 = vunpack.c.l.b16 %v583
    %v1615 = vunpack.c.l.b16 %v584
    %v1616 = vunpack.c.l.b16 %v585
    %v1617 = vunpack.c.l.b16 %v586
    %v1618 = vunpack.c.l.b16 %v587
    %v1619 = vunpack.c.l.b16 %v588
    %v1620 = vunpack.c.l.b16 %v589
    %v1621 = vunpack.c.l.b16 %v590
    %v1622 = vunpack.c.l.b16 %v591
    %v1623 = vunpack.c.l.b16 %v592
    %v1624 = vunpack.c.l.b16 %v593
    %v1625 = vunpack.c.l.b16 %v594
    %v1626 = vunpack.c.l.b16 %v595
    %v1627 = vunpack.c.l.b16 %v596
    %v1628 = vunpack.c.l.b16 %v597
    %v1629 = vunpack.c.l.b16 %v598
    %v1630 = vunpack.c.l.b16 %v599
    %v1631 = vunpack.c.l.b16 %v600
    %v1632 = vunpack.c.l.b16 %v601
    %v1633 = vunpack.c.l.b16 %v602
    %v1634 = vunpack.c.l.b16 %v603
    %v1635 = vunpack.c.l.b16 %v604
    %v1636 = vunpack.c.l.b16 %v605
    %v1637 = vunpack.c.l.b16 %v606
    %v1638 = vunpack.c.l.b16 %v607
    %v1639 = vunpack.c.l.b16 %v608
    %v1640 = vunpack.c.l.b16 %v609
    %v1641 = vunpack.c.l.b16 %v610
    %v1642 = vunpack.c.l.b16 %v611
    %v1643 = vunpack.c.l.b16 %v612
    %v1644 = vunpack.c.l.b16 %v613
    %v1645 = vunpack.c.l.b16 %v614
    %v1646 = vunpack.c.l.b16 %v615
    %v1647 = vunpack.c.l.b16 %v616
    %v1648 = vunpack.c.l.b16 %v617
    %v1649 = vunpack.c.l.b16 %v618
    %v1650 = vunpack.c.l.b16 %v619
    %v1651 = vunpack.c.l.b16 %v620
    %v1652 = vunpack.c.l.b16 %v621
    %v1653 = vunpack.c.l.b16 %v622
    %v1654 = vunpack.c.l.b16 %v623
    %v1655 = vunpack.c.l.b16 %v624
    %v1656 = vunpack.c.l.b16 %v625
    %v1657 = vunpack.c.l.b16 %v626
    %v1658 = vunpack.c.l.b16 %v627
    %v1659 = vunpack.c.l.b16 %v628
    %v1660 = vunpack.c.l.b16 %v629
    %v1661 = vunpack.c.l.b16 %v630
    %v1662 = vunpack.c.l.b16 %v631
    %v1663 = vunpack.c.l.b16 %v632
    %v1664 = vunpack.c.l.b16 %v633
    %v1665 = vunpack.c.l.b16 %v634
    %v1666 = vunpack.c.l.b16 %v635
    %v1667 = vunpack.c.l.b16 %v636
    %v1668 = vunpack.c.l.b16 %v637
    %v1669 = vunpack.c.l.b16 %v638
    %v1670 = vunpack.c.l.b16 %v639
    %v1671 = vunpack.c.l.b16 %v640
    %v1672 = vunpack.c.l.b16 %v641
    %v1673 = vunpack.c.l.b16 %v642
    %v1674 = vunpack.c.l.b16 %v643
    %v1675 = vunpack.c.l.b16 %v644
    %v1676 = vunpack.c.l.b16 %v645
    %v1677 = vunpack.c.l.b16 %v646
    %v1678 = vunpack.c.l.b16 %v647
    %v1679 = vunpack.c.l.b16 %v648
    %v1680 = vunpack.c.l.b16 %v649
    %v1681 = vunpack.c.l.b16 %v650
    %v1682 = vunpack.c.l.b16 %v651
    %v1683 = vunpack.c.l.b16 %v652
    %v1684 = vunpack.c.l.b16 %v653
    %v1685 = vunpack.c.l.b16 %v654
    %v1686 = vunpack.c.l.b16 %v655
    %v1687 = vunpack.c.l.b16 %v656
    %v1688 = vunpack.c.l.b16 %v657
    %v1689 = vunpack.c.l.b16 %v658
    %v1690 = vunpack.c.l.b16 %v659
    %v1691 = vunpack.c.l.b16 %v660
    %v1692 = vunpack.c.l.b16 %v661
    %v1693 = vunpack.c.l.b16 %v662
    %v1694 = vunpack.c.l.b16 %v663
    %v1695 = vunpack.c.l.b16 %v664
    %v1696 = vunpack.c.l.b16 %v665
    %v1697 = vunpack.c.l.b16 %v666
    %v1698 = vunpack.c.l.b16 %v667
    %v1699 = vunpack.c.l.b16 %v668
    %v1700 = vunpack.c.l.b16 %v669
    %v1701 = vunpack.c.l.b16 %v670
    %v1702 = vunpack.c.l.b16 %v671
    %v1703 = vunpack.c.l.b16 %v672
    %v1704 = vunpack.c.l.b16 %v673
    %v1705 = vunpack.c.l.b16 %v674
    %v1706 = vunpack.c.l.b16 %v675
    %v1707 = vunpack.c.l.b16 %v676
    %v1708 = vunpack.c.l.b16 %v677
    %v1709 = vunpack.c.l.b16 %v678
    %v1710 = vunpack.c.l.b16 %v679
    %v1711 = vunpack.c.l.b16 %v680
    %v1712 = vunpack.c.l.b16 %v681
    %v1713 = vunpack.c.l.b16 %v682
    %v1714 = vunpack.c.l.b16 %v683
    %v1715 = vunpack.c.l.b16 %v684
    %v1716 = vunpack.c.l.b16 %v685
    %v1717 = vunpack.c.l.b16 %v686
    %v1718 = vunpack.c.l.b16 %v687
    %v1719 = vunpack.c.l.b16 %v688
    %v1720 = vunpack.c.l.b16 %v689
    %v1721 = vunpack.c.l.b16 %v690
    %v1722 = vunpack.c.l.b16 %v691
    %v1723 = vunpack.c.l.b16 %v692
    %v1724 = vunpack.c.l.b16 %v693
    %v1725 = vunpack.c.l.b16 %v694
    %v1726 = vunpack.c.l.b16 %v695
    %v1727 = vunpack.c.l.b16 %v696
    %v1728 = vunpack.c.l.b16 %v697
    %v1729 = vunpack.c.l.b16 %v698
    %v1730 = vunpack.c.l.b16 %v699
    %v1731 = vunpack.c.l.b16 %v700
    %v1732 = vunpack.c.l.b16 %v701
    %v1733 = vunpack.c.l.b16 %v702
    %v1734 = vunpack.c.l.b16 %v703
    %v1735 = vunpack.c.l.b16 %v704
    %v1736 = vunpack.c.l.b16 %v705
    %v1737 = vunpack.c.l.b16 %v706
    %v1738 = vunpack.c.l.b16 %v707
    %v1739 = vunpack.c.l.b16 %v708
    %v1740 = vunpack.c.l.b16 %v709
    %v1741 = vunpack.c.l.b16 %v710
    %v1742 = vunpack.c.l.b16 %v711
    %v1743 = vunpack.c.l.b16 %v712
    %v1744 = vunpack.c.l.b16 %v713
    %v1745 = vunpack.c.l.b16 %v714
    %v1746 = vunpack.c.l.b16 %v715
    %v1747 = vunpack.c.l.b16 %v716
    %v1748 = vunpack.c.l.b16 %v717
    %v1749 = vunpack.c.l.b16 %v718
    %v1750 = vunpack.c.l.b16 %v719
    %v1751 = vunpack.c.l.b16 %v720
    %v1752 = vunpack.c.l.b16 %v721
    %v1753 = vunpack.c.l.b16 %v722
    %v1754 = vunpack.c.l.b16 %v723
    %v1755 = vunpack.c.l.b16 %v724
    %v1756 = vunpack.c.l.b16 %v725
    %v1757 = vunpack.c.l.b16 %v726
    %v1758 = vunpack.c.l.b16 %v727
    %v1759 = vunpack.c.l.b16 %v728
    %v1760 = vunpack.c.l.b16 %v729
    %v1761 = vunpack.c.l.b16 %v730
    %v1762 = vunpack.c.l.b16 %v731
    %v1763 = vunpack.c.l.b16 %v732
    %v1764 = vunpack.c.l.b16 %v733
    %v1765 = vunpack.c.l.b16 %v734
    %v1766 = vunpack.c.l.b16 %v735
    %v1767 = vunpack.c.l.b16 %v736
    %v1768 = vunpack.c.l.b16 %v737
    %v1769 = vunpack.c.l.b16 %v738
    %v1770 = vunpack.c.l.b16 %v739
    %v1771 = vunpack.c.l.b16 %v740
    %v1772 = vunpack.c.l.b16 %v741
    %v1773 = vunpack.c.l.b16 %v742
    %v1774 = vunpack.c.l.b16 %v743
    %v1775 = vunpack.c.l.b16 %v744
    %v1776 = vunpack.c.l.b16 %v745
    %v1777 = vpack.c.b16 %v1266, %v1265
    %v1778 = vpack.c.b16 %v1268, %v1267
    %v1779 = vpack.c.b16 %v1270, %v1269
    %v1780 = vpack.c.b16 %v1272, %v1271
    %v1781 = vpack.c.b16 %v1274, %v1273
    %v1782 = vpack.c.b16 %v1276, %v1275
    %v1783 = vpack.c.b16 %v1278, %v1277
    %v1784 = vpack.c.b16 %v1280, %v1279
    %v1785 = vpack.c.b16 %v1282, %v1281
    %v1786 = vpack.c.b16 %v1284, %v1283
    %v1787 = vpack.c.b16 %v1286, %v1285
    %v1788 = vpack.c.b16 %v1288, %v1287
    %v1789 = vpack.c.b16 %v1290, %v1289
    %v1790 = vpack.c.b16 %v1292, %v1291
    %v1791 = vpack.c.b16 %v1294, %v1293
    %v1792 = vpack.c.b16 %v1296, %v1295
    %v1793 = vpack.c.b16 %v1298, %v1297
    %v1794 = vpack.c.b16 %v1300, %v1299
    %v1795 = vpack.c.b16 %v1302, %v1301
    %v1796 = vpack.c.b16 %v1304, %v1303
    %v1797 = vpack.c.b16 %v1306, %v1305
    %v1798 = vpack.c.b16 %v1308, %v1307
    %v1799 = vpack.c.b16 %v1310, %v1309
    %v1800 = vpack.c.b16 %v1312, %v1311
    %v1801 = vpack.c.b16 %v1314, %v1313
    %v1802 = vpack.c.b16 %v1316, %v1315
    %v1803 = vpack.c.b16 %v1318, %v1317
    %v1804 = vpack.c.b16 %v1320, %v1319
    %v1805 = vpack.c.b16 %v1322, %v1321
    %v1806 = vpack.c.b16 %v1324, %v1323
    %v1807 = vpack.c.b16 %v1326, %v1325
    %v1808 = vpack.c.b16 %v1328, %v1327
    %v1809 = vpack.c.b16 %v1330, %v1329
    %v1810 = vpack.c.b16 %v1332, %v1331
    %v1811 = vpack.c.b16 %v1334, %v1333
    %v1812 = vpack.c.b16 %v1336, %v1335
    %v1813 = vpack.c.b16 %v1338, %v1337
    %v1814 = vpack.c.b16 %v1340, %v1339
    %v1815 = vpack.c.b16 %v1342, %v1341
    %v1816 = vpack.c.b16 %v1344, %v1343
    %v1817 = vpack.c.b16 %v1346, %v1345
    %v1818 = vpack.c.b16 %v1348, %v1347
    %v1819 = vpack.c.b16 %v1350, %v1349
    %v1820 = vpack.c.b16 %v1352, %v1351
    %v1821 = vpack.c.b16 %v1354, %v1353
    %v1822 = vpack.c.b16 %v1356, %v1355
    %v1823 = vpack.c.b16 %v1358, %v1357
    %v1824 = vpack.c.b16 %v1360, %v1359
    %v1825 = vpack.c.b16 %v1362, %v1361
    %v1826 = vpack.c.b16 %v1364, %v1363
    %v1827 = vpack.c.b16 %v1366, %v1365
    %v1828 = vpack.c.b16 %v1368, %v1367
    %v1829 = vpack.c.b16 %v1370, %v1369
    %v1830 = vpack.c.b16 %v1372, %v1371
    %v1831 = vpack.c.b16 %v1374, %v1373
    %v1832 = vpack.c.b16 %v1376, %v1375
    %v1833 = vpack.c.b16 %v1378, %v1377
    %v1834 = vpack.c.b16 %v1380, %v1379
    %v1835 = vpack.c.b16 %v1382, %v1381
    %v1836 = vpack.c.b16 %v1384, %v1383
    %v1837 = vpack.c.b16 %v1386, %v1385
    %v1838 = vpack.c.b16 %v1388, %v1387
    %v1839 = vpack.c.b16 %v1390, %v1389
    %v1840 = vpack.c.b16 %v1392, %v1391
    %v1841 = vpack.c.b16 %v1394, %v1393
    %v1842 = vpack.c.b16 %v1396, %v1395
    %v1843 = vpack.c.b16 %v1398, %v1397
    %v1844 = vpack.c.b16 %v1400, %v1399
    %v1845 = vpack.c.b16 %v1402, %v1401
    %v1846 = vpack.c.b16 %v1404, %v1403
    %v1847 = vpack.c.b16 %v1406, %v1405
    %v1848 = vpack.c.b16 %v1408, %v1407
    %v1849 = vpack.c.b16 %v1410, %v1409
    %v1850 = vpack.c.b16 %v1412, %v1411
    %v1851 = vpack.c.b16 %v1414, %v1413
    %v1852 = vpack.c.b16 %v1416, %v1415
    %v1853 = vpack.c.b16 %v1418, %v1417
    %v1854 = vpack.c.b16 %v1420, %v1419
    %v1855 = vpack.c.b16 %v1422, %v1421
    %v1856 = vpack.c.b16 %v1424, %v1423
    %v1857 = vpack.c.b16 %v1426, %v1425
    %v1858 = vpack.c.b16 %v1428, %v1427
    %v1859 = vpack.c.b16 %v1430, %v1429
    %v1860 = vpack.c.b16 %v1432, %v1431
    %v1861 = vpack.c.b16 %v1434, %v1433
    %v1862 = vpack.c.b16 %v1436, %v1435
    %v1863 = vpack.c.b16 %v1438, %v1437
    %v1864 = vpack.c.b16 %v1440, %v1439
    %v1865 = vpack.c.b16 %v1442, %v1441
    %v1866 = vpack.c.b16 %v1444, %v1443
    %v1867 = vpack.c.b16 %v1446, %v1445
    %v1868 = vpack.c.b16 %v1448, %v1447
    %v1869 = vpack.c.b16 %v1450, %v1449
    %v1870 = vpack.c.b16 %v1452, %v1451
    %v1871 = vpack.c.b16 %v1454, %v1453
    %v1872 = vpack.c.b16 %v1456, %v1455
    %v1873 = vpack.c.b16 %v1458, %v1457
    %v1874 = vpack.c.b16 %v1460, %v1459
    %v1875 = vpack.c.b16 %v1462, %v1461
    %v1876 = vpack.c.b16 %v1464, %v1463
    %v1877 = vpack.c.b16 %v1466, %v1465
    %v1878 = vpack.c.b16 %v1468, %v1467
    %v1879 = vpack.c.b16 %v1470, %v1469
    %v1880 = vpack.c.b16 %v1472, %v1471
    %v1881 = vpack.c.b16 %v1474, %v1473
    %v1882 = vpack.c.b16 %v1476, %v1475
    %v1883 = vpack.c.b16 %v1478, %v1477
    %v1884 = vpack.c.b16 %v1480, %v1479
    %v1885 = vpack.c.b16 %v1482, %v1481
    %v1886 = vpack.c.b16 %v1484, %v1483
    %v1887 = vpack.c.b16 %v1486, %v1485
    %v1888 = vpack.c.b16 %v1488, %v1487
    %v1889 = vpack.c.b16 %v1490, %v1489
    %v1890 = vpack.c.b16 %v1492, %v1491
    %v1891 = vpack.c.b16 %v1494, %v1493
    %v1892 = vpack.c.b16 %v1496, %v1495
    %v1893 = vpack.c.b16 %v1498, %v1497
    %v1894 = vpack.c.b16 %v1500, %v1499
    %v1895 = vpack.c.b16 %v1502, %v1501
    %v1896 = vpack.c.b16 %v1504, %v1503
    %v1897 = vpack.c.b16 %v1506, %v1505
    %v1898 = vpack.c.b16 %v1508, %v1507
    %v1899 = vpack.c.b16 %v1510, %v1509
    %v1900 = vpack.c.b16 %v1512, %v1511
    %v1901 = vpack.c.b16 %v1514, %v1513
    %v1902 = vpack.c.b16 %v1516, %v1515
    %v1903 = vpack.c.b16 %v1518, %v1517
    %v1904 = vpack.c.b16 %v1520, %v1519
    %v1905 = vpack.c.b16 %v1522, %v1521
    %v1906 = vpack.c.b16 %v1524, %v1523
    %v1907 = vpack.c.b16 %v1526, %v1525
    %v1908 = vpack.c.b16 %v1528, %v1527
    %v1909 = vpack.c.b16 %v1530, %v1529
    %v1910 = vpack.c.b16 %v1532, %v1531
    %v1911 = vpack.c.b16 %v1534, %v1533
    %v1912 = vpack.c.b16 %v1536, %v1535
    %v1913 = vpack.c.b16 %v1538, %v1537
    %v1914 = vpack.c.b16 %v1540, %v1539
    %v1915 = vpack.c.b16 %v1542, %v1541
    %v1916 = vpack.c.b16 %v1544, %v1543
    %v1917 = vpack.c.b16 %v1546, %v1545
    %v1918 = vpack.c.b16 %v1548, %v1547
    %v1919 = vpack.c.b16 %v1550, %v1549
    %v1920 = vpack.c.b16 %v1552, %v1551
    %v1921 = vpack.c.b16 %v1554, %v1553
    %v1922 = vpack.c.b16 %v1556, %v1555
    %v1923 = vpack.c.b16 %v1558, %v1557
    %v1924 = vpack.c.b16 %v1560, %v1559
    %v1925 = vpack.c.b16 %v1562, %v1561
    %v1926 = vpack.c.b16 %v1564, %v1563
    %v1927 = vpack.c.b16 %v1566, %v1565
    %v1928 = vpack.c.b16 %v1568, %v1567
    %v1929 = vpack.c.b16 %v1570, %v1569
    %v1930 = vpack.c.b16 %v1572, %v1571
    %v1931 = vpack.c.b16 %v1574, %v1573
    %v1932 = vpack.c.b16 %v1576, %v1575
    %v1933 = vpack.c.b16 %v1578, %v1577
    %v1934 = vpack.c.b16 %v1580, %v1579
    %v1935 = vpack.c.b16 %v1582, %v1581
    %v1936 = vpack.c.b16 %v1584, %v1583
    %v1937 = vpack.c.b16 %v1586, %v1585
    %v1938 = vpack.c.b16 %v1588, %v1587
    %v1939 = vpack.c.b16 %v1590, %v1589
    %v1940 = vpack.c.b16 %v1592, %v1591
    %v1941 = vpack.c.b16 %v1594, %v1593
    %v1942 = vpack.c.b16 %v1596, %v1595
    %v1943 = vpack.c.b16 %v1598, %v1597
    %v1944 = vpack.c.b16 %v1600, %v1599
    %v1945 = vpack.c.b16 %v1602, %v1601
    %v1946 = vpack.c.b16 %v1604, %v1603
    %v1947 = vpack.c.b16 %v1606, %v1605
    %v1948 = vpack.c.b16 %v1608, %v1607
    %v1949 = vpack.c.b16 %v1610, %v1609
    %v1950 = vpack.c.b16 %v1612, %v1611
    %v1951 = vpack.c.b16 %v1614, %v1613
    %v1952 = vpack.c.b16 %v1616, %v1615
    %v1953 = vpack.c.b16 %v1618, %v1617
    %v1954 = vpack.c.b16 %v1620, %v1619
    %v1955 = vpack.c.b16 %v1622, %v1621
    %v1956 = vpack.c.b16 %v1624, %v1623
    %v1957 = vpack.c.b16 %v1626, %v1625
    %v1958 = vpack.c.b16 %v1628, %v1627
    %v1959 = vpack.c.b16 %v1630, %v1629
    %v1960 = vpack.c.b16 %v1632, %v1631
    %v1961 = vpack.c.b16 %v1634, %v1633
    %v1962 = vpack.c.b16 %v1636, %v1635
    %v1963 = vpack.c.b16 %v1638, %v1637
    %v1964 = vpack.c.b16 %v1640, %v1639
    %v1965 = vpack.c.b16 %v1642, %v1641
    %v1966 = vpack.c.b16 %v1644, %v1643
    %v1967 = vpack.c.b16 %v1646, %v1645
    %v1968 = vpack.c.b16 %v1648, %v1647
    %v1969 = vpack.c.b16 %v1650, %v1649
    %v1970 = vpack.c.b16 %v1652, %v1651
    %v1971 = vpack.c.b16 %v1654, %v1653
    %v1972 = vpack.c.b16 %v1656, %v1655
    %v1973 = vpack.c.b16 %v1658, %v1657
    %v1974 = vpack.c.b16 %v1660, %v1659
    %v1975 = vpack.c.b16 %v1662, %v1661
    %v1976 = vpack.c.b16 %v1664, %v1663
    %v1977 = vpack.c.b16 %v1666, %v1665
    %v1978 = vpack.c.b16 %v1668, %v1667
    %v1979 = vpack.c.b16 %v1670, %v1669
    %v1980 = vpack.c.b16 %v1672, %v1671
    %v1981 = vpack.c.b16 %v1674, %v1673
    %v1982 = vpack.c.b16 %v1676, %v1675
    %v1983 = vpack.c.b16 %v1678, %v1677
    %v1984 = vpack.c.b16 %v1680, %v1679
    %v1985 = vpack.c.b16 %v1682, %v1681
    %v1986 = vpack.c.b16 %v1684, %v1683
    %v1987 = vpack.c.b16 %v1686, %v1685
    %v1988 = vpack.c.b16 %v1688, %v1687
    %v1989 = vpack.c.b16 %v1690, %v1689
    %v1990 = vpack.c.b16 %v1692, %v1691
    %v1991 = vpack.c.b16 %v1694, %v1693
    %v1992 = vpack.c.b16 %v1696, %v1695
    %v1993 = vpack.c.b16 %v1698, %v1697
    %v1994 = vpack.c.b16 %v1700, %v1699
    %v1995 = vpack.c.b16 %v1702, %v1701
    %v1996 = vpack.c.b16 %v1704, %v1703
    %v1997 = vpack.c.b16 %v1706, %v1705
    %v1998 = vpack.c.b16 %v1708, %v1707
    %v1999 = vpack.c.b16 %v1710, %v1709
    %v2000 = vpack.c.b16 %v1712, %v1711
    %v2001 = vpack.c.b16 %v1714, %v1713
    %v2002 = vpack.c.b16 %v1716, %v1715
    %v2003 = vpack.c.b16 %v1718, %v1717
    %v2004 = vpack.c.b16 %v1720, %v1719
    %v2005 = vpack.c.b16 %v1722, %v1721
    %v2006 = vpack.c.b16 %v1724, %v1723
    %v2007 = vpack.c.b16 %v1726, %v1725
    %v2008 = vpack.c.b16 %v1728, %v1727
    %v2009 = vpack.c.b16 %v1730, %v1729
    %v2010 = vpack.c.b16 %v1732, %v1731
    %v2011 = vpack.c.b16 %v1734, %v1733
    %v2012 = vpack.c.b16 %v1736, %v1735
    %v2013 = vpack.c.b16 %v1738, %v1737
    %v2014 = vpack.c.b16 %v1740, %v1739
    %v2015 = vpack.c.b16 %v1742, %v1741
    %v2016 = vpack.c.b16 %v1744, %v1743
    %v2017 = vpack.c.b16 %v1746, %v1745
    %v2018 = vpack.c.b16 %v1748, %v1747
    %v2019 = vpack.c.b16 %v1750, %v1749
    %v2020 = vpack.c.b16 %v1752, %v1751
    %v2021 = vpack.c.b16 %v1754, %v1753
    %v2022 = vpack.c.b16 %v1756, %v1755
    %v2023 = vpack.c.b16 %v1758, %v1757
    %v2024 = vpack.c.b16 %v1760, %v1759
    %v2025 = vpack.c.b16 %v1762, %v1761
    %v2026 = vpack.c.b16 %v1764, %v1763
    %v2027 = vpack.c.b16 %v1766, %v1765
    %v2028 = vpack.c.b16 %v1768, %v1767
    %v2029 = vpack.c.b16 %v1770, %v1769
    %v2030 = vpack.c.b16 %v1772, %v1771
    %v2031 = vpack.c.b16 %v1774, %v1773
    %v2032 = vpack.c.b16 %v1776, %v1775
    %2289 = vmatprep.subr.bf16.mxu0 0
    %2290 = vmatpush1.bf16.msra.mxu0 %v1777
    %2291 = vmatprep.subr.bf16.mxu0 0
    %2292 = vmatpush1.bf16.msra.mxu0 %v1778
    %2293 = vmatprep.subr.bf16.mxu0 0
    %2294 = vmatpush1.bf16.msra.mxu0 %v1779
    %2295 = vmatprep.subr.bf16.mxu0 0
    %2296 = vmatpush1.bf16.msra.mxu0 %v1780
    %2297 = vmatprep.subr.bf16.mxu0 0
    %2298 = vmatpush1.bf16.msra.mxu0 %v1781
    %2299 = vmatprep.subr.bf16.mxu0 0
    %2300 = vmatpush1.bf16.msra.mxu0 %v1782
    %2301 = vmatprep.subr.bf16.mxu0 0
    %2302 = vmatpush1.bf16.msra.mxu0 %v1783
    %2303 = vmatprep.subr.bf16.mxu0 0
    %2304 = vmatpush1.bf16.msra.mxu0 %v1784
    %2305 = vmatprep.subr.bf16.mxu0 0
    %2306 = vmatpush1.bf16.msra.mxu0 %v1785
    %2307 = vmatprep.subr.bf16.mxu0 0
    %2308 = vmatpush1.bf16.msra.mxu0 %v1786
    %2309 = vmatprep.subr.bf16.mxu0 0
    %2310 = vmatpush1.bf16.msra.mxu0 %v1787
    %2311 = vmatprep.subr.bf16.mxu0 0
    %2312 = vmatpush1.bf16.msra.mxu0 %v1788
    %2313 = vmatprep.subr.bf16.mxu0 0
    %2314 = vmatpush1.bf16.msra.mxu0 %v1789
    %2315 = vmatprep.subr.bf16.mxu0 0
    %2316 = vmatpush1.bf16.msra.mxu0 %v1790
    %2317 = vmatprep.subr.bf16.mxu0 0
    %2318 = vmatpush1.bf16.msra.mxu0 %v1791
    %2319 = vmatprep.subr.bf16.mxu0 0
    %2320 = vmatpush1.bf16.msra.mxu0 %v1792
    %2321 = vmatprep.mubr.bf16.mxu0 %v203
    %2322 = vmatmul.mubr.bf16.gmra.mrb[0].mxu0 %v202
    %v2323 = vpop.f32.mrb[0].mxu0
    %v2324 = vadd.f32 %v751, %v2323
    %v2325 = vpop.f32.mrb[0].mxu0
    %v2326 = vpop.f32.mrb[0].mxu0
    %v2327 = vadd.f32 %v751, %v2326
    %v2328 = vpop.f32.mrb[0].mxu0
    %2329 = vdwg.mxu0
    %2330 = vmatprep.subr.bf16.mxu0 0
    %2331 = vmatpush1.bf16.msra.mxu0 %v1793
    %2332 = vmatprep.subr.bf16.mxu0 0
    %2333 = vmatpush1.bf16.msra.mxu0 %v1794
    %2334 = vmatprep.subr.bf16.mxu0 0
    %2335 = vmatpush1.bf16.msra.mxu0 %v1795
    %2336 = vmatprep.subr.bf16.mxu0 0
    %2337 = vmatpush1.bf16.msra.mxu0 %v1796
    %2338 = vmatprep.subr.bf16.mxu0 0
    %2339 = vmatpush1.bf16.msra.mxu0 %v1797
    %2340 = vmatprep.subr.bf16.mxu0 0
    %2341 = vmatpush1.bf16.msra.mxu0 %v1798
    %2342 = vmatprep.subr.bf16.mxu0 0
    %2343 = vmatpush1.bf16.msra.mxu0 %v1799
    %2344 = vmatprep.subr.bf16.mxu0 0
    %2345 = vmatpush1.bf16.msra.mxu0 %v1800
    %2346 = vmatprep.subr.bf16.mxu0 0
    %2347 = vmatpush1.bf16.msra.mxu0 %v1801
    %2348 = vmatprep.subr.bf16.mxu0 0
    %2349 = vmatpush1.bf16.msra.mxu0 %v1802
    %2350 = vmatprep.subr.bf16.mxu0 0
    %2351 = vmatpush1.bf16.msra.mxu0 %v1803
    %2352 = vmatprep.subr.bf16.mxu0 0
    %2353 = vmatpush1.bf16.msra.mxu0 %v1804
    %2354 = vmatprep.subr.bf16.mxu0 0
    %2355 = vmatpush1.bf16.msra.mxu0 %v1805
    %2356 = vmatprep.subr.bf16.mxu0 0
    %2357 = vmatpush1.bf16.msra.mxu0 %v1806
    %2358 = vmatprep.subr.bf16.mxu0 0
    %2359 = vmatpush1.bf16.msra.mxu0 %v1807
    %2360 = vmatprep.subr.bf16.mxu0 0
    %2361 = vmatpush1.bf16.msra.mxu0 %v1808
    %2362 = vmatprep.mubr.bf16.mxu0 %v205
    %2363 = vmatmul.mubr.bf16.gmra.mrb[0].mxu0 %v204
    %v2364 = vpop.f32.mrb[0].mxu0
    %v2365 = vadd.f32 %v2324, %v2364
    %v2366 = vpop.f32.mrb[0].mxu0
    %v2367 = vpop.f32.mrb[0].mxu0
    %v2368 = vadd.f32 %v2327, %v2367
    %v2369 = vpop.f32.mrb[0].mxu0
    %2370 = vdwg.mxu0
    %2371 = vmatprep.subr.bf16.mxu0 0
    %2372 = vmatpush1.bf16.msra.mxu0 %v1809
    %2373 = vmatprep.subr.bf16.mxu0 0
    %2374 = vmatpush1.bf16.msra.mxu0 %v1810
    %2375 = vmatprep.subr.bf16.mxu0 0
    %2376 = vmatpush1.bf16.msra.mxu0 %v1811
    %2377 = vmatprep.subr.bf16.mxu0 0
    %2378 = vmatpush1.bf16.msra.mxu0 %v1812
    %2379 = vmatprep.subr.bf16.mxu0 0
    %2380 = vmatpush1.bf16.msra.mxu0 %v1813
    %2381 = vmatprep.subr.bf16.mxu0 0
    %2382 = vmatpush1.bf16.msra.mxu0 %v1814
    %2383 = vmatprep.subr.bf16.mxu0 0
    %2384 = vmatpush1.bf16.msra.mxu0 %v1815
    %2385 = vmatprep.subr.bf16.mxu0 0
    %2386 = vmatpush1.bf16.msra.mxu0 %v1816
    %2387 = vmatprep.subr.bf16.mxu0 0
    %2388 = vmatpush1.bf16.msra.mxu0 %v1817
    %2389 = vmatprep.subr.bf16.mxu0 0
    %2390 = vmatpush1.bf16.msra.mxu0 %v1818
    %2391 = vmatprep.subr.bf16.mxu0 0
    %2392 = vmatpush1.bf16.msra.mxu0 %v1819
    %2393 = vmatprep.subr.bf16.mxu0 0
    %2394 = vmatpush1.bf16.msra.mxu0 %v1820
    %2395 = vmatprep.subr.bf16.mxu0 0
    %2396 = vmatpush1.bf16.msra.mxu0 %v1821
    %2397 = vmatprep.subr.bf16.mxu0 0
    %2398 = vmatpush1.bf16.msra.mxu0 %v1822
    %2399 = vmatprep.subr.bf16.mxu0 0
    %2400 = vmatpush1.bf16.msra.mxu0 %v1823
    %2401 = vmatprep.subr.bf16.mxu0 0
    %2402 = vmatpush1.bf16.msra.mxu0 %v1824
    %2403 = vmatprep.mubr.bf16.mxu0 %v207
    %2404 = vmatmul.mubr.bf16.gmra.mrb[0].mxu0 %v206
    %v2405 = vpop.f32.mrb[0].mxu0
    %v2406 = vadd.f32 %v2365, %v2405
    %v2407 = vpop.f32.mrb[0].mxu0
    %v2408 = vpop.f32.mrb[0].mxu0
    %v2409 = vadd.f32 %v2368, %v2408
    %v2410 = vpop.f32.mrb[0].mxu0
    %2411 = vdwg.mxu0
    %2412 = vmatprep.subr.bf16.mxu0 0
    %2413 = vmatpush1.bf16.msra.mxu0 %v1825
    %2414 = vmatprep.subr.bf16.mxu0 0
    %2415 = vmatpush1.bf16.msra.mxu0 %v1826
    %2416 = vmatprep.subr.bf16.mxu0 0
    %2417 = vmatpush1.bf16.msra.mxu0 %v1827
    %2418 = vmatprep.subr.bf16.mxu0 0
    %2419 = vmatpush1.bf16.msra.mxu0 %v1828
    %2420 = vmatprep.subr.bf16.mxu0 0
    %2421 = vmatpush1.bf16.msra.mxu0 %v1829
    %2422 = vmatprep.subr.bf16.mxu0 0
    %2423 = vmatpush1.bf16.msra.mxu0 %v1830
    %2424 = vmatprep.subr.bf16.mxu0 0
    %2425 = vmatpush1.bf16.msra.mxu0 %v1831
    %2426 = vmatprep.subr.bf16.mxu0 0
    %2427 = vmatpush1.bf16.msra.mxu0 %v1832
    %2428 = vmatprep.subr.bf16.mxu0 0
    %2429 = vmatpush1.bf16.msra.mxu0 %v1833
    %2430 = vmatprep.subr.bf16.mxu0 0
    %2431 = vmatpush1.bf16.msra.mxu0 %v1834
    %2432 = vmatprep.subr.bf16.mxu0 0
    %2433 = vmatpush1.bf16.msra.mxu0 %v1835
    %2434 = vmatprep.subr.bf16.mxu0 0
    %2435 = vmatpush1.bf16.msra.mxu0 %v1836
    %2436 = vmatprep.subr.bf16.mxu0 0
    %2437 = vmatpush1.bf16.msra.mxu0 %v1837
    %2438 = vmatprep.subr.bf16.mxu0 0
    %2439 = vmatpush1.bf16.msra.mxu0 %v1838
    %2440 = vmatprep.subr.bf16.mxu0 0
    %2441 = vmatpush1.bf16.msra.mxu0 %v1839
    %2442 = vmatprep.subr.bf16.mxu0 0
    %2443 = vmatpush1.bf16.msra.mxu0 %v1840
    %2444 = vmatprep.mubr.bf16.mxu0 %v209
    %2445 = vmatmul.mubr.bf16.gmra.mrb[0].mxu0 %v208
    %v2446 = vpop.f32.mrb[0].mxu0
    %v2447 = vadd.f32 %v2406, %v2446
    %v2448 = vpop.f32.mrb[0].mxu0
    %v2449 = vpop.f32.mrb[0].mxu0
    %v2450 = vadd.f32 %v2409, %v2449
    %v2451 = vpop.f32.mrb[0].mxu0
    %2452 = vdwg.mxu0
    %2453 = vmatprep.subr.bf16.mxu0 0
    %2454 = vmatpush1.bf16.msra.mxu0 %v1841
    %2455 = vmatprep.subr.bf16.mxu0 0
    %2456 = vmatpush1.bf16.msra.mxu0 %v1842
    %2457 = vmatprep.subr.bf16.mxu0 0
    %2458 = vmatpush1.bf16.msra.mxu0 %v1843
    %2459 = vmatprep.subr.bf16.mxu0 0
    %2460 = vmatpush1.bf16.msra.mxu0 %v1844
    %2461 = vmatprep.subr.bf16.mxu0 0
    %2462 = vmatpush1.bf16.msra.mxu0 %v1845
    %2463 = vmatprep.subr.bf16.mxu0 0
    %2464 = vmatpush1.bf16.msra.mxu0 %v1846
    %2465 = vmatprep.subr.bf16.mxu0 0
    %2466 = vmatpush1.bf16.msra.mxu0 %v1847
    %2467 = vmatprep.subr.bf16.mxu0 0
    %2468 = vmatpush1.bf16.msra.mxu0 %v1848
    %2469 = vmatprep.subr.bf16.mxu0 0
    %2470 = vmatpush1.bf16.msra.mxu0 %v1849
    %2471 = vmatprep.subr.bf16.mxu0 0
    %2472 = vmatpush1.bf16.msra.mxu0 %v1850
    %2473 = vmatprep.subr.bf16.mxu0 0
    %2474 = vmatpush1.bf16.msra.mxu0 %v1851
    %2475 = vmatprep.subr.bf16.mxu0 0
    %2476 = vmatpush1.bf16.msra.mxu0 %v1852
    %2477 = vmatprep.subr.bf16.mxu0 0
    %2478 = vmatpush1.bf16.msra.mxu0 %v1853
    %2479 = vmatprep.subr.bf16.mxu0 0
    %2480 = vmatpush1.bf16.msra.mxu0 %v1854
    %2481 = vmatprep.subr.bf16.mxu0 0
    %2482 = vmatpush1.bf16.msra.mxu0 %v1855
    %2483 = vmatprep.subr.bf16.mxu0 0
    %2484 = vmatpush1.bf16.msra.mxu0 %v1856
    %2485 = vmatprep.mubr.bf16.mxu0 %v211
    %2486 = vmatmul.mubr.bf16.gmra.mrb[0].mxu0 %v210
    %v2487 = vpop.f32.mrb[0].mxu0
    %v2488 = vadd.f32 %v2447, %v2487
    %v2489 = vpop.f32.mrb[0].mxu0
    %v2490 = vpop.f32.mrb[0].mxu0
    %v2491 = vadd.f32 %v2450, %v2490
    %v2492 = vpop.f32.mrb[0].mxu0
    %2493 = vdwg.mxu0
    %2494 = vmatprep.subr.bf16.mxu0 0
    %2495 = vmatpush1.bf16.msra.mxu0 %v1857
    %2496 = vmatprep.subr.bf16.mxu0 0
    %2497 = vmatpush1.bf16.msra.mxu0 %v1858
    %2498 = vmatprep.subr.bf16.mxu0 0
    %2499 = vmatpush1.bf16.msra.mxu0 %v1859
    %2500 = vmatprep.subr.bf16.mxu0 0
    %2501 = vmatpush1.bf16.msra.mxu0 %v1860
    %2502 = vmatprep.subr.bf16.mxu0 0
    %2503 = vmatpush1.bf16.msra.mxu0 %v1861
    %2504 = vmatprep.subr.bf16.mxu0 0
    %2505 = vmatpush1.bf16.msra.mxu0 %v1862
    %2506 = vmatprep.subr.bf16.mxu0 0
    %2507 = vmatpush1.bf16.msra.mxu0 %v1863
    %2508 = vmatprep.subr.bf16.mxu0 0
    %2509 = vmatpush1.bf16.msra.mxu0 %v1864
    %2510 = vmatprep.subr.bf16.mxu0 0
    %2511 = vmatpush1.bf16.msra.mxu0 %v1865
    %2512 = vmatprep.subr.bf16.mxu0 0
    %2513 = vmatpush1.bf16.msra.mxu0 %v1866
    %2514 = vmatprep.subr.bf16.mxu0 0
    %2515 = vmatpush1.bf16.msra.mxu0 %v1867
    %2516 = vmatprep.subr.bf16.mxu0 0
    %2517 = vmatpush1.bf16.msra.mxu0 %v1868
    %2518 = vmatprep.subr.bf16.mxu0 0
    %2519 = vmatpush1.bf16.msra.mxu0 %v1869
    %2520 = vmatprep.subr.bf16.mxu0 0
    %2521 = vmatpush1.bf16.msra.mxu0 %v1870
    %2522 = vmatprep.subr.bf16.mxu0 0
    %2523 = vmatpush1.bf16.msra.mxu0 %v1871
    %2524 = vmatprep.subr.bf16.mxu0 0
    %2525 = vmatpush1.bf16.msra.mxu0 %v1872
    %2526 = vmatprep.mubr.bf16.mxu0 %v213
    %2527 = vmatmul.mubr.bf16.gmra.mrb[0].mxu0 %v212
    %v2528 = vpop.f32.mrb[0].mxu0
    %v2529 = vadd.f32 %v2488, %v2528
    %v2530 = vpop.f32.mrb[0].mxu0
    %v2531 = vpop.f32.mrb[0].mxu0
    %v2532 = vadd.f32 %v2491, %v2531
    %v2533 = vpop.f32.mrb[0].mxu0
    %2534 = vdwg.mxu0
    %2535 = vmatprep.subr.bf16.mxu0 0
    %2536 = vmatpush1.bf16.msra.mxu0 %v1873
    %2537 = vmatprep.subr.bf16.mxu0 0
    %2538 = vmatpush1.bf16.msra.mxu0 %v1874
    %2539 = vmatprep.subr.bf16.mxu0 0
    %2540 = vmatpush1.bf16.msra.mxu0 %v1875
    %2541 = vmatprep.subr.bf16.mxu0 0
    %2542 = vmatpush1.bf16.msra.mxu0 %v1876
    %2543 = vmatprep.subr.bf16.mxu0 0
    %2544 = vmatpush1.bf16.msra.mxu0 %v1877
    %2545 = vmatprep.subr.bf16.mxu0 0
    %2546 = vmatpush1.bf16.msra.mxu0 %v1878
    %2547 = vmatprep.subr.bf16.mxu0 0
    %2548 = vmatpush1.bf16.msra.mxu0 %v1879
    %2549 = vmatprep.subr.bf16.mxu0 0
    %2550 = vmatpush1.bf16.msra.mxu0 %v1880
    %2551 = vmatprep.subr.bf16.mxu0 0
    %2552 = vmatpush1.bf16.msra.mxu0 %v1881
    %2553 = vmatprep.subr.bf16.mxu0 0
    %2554 = vmatpush1.bf16.msra.mxu0 %v1882
    %2555 = vmatprep.subr.bf16.mxu0 0
    %2556 = vmatpush1.bf16.msra.mxu0 %v1883
    %2557 = vmatprep.subr.bf16.mxu0 0
    %2558 = vmatpush1.bf16.msra.mxu0 %v1884
    %2559 = vmatprep.subr.bf16.mxu0 0
    %2560 = vmatpush1.bf16.msra.mxu0 %v1885
    %2561 = vmatprep.subr.bf16.mxu0 0
    %2562 = vmatpush1.bf16.msra.mxu0 %v1886
    %2563 = vmatprep.subr.bf16.mxu0 0
    %2564 = vmatpush1.bf16.msra.mxu0 %v1887
    %2565 = vmatprep.subr.bf16.mxu0 0
    %2566 = vmatpush1.bf16.msra.mxu0 %v1888
    %2567 = vmatprep.mubr.bf16.mxu0 %v215
    %2568 = vmatmul.mubr.bf16.gmra.mrb[0].mxu0 %v214
    %v2569 = vpop.f32.mrb[0].mxu0
    %v2570 = vadd.f32 %v2529, %v2569
    %v2571 = vpop.f32.mrb[0].mxu0
    %v2572 = vpop.f32.mrb[0].mxu0
    %v2573 = vadd.f32 %v2532, %v2572
    %v2574 = vpop.f32.mrb[0].mxu0
    %2575 = vdwg.mxu0
    %2576 = vmatprep.subr.bf16.mxu0 0
    %2577 = vmatpush1.bf16.msra.mxu0 %v1889
    %2578 = vmatprep.subr.bf16.mxu0 0
    %2579 = vmatpush1.bf16.msra.mxu0 %v1890
    %2580 = vmatprep.subr.bf16.mxu0 0
    %2581 = vmatpush1.bf16.msra.mxu0 %v1891
    %2582 = vmatprep.subr.bf16.mxu0 0
    %2583 = vmatpush1.bf16.msra.mxu0 %v1892
    %2584 = vmatprep.subr.bf16.mxu0 0
    %2585 = vmatpush1.bf16.msra.mxu0 %v1893
    %2586 = vmatprep.subr.bf16.mxu0 0
    %2587 = vmatpush1.bf16.msra.mxu0 %v1894
    %2588 = vmatprep.subr.bf16.mxu0 0
    %2589 = vmatpush1.bf16.msra.mxu0 %v1895
    %2590 = vmatprep.subr.bf16.mxu0 0
    %2591 = vmatpush1.bf16.msra.mxu0 %v1896
    %2592 = vmatprep.subr.bf16.mxu0 0
    %2593 = vmatpush1.bf16.msra.mxu0 %v1897
    %2594 = vmatprep.subr.bf16.mxu0 0
    %2595 = vmatpush1.bf16.msra.mxu0 %v1898
    %2596 = vmatprep.subr.bf16.mxu0 0
    %2597 = vmatpush1.bf16.msra.mxu0 %v1899
    %2598 = vmatprep.subr.bf16.mxu0 0
    %2599 = vmatpush1.bf16.msra.mxu0 %v1900
    %2600 = vmatprep.subr.bf16.mxu0 0
    %2601 = vmatpush1.bf16.msra.mxu0 %v1901
    %2602 = vmatprep.subr.bf16.mxu0 0
    %2603 = vmatpush1.bf16.msra.mxu0 %v1902
    %2604 = vmatprep.subr.bf16.mxu0 0
    %2605 = vmatpush1.bf16.msra.mxu0 %v1903
    %2606 = vmatprep.subr.bf16.mxu0 0
    %2607 = vmatpush1.bf16.msra.mxu0 %v1904
    %2608 = vmatprep.mubr.bf16.mxu0 %v217
    %2609 = vmatmul.mubr.bf16.gmra.mrb[0].mxu0 %v216
    %v2610 = vpop.f32.mrb[0].mxu0
    %v2611 = vadd.f32 %v2570, %v2610
    %v2612 = vpop.f32.mrb[0].mxu0
    %v2613 = vpop.f32.mrb[0].mxu0
    %v2614 = vadd.f32 %v2573, %v2613
    %v2615 = vpop.f32.mrb[0].mxu0
    %2616 = vdwg.mxu0
    %2617 = vmatprep.subr.bf16.mxu0 0
    %2618 = vmatpush1.bf16.msra.mxu0 %v1905
    %2619 = vmatprep.subr.bf16.mxu0 0
    %2620 = vmatpush1.bf16.msra.mxu0 %v1906
    %2621 = vmatprep.subr.bf16.mxu0 0
    %2622 = vmatpush1.bf16.msra.mxu0 %v1907
    %2623 = vmatprep.subr.bf16.mxu0 0
    %2624 = vmatpush1.bf16.msra.mxu0 %v1908
    %2625 = vmatprep.subr.bf16.mxu0 0
    %2626 = vmatpush1.bf16.msra.mxu0 %v1909
    %2627 = vmatprep.subr.bf16.mxu0 0
    %2628 = vmatpush1.bf16.msra.mxu0 %v1910
    %2629 = vmatprep.subr.bf16.mxu0 0
    %2630 = vmatpush1.bf16.msra.mxu0 %v1911
    %2631 = vmatprep.subr.bf16.mxu0 0
    %2632 = vmatpush1.bf16.msra.mxu0 %v1912
    %2633 = vmatprep.subr.bf16.mxu0 0
    %2634 = vmatpush1.bf16.msra.mxu0 %v1913
    %2635 = vmatprep.subr.bf16.mxu0 0
    %2636 = vmatpush1.bf16.msra.mxu0 %v1914
    %2637 = vmatprep.subr.bf16.mxu0 0
    %2638 = vmatpush1.bf16.msra.mxu0 %v1915
    %2639 = vmatprep.subr.bf16.mxu0 0
    %2640 = vmatpush1.bf16.msra.mxu0 %v1916
    %2641 = vmatprep.subr.bf16.mxu0 0
    %2642 = vmatpush1.bf16.msra.mxu0 %v1917
    %2643 = vmatprep.subr.bf16.mxu0 0
    %2644 = vmatpush1.bf16.msra.mxu0 %v1918
    %2645 = vmatprep.subr.bf16.mxu0 0
    %2646 = vmatpush1.bf16.msra.mxu0 %v1919
    %2647 = vmatprep.subr.bf16.mxu0 0
    %2648 = vmatpush1.bf16.msra.mxu0 %v1920
    %2649 = vmatprep.mubr.bf16.mxu0 %v219
    %2650 = vmatmul.mubr.bf16.gmra.mrb[0].mxu0 %v218
    %v2651 = vpop.f32.mrb[0].mxu0
    %v2652 = vadd.f32 %v2611, %v2651
    %v2653 = vpop.f32.mrb[0].mxu0
    %v2654 = vpop.f32.mrb[0].mxu0
    %v2655 = vadd.f32 %v2614, %v2654
    %v2656 = vpop.f32.mrb[0].mxu0
    %2657 = vdwg.mxu0
    %2658 = vmatprep.subr.bf16.mxu0 0
    %2659 = vmatpush1.bf16.msra.mxu0 %v1921
    %2660 = vmatprep.subr.bf16.mxu0 0
    %2661 = vmatpush1.bf16.msra.mxu0 %v1922
    %2662 = vmatprep.subr.bf16.mxu0 0
    %2663 = vmatpush1.bf16.msra.mxu0 %v1923
    %2664 = vmatprep.subr.bf16.mxu0 0
    %2665 = vmatpush1.bf16.msra.mxu0 %v1924
    %2666 = vmatprep.subr.bf16.mxu0 0
    %2667 = vmatpush1.bf16.msra.mxu0 %v1925
    %2668 = vmatprep.subr.bf16.mxu0 0
    %2669 = vmatpush1.bf16.msra.mxu0 %v1926
    %2670 = vmatprep.subr.bf16.mxu0 0
    %2671 = vmatpush1.bf16.msra.mxu0 %v1927
    %2672 = vmatprep.subr.bf16.mxu0 0
    %2673 = vmatpush1.bf16.msra.mxu0 %v1928
    %2674 = vmatprep.subr.bf16.mxu0 0
    %2675 = vmatpush1.bf16.msra.mxu0 %v1929
    %2676 = vmatprep.subr.bf16.mxu0 0
    %2677 = vmatpush1.bf16.msra.mxu0 %v1930
    %2678 = vmatprep.subr.bf16.mxu0 0
    %2679 = vmatpush1.bf16.msra.mxu0 %v1931
    %2680 = vmatprep.subr.bf16.mxu0 0
    %2681 = vmatpush1.bf16.msra.mxu0 %v1932
    %2682 = vmatprep.subr.bf16.mxu0 0
    %2683 = vmatpush1.bf16.msra.mxu0 %v1933
    %2684 = vmatprep.subr.bf16.mxu0 0
    %2685 = vmatpush1.bf16.msra.mxu0 %v1934
    %2686 = vmatprep.subr.bf16.mxu0 0
    %2687 = vmatpush1.bf16.msra.mxu0 %v1935
    %2688 = vmatprep.subr.bf16.mxu0 0
    %2689 = vmatpush1.bf16.msra.mxu0 %v1936
    %2690 = vmatprep.mubr.bf16.mxu0 %v221
    %2691 = vmatmul.mubr.bf16.gmra.mrb[0].mxu0 %v220
    %v2692 = vpop.f32.mrb[0].mxu0
    %v2693 = vadd.f32 %v2652, %v2692
    %v2694 = vpop.f32.mrb[0].mxu0
    %v2695 = vpop.f32.mrb[0].mxu0
    %v2696 = vadd.f32 %v2655, %v2695
    %v2697 = vpop.f32.mrb[0].mxu0
    %2698 = vdwg.mxu0
    %2699 = vmatprep.subr.bf16.mxu0 0
    %2700 = vmatpush1.bf16.msra.mxu0 %v1937
    %2701 = vmatprep.subr.bf16.mxu0 0
    %2702 = vmatpush1.bf16.msra.mxu0 %v1938
    %2703 = vmatprep.subr.bf16.mxu0 0
    %2704 = vmatpush1.bf16.msra.mxu0 %v1939
    %2705 = vmatprep.subr.bf16.mxu0 0
    %2706 = vmatpush1.bf16.msra.mxu0 %v1940
    %2707 = vmatprep.subr.bf16.mxu0 0
    %2708 = vmatpush1.bf16.msra.mxu0 %v1941
    %2709 = vmatprep.subr.bf16.mxu0 0
    %2710 = vmatpush1.bf16.msra.mxu0 %v1942
    %2711 = vmatprep.subr.bf16.mxu0 0
    %2712 = vmatpush1.bf16.msra.mxu0 %v1943
    %2713 = vmatprep.subr.bf16.mxu0 0
    %2714 = vmatpush1.bf16.msra.mxu0 %v1944
    %2715 = vmatprep.subr.bf16.mxu0 0
    %2716 = vmatpush1.bf16.msra.mxu0 %v1945
    %2717 = vmatprep.subr.bf16.mxu0 0
    %2718 = vmatpush1.bf16.msra.mxu0 %v1946
    %2719 = vmatprep.subr.bf16.mxu0 0
    %2720 = vmatpush1.bf16.msra.mxu0 %v1947
    %2721 = vmatprep.subr.bf16.mxu0 0
    %2722 = vmatpush1.bf16.msra.mxu0 %v1948
    %2723 = vmatprep.subr.bf16.mxu0 0
    %2724 = vmatpush1.bf16.msra.mxu0 %v1949
    %2725 = vmatprep.subr.bf16.mxu0 0
    %2726 = vmatpush1.bf16.msra.mxu0 %v1950
    %2727 = vmatprep.subr.bf16.mxu0 0
    %2728 = vmatpush1.bf16.msra.mxu0 %v1951
    %2729 = vmatprep.subr.bf16.mxu0 0
    %2730 = vmatpush1.bf16.msra.mxu0 %v1952
    %2731 = vmatprep.mubr.bf16.mxu0 %v223
    %2732 = vmatmul.mubr.bf16.gmra.mrb[0].mxu0 %v222
    %v2733 = vpop.f32.mrb[0].mxu0
    %v2734 = vadd.f32 %v2693, %v2733
    %v2735 = vpop.f32.mrb[0].mxu0
    %v2736 = vpop.f32.mrb[0].mxu0
    %v2737 = vadd.f32 %v2696, %v2736
    %v2738 = vpop.f32.mrb[0].mxu0
    %2739 = vdwg.mxu0
    %2740 = vmatprep.subr.bf16.mxu0 0
    %2741 = vmatpush1.bf16.msra.mxu0 %v1953
    %2742 = vmatprep.subr.bf16.mxu0 0
    %2743 = vmatpush1.bf16.msra.mxu0 %v1954
    %2744 = vmatprep.subr.bf16.mxu0 0
    %2745 = vmatpush1.bf16.msra.mxu0 %v1955
    %2746 = vmatprep.subr.bf16.mxu0 0
    %2747 = vmatpush1.bf16.msra.mxu0 %v1956
    %2748 = vmatprep.subr.bf16.mxu0 0
    %2749 = vmatpush1.bf16.msra.mxu0 %v1957
    %2750 = vmatprep.subr.bf16.mxu0 0
    %2751 = vmatpush1.bf16.msra.mxu0 %v1958
    %2752 = vmatprep.subr.bf16.mxu0 0
    %2753 = vmatpush1.bf16.msra.mxu0 %v1959
    %2754 = vmatprep.subr.bf16.mxu0 0
    %2755 = vmatpush1.bf16.msra.mxu0 %v1960
    %2756 = vmatprep.subr.bf16.mxu0 0
    %2757 = vmatpush1.bf16.msra.mxu0 %v1961
    %2758 = vmatprep.subr.bf16.mxu0 0
    %2759 = vmatpush1.bf16.msra.mxu0 %v1962
    %2760 = vmatprep.subr.bf16.mxu0 0
    %2761 = vmatpush1.bf16.msra.mxu0 %v1963
    %2762 = vmatprep.subr.bf16.mxu0 0
    %2763 = vmatpush1.bf16.msra.mxu0 %v1964
    %2764 = vmatprep.subr.bf16.mxu0 0
    %2765 = vmatpush1.bf16.msra.mxu0 %v1965
    %2766 = vmatprep.subr.bf16.mxu0 0
    %2767 = vmatpush1.bf16.msra.mxu0 %v1966
    %2768 = vmatprep.subr.bf16.mxu0 0
    %2769 = vmatpush1.bf16.msra.mxu0 %v1967
    %2770 = vmatprep.subr.bf16.mxu0 0
    %2771 = vmatpush1.bf16.msra.mxu0 %v1968
    %2772 = vmatprep.mubr.bf16.mxu0 %v225
    %2773 = vmatmul.mubr.bf16.gmra.mrb[0].mxu0 %v224
    %v2774 = vpop.f32.mrb[0].mxu0
    %v2775 = vadd.f32 %v2734, %v2774
    %v2776 = vpop.f32.mrb[0].mxu0
    %v2777 = vpop.f32.mrb[0].mxu0
    %v2778 = vadd.f32 %v2737, %v2777
    %v2779 = vpop.f32.mrb[0].mxu0
    %2780 = vdwg.mxu0
    %2781 = vmatprep.subr.bf16.mxu0 0
    %2782 = vmatpush1.bf16.msra.mxu0 %v1969
    %2783 = vmatprep.subr.bf16.mxu0 0
    %2784 = vmatpush1.bf16.msra.mxu0 %v1970
    %2785 = vmatprep.subr.bf16.mxu0 0
    %2786 = vmatpush1.bf16.msra.mxu0 %v1971
    %2787 = vmatprep.subr.bf16.mxu0 0
    %2788 = vmatpush1.bf16.msra.mxu0 %v1972
    %2789 = vmatprep.subr.bf16.mxu0 0
    %2790 = vmatpush1.bf16.msra.mxu0 %v1973
    %2791 = vmatprep.subr.bf16.mxu0 0
    %2792 = vmatpush1.bf16.msra.mxu0 %v1974
    %2793 = vmatprep.subr.bf16.mxu0 0
    %2794 = vmatpush1.bf16.msra.mxu0 %v1975
    %2795 = vmatprep.subr.bf16.mxu0 0
    %2796 = vmatpush1.bf16.msra.mxu0 %v1976
    %2797 = vmatprep.subr.bf16.mxu0 0
    %2798 = vmatpush1.bf16.msra.mxu0 %v1977
    %2799 = vmatprep.subr.bf16.mxu0 0
    %2800 = vmatpush1.bf16.msra.mxu0 %v1978
    %2801 = vmatprep.subr.bf16.mxu0 0
    %2802 = vmatpush1.bf16.msra.mxu0 %v1979
    %2803 = vmatprep.subr.bf16.mxu0 0
    %2804 = vmatpush1.bf16.msra.mxu0 %v1980
    %2805 = vmatprep.subr.bf16.mxu0 0
    %2806 = vmatpush1.bf16.msra.mxu0 %v1981
    %2807 = vmatprep.subr.bf16.mxu0 0
    %2808 = vmatpush1.bf16.msra.mxu0 %v1982
    %2809 = vmatprep.subr.bf16.mxu0 0
    %2810 = vmatpush1.bf16.msra.mxu0 %v1983
    %2811 = vmatprep.subr.bf16.mxu0 0
    %2812 = vmatpush1.bf16.msra.mxu0 %v1984
    %2813 = vmatprep.mubr.bf16.mxu0 %v227
    %2814 = vmatmul.mubr.bf16.gmra.mrb[0].mxu0 %v226
    %v2815 = vpop.f32.mrb[0].mxu0
    %v2816 = vadd.f32 %v2775, %v2815
    %v2817 = vpop.f32.mrb[0].mxu0
    %v2818 = vpop.f32.mrb[0].mxu0
    %v2819 = vadd.f32 %v2778, %v2818
    %v2820 = vpop.f32.mrb[0].mxu0
    %2821 = vdwg.mxu0
    %2822 = vmatprep.subr.bf16.mxu0 0
    %2823 = vmatpush1.bf16.msra.mxu0 %v1985
    %2824 = vmatprep.subr.bf16.mxu0 0
    %2825 = vmatpush1.bf16.msra.mxu0 %v1986
    %2826 = vmatprep.subr.bf16.mxu0 0
    %2827 = vmatpush1.bf16.msra.mxu0 %v1987
    %2828 = vmatprep.subr.bf16.mxu0 0
    %2829 = vmatpush1.bf16.msra.mxu0 %v1988
    %2830 = vmatprep.subr.bf16.mxu0 0
    %2831 = vmatpush1.bf16.msra.mxu0 %v1989
    %2832 = vmatprep.subr.bf16.mxu0 0
    %2833 = vmatpush1.bf16.msra.mxu0 %v1990
    %2834 = vmatprep.subr.bf16.mxu0 0
    %2835 = vmatpush1.bf16.msra.mxu0 %v1991
    %2836 = vmatprep.subr.bf16.mxu0 0
    %2837 = vmatpush1.bf16.msra.mxu0 %v1992
    %2838 = vmatprep.subr.bf16.mxu0 0
    %2839 = vmatpush1.bf16.msra.mxu0 %v1993
    %2840 = vmatprep.subr.bf16.mxu0 0
    %2841 = vmatpush1.bf16.msra.mxu0 %v1994
    %2842 = vmatprep.subr.bf16.mxu0 0
    %2843 = vmatpush1.bf16.msra.mxu0 %v1995
    %2844 = vmatprep.subr.bf16.mxu0 0
    %2845 = vmatpush1.bf16.msra.mxu0 %v1996
    %2846 = vmatprep.subr.bf16.mxu0 0
    %2847 = vmatpush1.bf16.msra.mxu0 %v1997
    %2848 = vmatprep.subr.bf16.mxu0 0
    %2849 = vmatpush1.bf16.msra.mxu0 %v1998
    %2850 = vmatprep.subr.bf16.mxu0 0
    %2851 = vmatpush1.bf16.msra.mxu0 %v1999
    %2852 = vmatprep.subr.bf16.mxu0 0
    %2853 = vmatpush1.bf16.msra.mxu0 %v2000
    %2854 = vmatprep.mubr.bf16.mxu0 %v229
    %2855 = vmatmul.mubr.bf16.gmra.mrb[0].mxu0 %v228
    %v2856 = vpop.f32.mrb[0].mxu0
    %v2857 = vadd.f32 %v2816, %v2856
    %v2858 = vpop.f32.mrb[0].mxu0
    %v2859 = vpop.f32.mrb[0].mxu0
    %v2860 = vadd.f32 %v2819, %v2859
    %v2861 = vpop.f32.mrb[0].mxu0
    %2862 = vdwg.mxu0
    %2863 = vmatprep.subr.bf16.mxu0 0
    %2864 = vmatpush1.bf16.msra.mxu0 %v2001
    %2865 = vmatprep.subr.bf16.mxu0 0
    %2866 = vmatpush1.bf16.msra.mxu0 %v2002
    %2867 = vmatprep.subr.bf16.mxu0 0
    %2868 = vmatpush1.bf16.msra.mxu0 %v2003
    %2869 = vmatprep.subr.bf16.mxu0 0
    %2870 = vmatpush1.bf16.msra.mxu0 %v2004
    %2871 = vmatprep.subr.bf16.mxu0 0
    %2872 = vmatpush1.bf16.msra.mxu0 %v2005
    %2873 = vmatprep.subr.bf16.mxu0 0
    %2874 = vmatpush1.bf16.msra.mxu0 %v2006
    %2875 = vmatprep.subr.bf16.mxu0 0
    %2876 = vmatpush1.bf16.msra.mxu0 %v2007
    %2877 = vmatprep.subr.bf16.mxu0 0
    %2878 = vmatpush1.bf16.msra.mxu0 %v2008
    %2879 = vmatprep.subr.bf16.mxu0 0
    %2880 = vmatpush1.bf16.msra.mxu0 %v2009
    %2881 = vmatprep.subr.bf16.mxu0 0
    %2882 = vmatpush1.bf16.msra.mxu0 %v2010
    %2883 = vmatprep.subr.bf16.mxu0 0
    %2884 = vmatpush1.bf16.msra.mxu0 %v2011
    %2885 = vmatprep.subr.bf16.mxu0 0
    %2886 = vmatpush1.bf16.msra.mxu0 %v2012
    %2887 = vmatprep.subr.bf16.mxu0 0
    %2888 = vmatpush1.bf16.msra.mxu0 %v2013
    %2889 = vmatprep.subr.bf16.mxu0 0
    %2890 = vmatpush1.bf16.msra.mxu0 %v2014
    %2891 = vmatprep.subr.bf16.mxu0 0
    %2892 = vmatpush1.bf16.msra.mxu0 %v2015
    %2893 = vmatprep.subr.bf16.mxu0 0
    %2894 = vmatpush1.bf16.msra.mxu0 %v2016
    %2895 = vmatprep.mubr.bf16.mxu0 %v231
    %2896 = vmatmul.mubr.bf16.gmra.mrb[0].mxu0 %v230
    %v2897 = vpop.f32.mrb[0].mxu0
    %v2898 = vadd.f32 %v2857, %v2897
    %v2899 = vpop.f32.mrb[0].mxu0
    %v2900 = vpop.f32.mrb[0].mxu0
    %v2901 = vadd.f32 %v2860, %v2900
    %v2902 = vpop.f32.mrb[0].mxu0
    %2903 = vdwg.mxu0
    %2904 = vmatprep.subr.bf16.mxu0 0
    %2905 = vmatpush1.bf16.msra.mxu0 %v2017
    %2906 = vmatprep.subr.bf16.mxu0 0
    %2907 = vmatpush1.bf16.msra.mxu0 %v2018
    %2908 = vmatprep.subr.bf16.mxu0 0
    %2909 = vmatpush1.bf16.msra.mxu0 %v2019
    %2910 = vmatprep.subr.bf16.mxu0 0
    %2911 = vmatpush1.bf16.msra.mxu0 %v2020
    %2912 = vmatprep.subr.bf16.mxu0 0
    %2913 = vmatpush1.bf16.msra.mxu0 %v2021
    %2914 = vmatprep.subr.bf16.mxu0 0
    %2915 = vmatpush1.bf16.msra.mxu0 %v2022
    %2916 = vmatprep.subr.bf16.mxu0 0
    %2917 = vmatpush1.bf16.msra.mxu0 %v2023
    %2918 = vmatprep.subr.bf16.mxu0 0
    %2919 = vmatpush1.bf16.msra.mxu0 %v2024
    %2920 = vmatprep.subr.bf16.mxu0 0
    %2921 = vmatpush1.bf16.msra.mxu0 %v2025
    %2922 = vmatprep.subr.bf16.mxu0 0
    %2923 = vmatpush1.bf16.msra.mxu0 %v2026
    %2924 = vmatprep.subr.bf16.mxu0 0
    %2925 = vmatpush1.bf16.msra.mxu0 %v2027
    %2926 = vmatprep.subr.bf16.mxu0 0
    %2927 = vmatpush1.bf16.msra.mxu0 %v2028
    %2928 = vmatprep.subr.bf16.mxu0 0
    %2929 = vmatpush1.bf16.msra.mxu0 %v2029
    %2930 = vmatprep.subr.bf16.mxu0 0
    %2931 = vmatpush1.bf16.msra.mxu0 %v2030
    %2932 = vmatprep.subr.bf16.mxu0 0
    %2933 = vmatpush1.bf16.msra.mxu0 %v2031
    %2934 = vmatprep.subr.bf16.mxu0 0
    %2935 = vmatpush1.bf16.msra.mxu0 %v2032
    %2936 = vmatprep.mubr.bf16.mxu0 %v233
    %2937 = vmatmul.mubr.bf16.gmra.mrb[0].mxu0 %v232
    %v2938 = vpop.f32.mrb[0].mxu0
    %v2939 = vadd.f32 %v2898, %v2938
    %v2940 = vpop.f32.mrb[0].mxu0
    %v2941 = vpop.f32.mrb[0].mxu0
    %v2942 = vadd.f32 %v2901, %v2941
    %v2943 = vpop.f32.mrb[0].mxu0
    %2944 = vdwg.mxu0
    %vm2945 = vcmp.gt.f32.partialorder %v2939, 0.0
    %vm2946 = vcmp.gt.f32.partialorder %v2942, 0.0
    %v2947 = vmul.f32 %v2939, 0.01
    %v2948 = vmul.f32 %v2942, 0.01
    %v2949 = vsel %vm2945, %v2939, %v2947
    %v2950 = vsel %vm2946, %v2942, %v2948
    %v2951 = vpack.c.bf16 %v2950, %v2949
    %v2952 = vld [vmem:[%s4] sm:$0xf]
    %v2953 = vld [vmem:[%s4 + $0x4] sm:$0xf]
    %v2954 = vld [vmem:[%s4 + $0x8] sm:$0xf]
    %v2955 = vld [vmem:[%s4 + $0xc] sm:$0xf]
    %v2956 = vld [vmem:[%s4 + $0x10] sm:$0xf]
    %v2957 = vld [vmem:[%s4 + $0x14] sm:$0xf]
    %v2958 = vld [vmem:[%s4 + $0x18] sm:$0xf]
    %v2959 = vld [vmem:[%s4 + $0x1c] sm:$0xf]
    %v2960 = vld [vmem:[%s4 + $0x20] sm:$0xf]
    %v2961 = vld [vmem:[%s4 + $0x24] sm:$0xf]
    %v2962 = vld [vmem:[%s4 + $0x28] sm:$0xf]
    %v2963 = vld [vmem:[%s4 + $0x2c] sm:$0xf]
    %v2964 = vld [vmem:[%s4 + $0x30] sm:$0xf]
    %v2965 = vld [vmem:[%s4 + $0x34] sm:$0xf]
    %v2966 = vld [vmem:[%s4 + $0x38] sm:$0xf]
    %v2967 = vld [vmem:[%s4 + $0x3c] sm:$0xf]
    %v2968 = vld [vmem:[#allocation7] sm:$0x1]
    %v2970 = vlaneseq
    %v2971 = vshrl.u32 %v2970, 7
    %v2972 = vsub.s32 0, %v2971
    %v2973 = vrot.slane %v2968, %v2972
    %v2991 = vunpack.c.l.b16 %v2952
    %v2992 = vunpack.c.l.b16 %v2953
    %v2993 = vunpack.c.l.b16 %v2954
    %v2994 = vunpack.c.l.b16 %v2955
    %v2995 = vunpack.c.l.b16 %v2956
    %v2996 = vunpack.c.l.b16 %v2957
    %v2997 = vunpack.c.l.b16 %v2958
    %v2998 = vunpack.c.l.b16 %v2959
    %v2999 = vunpack.c.l.b16 %v2960
    %v3000 = vunpack.c.l.b16 %v2961
    %v3001 = vunpack.c.l.b16 %v2962
    %v3002 = vunpack.c.l.b16 %v2963
    %v3003 = vunpack.c.l.b16 %v2964
    %v3004 = vunpack.c.l.b16 %v2965
    %v3005 = vunpack.c.l.b16 %v2966
    %v3006 = vunpack.c.l.b16 %v2967
    %v3007 = vpack.c.b16 %v2992, %v2991
    %v3008 = vpack.c.b16 %v2994, %v2993
    %v3009 = vpack.c.b16 %v2996, %v2995
    %v3010 = vpack.c.b16 %v2998, %v2997
    %v3011 = vpack.c.b16 %v3000, %v2999
    %v3012 = vpack.c.b16 %v3002, %v3001
    %v3013 = vpack.c.b16 %v3004, %v3003
    %v3014 = vpack.c.b16 %v3006, %v3005
    %3023 = vmatprep.subr.bf16.mxu0 0
    %3024 = vmatpush1.bf16.msra.mxu0 %v3007
    %3025 = vmatprep.subr.bf16.mxu0 0
    %3026 = vmatpush1.bf16.msra.mxu0 %v3008
    %3027 = vmatprep.subr.bf16.mxu0 0
    %3028 = vmatpush1.bf16.msra.mxu0 %v3009
    %3029 = vmatprep.subr.bf16.mxu0 0
    %3030 = vmatpush1.bf16.msra.mxu0 %v3010
    %3031 = vmatprep.subr.bf16.mxu0 0
    %3032 = vmatpush1.bf16.msra.mxu0 %v3011
    %3033 = vmatprep.subr.bf16.mxu0 0
    %3034 = vmatpush1.bf16.msra.mxu0 %v3012
    %3035 = vmatprep.subr.bf16.mxu0 0
    %3036 = vmatpush1.bf16.msra.mxu0 %v3013
    %3037 = vmatprep.subr.bf16.mxu0 0
    %3038 = vmatpush1.bf16.msra.mxu0 %v3014
    %3039 = vmatprep.subr.bf16.mxu0 0
    %3040 = vmatpush1.bf16.msra.mxu0 0
    %3041 = vmatprep.subr.bf16.mxu0 0
    %3042 = vmatpush1.bf16.msra.mxu0 0
    %3043 = vmatprep.subr.bf16.mxu0 0
    %3044 = vmatpush1.bf16.msra.mxu0 0
    %3045 = vmatprep.subr.bf16.mxu0 0
    %3046 = vmatpush1.bf16.msra.mxu0 0
    %3047 = vmatprep.subr.bf16.mxu0 0
    %3048 = vmatpush1.bf16.msra.mxu0 0
    %3049 = vmatprep.subr.bf16.mxu0 0
    %3050 = vmatpush1.bf16.msra.mxu0 0
    %3051 = vmatprep.subr.bf16.mxu0 0
    %3052 = vmatpush1.bf16.msra.mxu0 0
    %3053 = vmatprep.subr.bf16.mxu0 0
    %3054 = vmatpush1.bf16.msra.mxu0 0
    %3055 = vmatprep.mubr.bf16.mxu0 0
    %3056 = vmatmul.mubr.bf16.gmra.mrb[0].mxu0 %v2951
    %v3057 = vpop.f32.mrb[0].mxu0
    %v3058 = vadd.f32 %v2973, %v3057
    %v3059 = vpop.f32.mrb[0].mxu0
    %v3060 = vpop.f32.mrb[0].mxu0
    %v3061 = vadd.f32 %v2973, %v3060
    %v3062 = vpop.f32.mrb[0].mxu0
    %3063 = vdwg.mxu0
    %vm3064 = vcmp.gt.f32.partialorder %v3058, 0.0
    %vm3065 = vcmp.gt.f32.partialorder %v3061, 0.0
    %v3066 = vmul.f32 %v3058, 0.01
    %v3067 = vmul.f32 %v3061, 0.01
    %v3068 = vsel %vm3064, %v3058, %v3066
    %v3069 = vsel %vm3065, %v3061, %v3067
    %v3070 = vpack.c.bf16 %v201, %v200
    %v3071 = vld [vmem:[%s6] sm:$0xf]
    %v3072 = vld [vmem:[%s6 + $0x4] sm:$0xf]
    %v3073 = vld [vmem:[%s6 + $0x8] sm:$0xf]
    %v3074 = vld [vmem:[%s6 + $0xc] sm:$0xf]
    %v3075 = vld [vmem:[%s6 + $0x10] sm:$0xf]
    %v3076 = vld [vmem:[%s6 + $0x14] sm:$0xf]
    %v3077 = vld [vmem:[%s6 + $0x18] sm:$0xf]
    %v3078 = vld [vmem:[%s6 + $0x1c] sm:$0xf]
    %v3079 = vld [vmem:[%s6 + $0x20] sm:$0xf]
    %v3080 = vld [vmem:[%s6 + $0x24] sm:$0xf]
    %v3081 = vld [vmem:[%s6 + $0x28] sm:$0xf]
    %v3082 = vld [vmem:[%s6 + $0x2c] sm:$0xf]
    %v3083 = vld [vmem:[%s6 + $0x30] sm:$0xf]
    %v3084 = vld [vmem:[%s6 + $0x34] sm:$0xf]
    %v3085 = vld [vmem:[%s6 + $0x38] sm:$0xf]
    %v3086 = vld [vmem:[%s6 + $0x3c] sm:$0xf]
    %v3087 = vld [vmem:[#allocation9] sm:$0x1]
    %v3089 = vlaneseq
    %v3090 = vshrl.u32 %v3089, 7
    %v3091 = vsub.s32 0, %v3090
    %v3092 = vrot.slane %v3087, %v3091
    %v3110 = vunpack.c.l.b16 %v3071
    %v3111 = vunpack.c.l.b16 %v3072
    %v3112 = vunpack.c.l.b16 %v3073
    %v3113 = vunpack.c.l.b16 %v3074
    %v3114 = vunpack.c.l.b16 %v3075
    %v3115 = vunpack.c.l.b16 %v3076
    %v3116 = vunpack.c.l.b16 %v3077
    %v3117 = vunpack.c.l.b16 %v3078
    %v3118 = vunpack.c.l.b16 %v3079
    %v3119 = vunpack.c.l.b16 %v3080
    %v3120 = vunpack.c.l.b16 %v3081
    %v3121 = vunpack.c.l.b16 %v3082
    %v3122 = vunpack.c.l.b16 %v3083
    %v3123 = vunpack.c.l.b16 %v3084
    %v3124 = vunpack.c.l.b16 %v3085
    %v3125 = vunpack.c.l.b16 %v3086
    %v3126 = vpack.c.b16 %v3111, %v3110
    %v3127 = vpack.c.b16 %v3113, %v3112
    %v3128 = vpack.c.b16 %v3115, %v3114
    %v3129 = vpack.c.b16 %v3117, %v3116
    %v3130 = vpack.c.b16 %v3119, %v3118
    %v3131 = vpack.c.b16 %v3121, %v3120
    %v3132 = vpack.c.b16 %v3123, %v3122
    %v3133 = vpack.c.b16 %v3125, %v3124
    %3142 = vmatprep.subr.bf16.mxu0 0
    %3143 = vmatpush1.bf16.msra.mxu0 %v3126
    %3144 = vmatprep.subr.bf16.mxu0 0
    %3145 = vmatpush1.bf16.msra.mxu0 %v3127
    %3146 = vmatprep.subr.bf16.mxu0 0
    %3147 = vmatpush1.bf16.msra.mxu0 %v3128
    %3148 = vmatprep.subr.bf16.mxu0 0
    %3149 = vmatpush1.bf16.msra.mxu0 %v3129
    %3150 = vmatprep.subr.bf16.mxu0 0
    %3151 = vmatpush1.bf16.msra.mxu0 %v3130
    %3152 = vmatprep.subr.bf16.mxu0 0
    %3153 = vmatpush1.bf16.msra.mxu0 %v3131
    %3154 = vmatprep.subr.bf16.mxu0 0
    %3155 = vmatpush1.bf16.msra.mxu0 %v3132
    %3156 = vmatprep.subr.bf16.mxu0 0
    %3157 = vmatpush1.bf16.msra.mxu0 %v3133
    %3158 = vmatprep.subr.bf16.mxu0 0
    %3159 = vmatpush1.bf16.msra.mxu0 0
    %3160 = vmatprep.subr.bf16.mxu0 0
    %3161 = vmatpush1.bf16.msra.mxu0 0
    %3162 = vmatprep.subr.bf16.mxu0 0
    %3163 = vmatpush1.bf16.msra.mxu0 0
    %3164 = vmatprep.subr.bf16.mxu0 0
    %3165 = vmatpush1.bf16.msra.mxu0 0
    %3166 = vmatprep.subr.bf16.mxu0 0
    %3167 = vmatpush1.bf16.msra.mxu0 0
    %3168 = vmatprep.subr.bf16.mxu0 0
    %3169 = vmatpush1.bf16.msra.mxu0 0
    %3170 = vmatprep.subr.bf16.mxu0 0
    %3171 = vmatpush1.bf16.msra.mxu0 0
    %3172 = vmatprep.subr.bf16.mxu0 0
    %3173 = vmatpush1.bf16.msra.mxu0 0
    %3174 = vmatprep.mubr.bf16.mxu0 0
    %3175 = vmatmul.mubr.bf16.gmra.mrb[0].mxu0 %v3070
    %v3176 = vpop.f32.mrb[0].mxu0
    %v3177 = vadd.f32 %v3092, %v3176
    %v3178 = vpop.f32.mrb[0].mxu0
    %v3179 = vpop.f32.mrb[0].mxu0
    %v3180 = vadd.f32 %v3092, %v3179
    %v3181 = vpop.f32.mrb[0].mxu0
    %3182 = vdwg.mxu0
    %vm3183 = vcmp.gt.f32.partialorder %v3177, 0.0
    %vm3184 = vcmp.gt.f32.partialorder %v3180, 0.0
    %v3185 = vmul.f32 %v3177, 0.01
    %v3186 = vmul.f32 %v3180, 0.01
    %v3187 = vsel %vm3183, %v3177, %v3185
    %v3188 = vsel %vm3184, %v3180, %v3186
    %v3189 = vpack.c.bf16 %v3188, %v3187
    %v3190 = vld [vmem:[%s8] sm:$0xf]
    %v3191 = vld [vmem:[%s8 + $0x4] sm:$0xf]
    %v3192 = vld [vmem:[%s8 + $0x8] sm:$0xf]
    %v3193 = vld [vmem:[%s8 + $0xc] sm:$0xf]
    %v3194 = vld [vmem:[%s8 + $0x10] sm:$0xf]
    %v3195 = vld [vmem:[%s8 + $0x14] sm:$0xf]
    %v3196 = vld [vmem:[%s8 + $0x18] sm:$0xf]
    %v3197 = vld [vmem:[%s8 + $0x1c] sm:$0xf]
    %v3198 = vld [vmem:[%s8 + $0x20] sm:$0xf]
    %v3199 = vld [vmem:[%s8 + $0x24] sm:$0xf]
    %v3200 = vld [vmem:[%s8 + $0x28] sm:$0xf]
    %v3201 = vld [vmem:[%s8 + $0x2c] sm:$0xf]
    %v3202 = vld [vmem:[%s8 + $0x30] sm:$0xf]
    %v3203 = vld [vmem:[%s8 + $0x34] sm:$0xf]
    %v3204 = vld [vmem:[%s8 + $0x38] sm:$0xf]
    %v3205 = vld [vmem:[%s8 + $0x3c] sm:$0xf]
    %v3206 = vld [vmem:[#allocation10] sm:$0x1]
    %v3208 = vlaneseq
    %v3209 = vshrl.u32 %v3208, 7
    %v3210 = vsub.s32 0, %v3209
    %v3211 = vrot.slane %v3206, %v3210
    %v3229 = vunpack.c.l.b16 %v3190
    %v3230 = vunpack.c.l.b16 %v3191
    %v3231 = vunpack.c.l.b16 %v3192
    %v3232 = vunpack.c.l.b16 %v3193
    %v3233 = vunpack.c.l.b16 %v3194
    %v3234 = vunpack.c.l.b16 %v3195
    %v3235 = vunpack.c.l.b16 %v3196
    %v3236 = vunpack.c.l.b16 %v3197
    %v3237 = vunpack.c.l.b16 %v3198
    %v3238 = vunpack.c.l.b16 %v3199
    %v3239 = vunpack.c.l.b16 %v3200
    %v3240 = vunpack.c.l.b16 %v3201
    %v3241 = vunpack.c.l.b16 %v3202
    %v3242 = vunpack.c.l.b16 %v3203
    %v3243 = vunpack.c.l.b16 %v3204
    %v3244 = vunpack.c.l.b16 %v3205
    %v3245 = vpack.c.b16 %v3230, %v3229
    %v3246 = vpack.c.b16 %v3232, %v3231
    %v3247 = vpack.c.b16 %v3234, %v3233
    %v3248 = vpack.c.b16 %v3236, %v3235
    %v3249 = vpack.c.b16 %v3238, %v3237
    %v3250 = vpack.c.b16 %v3240, %v3239
    %v3251 = vpack.c.b16 %v3242, %v3241
    %v3252 = vpack.c.b16 %v3244, %v3243
    %3261 = vmatprep.subr.bf16.mxu0 0
    %3262 = vmatpush1.bf16.msra.mxu0 %v3245
    %3263 = vmatprep.subr.bf16.mxu0 0
    %3264 = vmatpush1.bf16.msra.mxu0 %v3246
    %3265 = vmatprep.subr.bf16.mxu0 0
    %3266 = vmatpush1.bf16.msra.mxu0 %v3247
    %3267 = vmatprep.subr.bf16.mxu0 0
    %3268 = vmatpush1.bf16.msra.mxu0 %v3248
    %3269 = vmatprep.subr.bf16.mxu0 0
    %3270 = vmatpush1.bf16.msra.mxu0 %v3249
    %3271 = vmatprep.subr.bf16.mxu0 0
    %3272 = vmatpush1.bf16.msra.mxu0 %v3250
    %3273 = vmatprep.subr.bf16.mxu0 0
    %3274 = vmatpush1.bf16.msra.mxu0 %v3251
    %3275 = vmatprep.subr.bf16.mxu0 0
    %3276 = vmatpush1.bf16.msra.mxu0 %v3252
    %3277 = vmatprep.subr.bf16.mxu0 0
    %3278 = vmatpush1.bf16.msra.mxu0 0
    %3279 = vmatprep.subr.bf16.mxu0 0
    %3280 = vmatpush1.bf16.msra.mxu0 0
    %3281 = vmatprep.subr.bf16.mxu0 0
    %3282 = vmatpush1.bf16.msra.mxu0 0
    %3283 = vmatprep.subr.bf16.mxu0 0
    %3284 = vmatpush1.bf16.msra.mxu0 0
    %3285 = vmatprep.subr.bf16.mxu0 0
    %3286 = vmatpush1.bf16.msra.mxu0 0
    %3287 = vmatprep.subr.bf16.mxu0 0
    %3288 = vmatpush1.bf16.msra.mxu0 0
    %3289 = vmatprep.subr.bf16.mxu0 0
    %3290 = vmatpush1.bf16.msra.mxu0 0
    %3291 = vmatprep.subr.bf16.mxu0 0
    %3292 = vmatpush1.bf16.msra.mxu0 0
    %3293 = vmatprep.mubr.bf16.mxu0 0
    %3294 = vmatmul.mubr.bf16.gmra.mrb[0].mxu0 %v3189
    %v3295 = vpop.f32.mrb[0].mxu0
    %v3296 = vadd.f32 %v3211, %v3295
    %v3297 = vpop.f32.mrb[0].mxu0
    %v3298 = vpop.f32.mrb[0].mxu0
    %v3299 = vadd.f32 %v3211, %v3298
    %v3300 = vpop.f32.mrb[0].mxu0
    %3301 = vdwg.mxu0
    %vm3302 = vcmp.gt.f32.partialorder %v3296, 0.0
    %vm3303 = vcmp.gt.f32.partialorder %v3299, 0.0
    %v3304 = vmul.f32 %v3296, 0.01
    %v3305 = vmul.f32 %v3299, 0.01
    %v3306 = vsel %vm3302, %v3296, %v3304
    %v3307 = vsel %vm3303, %v3299, %v3305
    %v3308 = vadd.f32 %v3068, %v3306
    %v3309 = vadd.f32 %v3069, %v3307
    %v3310 = vpack.c.bf16 %v3309, %v3308
    %v3311 = vld [vmem:[%s10] sm:$0xff]
    %v3312 = vld [vmem:[%s10 + $0x8] sm:$0xff]
    %v3313 = vld [vmem:[%s10 + $0x10] sm:$0xff]
    %v3314 = vld [vmem:[%s10 + $0x18] sm:$0xff]
    %v3315 = vld [vmem:[%s10 + $0x20] sm:$0xff]
    %v3316 = vld [vmem:[%s10 + $0x28] sm:$0xff]
    %v3317 = vld [vmem:[%s10 + $0x30] sm:$0xff]
    %v3318 = vld [vmem:[%s10 + $0x38] sm:$0xff]
    %v3319 = vld [vmem:[%s11] sm:$0x3]
    %v3321 = vlaneseq
    %v3322 = vshrl.u32 %v3321, 7
    %v3323 = vsub.s32 0, %v3322
    %v3324 = vrot.slane %v3319, %v3323
    %v3325 = vlaneseq
    %v3326 = vshrl.u32 %v3325, 7
    %v3327 = vsub.s32 1, %v3326
    %v3328 = vrot.slane %v3319, %v3327
    %v3339 = vunpack.c.l.b16 %v3311
    %v3340 = vunpack.c.h.b16 %v3311
    %v3341 = vunpack.c.l.b16 %v3312
    %v3342 = vunpack.c.h.b16 %v3312
    %v3343 = vunpack.c.l.b16 %v3313
    %v3344 = vunpack.c.h.b16 %v3313
    %v3345 = vunpack.c.l.b16 %v3314
    %v3346 = vunpack.c.h.b16 %v3314
    %v3347 = vunpack.c.l.b16 %v3315
    %v3348 = vunpack.c.h.b16 %v3315
    %v3349 = vunpack.c.l.b16 %v3316
    %v3350 = vunpack.c.h.b16 %v3316
    %v3351 = vunpack.c.l.b16 %v3317
    %v3352 = vunpack.c.h.b16 %v3317
    %v3353 = vunpack.c.l.b16 %v3318
    %v3354 = vunpack.c.h.b16 %v3318
    %v3355 = vpack.c.b16 %v3341, %v3339
    %v3356 = vpack.c.b16 %v3342, %v3340
    %v3357 = vpack.c.b16 %v3345, %v3343
    %v3358 = vpack.c.b16 %v3346, %v3344
    %v3359 = vpack.c.b16 %v3349, %v3347
    %v3360 = vpack.c.b16 %v3350, %v3348
    %v3361 = vpack.c.b16 %v3353, %v3351
    %v3362 = vpack.c.b16 %v3354, %v3352
    %vm3371 = vcmask 523264
    %v3373 = vsel %vm3371, %v3310, 0
    %3375 = vmatprep.subr.bf16.mxu0 %v3356
    %3376 = vmatpush1.bf16.msra.mxu0 %v3355
    %3377 = vmatprep.subr.bf16.mxu0 %v3358
    %3378 = vmatpush1.bf16.msra.mxu0 %v3357
    %3379 = vmatprep.subr.bf16.mxu0 %v3360
    %3380 = vmatpush1.bf16.msra.mxu0 %v3359
    %3381 = vmatprep.subr.bf16.mxu0 %v3362
    %3382 = vmatpush1.bf16.msra.mxu0 %v3361
    %3383 = vmatprep.subr.bf16.mxu0 0
    %3384 = vmatpush1.bf16.msra.mxu0 0
    %3385 = vmatprep.subr.bf16.mxu0 0
    %3386 = vmatpush1.bf16.msra.mxu0 0
    %3387 = vmatprep.subr.bf16.mxu0 0
    %3388 = vmatpush1.bf16.msra.mxu0 0
    %3389 = vmatprep.subr.bf16.mxu0 0
    %3390 = vmatpush1.bf16.msra.mxu0 0
    %3391 = vmatprep.subr.bf16.mxu0 0
    %3392 = vmatpush1.bf16.msra.mxu0 0
    %3393 = vmatprep.subr.bf16.mxu0 0
    %3394 = vmatpush1.bf16.msra.mxu0 0
    %3395 = vmatprep.subr.bf16.mxu0 0
    %3396 = vmatpush1.bf16.msra.mxu0 0
    %3397 = vmatprep.subr.bf16.mxu0 0
    %3398 = vmatpush1.bf16.msra.mxu0 0
    %3399 = vmatprep.subr.bf16.mxu0 0
    %3400 = vmatpush1.bf16.msra.mxu0 0
    %3401 = vmatprep.subr.bf16.mxu0 0
    %3402 = vmatpush1.bf16.msra.mxu0 0
    %3403 = vmatprep.subr.bf16.mxu0 0
    %3404 = vmatpush1.bf16.msra.mxu0 0
    %3405 = vmatprep.subr.bf16.mxu0 0
    %3406 = vmatpush1.bf16.msra.mxu0 0
    %3407 = vmatprep.mubr.bf16.mxu0 0
    %3408 = vmatmul.mubr.bf16.gmra.mrb[0].mxu0 %v3373
    %v3409 = vpop.f32.mrb[0].mxu0
    %v3410 = vadd.f32 %v3324, %v3409
    %v3411 = vpop.f32.mrb[0].mxu0
    %v3412 = vadd.f32 %v3328, %v3411
    %v3413 = vpop.f32.mrb[0].mxu0
    %v3414 = vadd.f32 %v3324, %v3413
    %v3415 = vpop.f32.mrb[0].mxu0
    %v3416 = vadd.f32 %v3328, %v3415
    %3417 = vdwg.mxu0
    %vm3418 = vcmp.gt.f32.partialorder %v3410, 0.0
    %vm3419 = vcmp.gt.f32.partialorder %v3412, 0.0
    %vm3420 = vcmp.gt.f32.partialorder %v3414, 0.0
    %vm3421 = vcmp.gt.f32.partialorder %v3416, 0.0
    %v3422 = vmul.f32 %v3410, 0.01
    %v3423 = vmul.f32 %v3412, 0.01
    %v3424 = vmul.f32 %v3414, 0.01
    %v3425 = vmul.f32 %v3416, 0.01
    %v3426 = vsel %vm3418, %v3410, %v3422
    %v3427 = vsel %vm3419, %v3412, %v3423
    %v3428 = vsel %vm3420, %v3414, %v3424
    %v3429 = vsel %vm3421, %v3416, %v3425
    %v3430 = vpack.c.bf16 %v3428, %v3426
    %v3431 = vpack.c.bf16 %v3429, %v3427
    %v3432 = vld [vmem:[%s12] sm:$0xf]
    %v3433 = vld [vmem:[%s12 + $0x4] sm:$0xf]
    %v3434 = vld [vmem:[%s12 + $0x8] sm:$0xf]
    %v3435 = vld [vmem:[%s12 + $0xc] sm:$0xf]
    %v3436 = vld [vmem:[%s12 + $0x10] sm:$0xf]
    %v3437 = vld [vmem:[%s12 + $0x14] sm:$0xf]
    %v3438 = vld [vmem:[%s12 + $0x18] sm:$0xf]
    %v3439 = vld [vmem:[%s12 + $0x1c] sm:$0xf]
    %v3440 = vld [vmem:[%s12 + $0x20] sm:$0xf]
    %v3441 = vld [vmem:[%s12 + $0x24] sm:$0xf]
    %v3442 = vld [vmem:[%s12 + $0x28] sm:$0xf]
    %v3443 = vld [vmem:[%s12 + $0x2c] sm:$0xf]
    %v3444 = vld [vmem:[%s12 + $0x30] sm:$0xf]
    %v3445 = vld [vmem:[%s12 + $0x34] sm:$0xf]
    %v3446 = vld [vmem:[%s12 + $0x38] sm:$0xf]
    %v3447 = vld [vmem:[%s12 + $0x3c] sm:$0xf]
    %v3448 = vld [vmem:[%s12 + $0x40] sm:$0xf]
    %v3449 = vld [vmem:[%s12 + $0x44] sm:$0xf]
    %v3450 = vld [vmem:[%s12 + $0x48] sm:$0xf]
    %v3451 = vld [vmem:[%s12 + $0x4c] sm:$0xf]
    %v3452 = vld [vmem:[%s12 + $0x50] sm:$0xf]
    %v3453 = vld [vmem:[%s12 + $0x54] sm:$0xf]
    %v3454 = vld [vmem:[%s12 + $0x58] sm:$0xf]
    %v3455 = vld [vmem:[%s12 + $0x5c] sm:$0xf]
    %v3456 = vld [vmem:[%s12 + $0x60] sm:$0xf]
    %v3457 = vld [vmem:[%s12 + $0x64] sm:$0xf]
    %v3458 = vld [vmem:[%s12 + $0x68] sm:$0xf]
    %v3459 = vld [vmem:[%s12 + $0x6c] sm:$0xf]
    %v3460 = vld [vmem:[%s12 + $0x70] sm:$0xf]
    %v3461 = vld [vmem:[%s12 + $0x74] sm:$0xf]
    %v3462 = vld [vmem:[%s12 + $0x78] sm:$0xf]
    %v3463 = vld [vmem:[%s12 + $0x7c] sm:$0xf]
    %v3464 = vld [vmem:[%s13] sm:$0x1]
    %v3466 = vlaneseq
    %v3467 = vshrl.u32 %v3466, 7
    %v3468 = vsub.s32 0, %v3467
    %v3469 = vrot.slane %v3464, %v3468
    %v3503 = vunpack.c.l.b16 %v3432
    %v3504 = vunpack.c.l.b16 %v3433
    %v3505 = vunpack.c.l.b16 %v3434
    %v3506 = vunpack.c.l.b16 %v3435
    %v3507 = vunpack.c.l.b16 %v3436
    %v3508 = vunpack.c.l.b16 %v3437
    %v3509 = vunpack.c.l.b16 %v3438
    %v3510 = vunpack.c.l.b16 %v3439
    %v3511 = vunpack.c.l.b16 %v3440
    %v3512 = vunpack.c.l.b16 %v3441
    %v3513 = vunpack.c.l.b16 %v3442
    %v3514 = vunpack.c.l.b16 %v3443
    %v3515 = vunpack.c.l.b16 %v3444
    %v3516 = vunpack.c.l.b16 %v3445
    %v3517 = vunpack.c.l.b16 %v3446
    %v3518 = vunpack.c.l.b16 %v3447
    %v3519 = vunpack.c.l.b16 %v3448
    %v3520 = vunpack.c.l.b16 %v3449
    %v3521 = vunpack.c.l.b16 %v3450
    %v3522 = vunpack.c.l.b16 %v3451
    %v3523 = vunpack.c.l.b16 %v3452
    %v3524 = vunpack.c.l.b16 %v3453
    %v3525 = vunpack.c.l.b16 %v3454
    %v3526 = vunpack.c.l.b16 %v3455
    %v3527 = vunpack.c.l.b16 %v3456
    %v3528 = vunpack.c.l.b16 %v3457
    %v3529 = vunpack.c.l.b16 %v3458
    %v3530 = vunpack.c.l.b16 %v3459
    %v3531 = vunpack.c.l.b16 %v3460
    %v3532 = vunpack.c.l.b16 %v3461
    %v3533 = vunpack.c.l.b16 %v3462
    %v3534 = vunpack.c.l.b16 %v3463
    %v3535 = vpack.c.b16 %v3504, %v3503
    %v3536 = vpack.c.b16 %v3506, %v3505
    %v3537 = vpack.c.b16 %v3508, %v3507
    %v3538 = vpack.c.b16 %v3510, %v3509
    %v3539 = vpack.c.b16 %v3512, %v3511
    %v3540 = vpack.c.b16 %v3514, %v3513
    %v3541 = vpack.c.b16 %v3516, %v3515
    %v3542 = vpack.c.b16 %v3518, %v3517
    %v3543 = vpack.c.b16 %v3520, %v3519
    %v3544 = vpack.c.b16 %v3522, %v3521
    %v3545 = vpack.c.b16 %v3524, %v3523
    %v3546 = vpack.c.b16 %v3526, %v3525
    %v3547 = vpack.c.b16 %v3528, %v3527
    %v3548 = vpack.c.b16 %v3530, %v3529
    %v3549 = vpack.c.b16 %v3532, %v3531
    %v3550 = vpack.c.b16 %v3534, %v3533
    %3567 = vmatprep.subr.bf16.mxu0 0
    %3568 = vmatpush1.bf16.msra.mxu0 %v3535
    %3569 = vmatprep.subr.bf16.mxu0 0
    %3570 = vmatpush1.bf16.msra.mxu0 %v3536
    %3571 = vmatprep.subr.bf16.mxu0 0
    %3572 = vmatpush1.bf16.msra.mxu0 %v3537
    %3573 = vmatprep.subr.bf16.mxu0 0
    %3574 = vmatpush1.bf16.msra.mxu0 %v3538
    %3575 = vmatprep.subr.bf16.mxu0 0
    %3576 = vmatpush1.bf16.msra.mxu0 %v3539
    %3577 = vmatprep.subr.bf16.mxu0 0
    %3578 = vmatpush1.bf16.msra.mxu0 %v3540
    %3579 = vmatprep.subr.bf16.mxu0 0
    %3580 = vmatpush1.bf16.msra.mxu0 %v3541
    %3581 = vmatprep.subr.bf16.mxu0 0
    %3582 = vmatpush1.bf16.msra.mxu0 %v3542
    %3583 = vmatprep.subr.bf16.mxu0 0
    %3584 = vmatpush1.bf16.msra.mxu0 %v3543
    %3585 = vmatprep.subr.bf16.mxu0 0
    %3586 = vmatpush1.bf16.msra.mxu0 %v3544
    %3587 = vmatprep.subr.bf16.mxu0 0
    %3588 = vmatpush1.bf16.msra.mxu0 %v3545
    %3589 = vmatprep.subr.bf16.mxu0 0
    %3590 = vmatpush1.bf16.msra.mxu0 %v3546
    %3591 = vmatprep.subr.bf16.mxu0 0
    %3592 = vmatpush1.bf16.msra.mxu0 %v3547
    %3593 = vmatprep.subr.bf16.mxu0 0
    %3594 = vmatpush1.bf16.msra.mxu0 %v3548
    %3595 = vmatprep.subr.bf16.mxu0 0
    %3596 = vmatpush1.bf16.msra.mxu0 %v3549
    %3597 = vmatprep.subr.bf16.mxu0 0
    %3598 = vmatpush1.bf16.msra.mxu0 %v3550
    %3599 = vmatprep.mubr.bf16.mxu0 %v3431
    %3600 = vmatmul.mubr.bf16.gmra.mrb[0].mxu0 %v3430
    %v3601 = vpop.f32.mrb[0].mxu0
    %v3602 = vadd.f32 %v3469, %v3601
    %v3603 = vpop.f32.mrb[0].mxu0
    %v3604 = vpop.f32.mrb[0].mxu0
    %v3605 = vadd.f32 %v3469, %v3604
    %v3606 = vpop.f32.mrb[0].mxu0
    %3607 = vdwg.mxu0
    %vm3608 = vcmp.gt.f32.partialorder %v3602, 0.0
    %vm3609 = vcmp.gt.f32.partialorder %v3605, 0.0
    %v3610 = vmul.f32 %v3602, 0.01
    %v3611 = vmul.f32 %v3605, 0.01
    %v3612 = vsel %vm3608, %v3602, %v3610
    %v3613 = vsel %vm3609, %v3605, %v3611
    %v3614 = vpack.c.bf16 %v3613, %v3612
    %v3615 = vld [vmem:[%s14] sm:$0xf]
    %v3616 = vld [vmem:[%s14 + $0x4] sm:$0xf]
    %v3617 = vld [vmem:[%s14 + $0x8] sm:$0xf]
    %v3618 = vld [vmem:[%s14 + $0xc] sm:$0xf]
    %v3619 = vld [vmem:[%s14 + $0x10] sm:$0xf]
    %v3620 = vld [vmem:[%s14 + $0x14] sm:$0xf]
    %v3621 = vld [vmem:[%s14 + $0x18] sm:$0xf]
    %v3622 = vld [vmem:[%s14 + $0x1c] sm:$0xf]
    %v3623 = vld [vmem:[%s14 + $0x20] sm:$0xf]
    %v3624 = vld [vmem:[%s14 + $0x24] sm:$0xf]
    %v3625 = vld [vmem:[%s14 + $0x28] sm:$0xf]
    %v3626 = vld [vmem:[%s14 + $0x2c] sm:$0xf]
    %v3627 = vld [vmem:[%s14 + $0x30] sm:$0xf]
    %v3628 = vld [vmem:[%s14 + $0x34] sm:$0xf]
    %v3629 = vld [vmem:[%s14 + $0x38] sm:$0xf]
    %v3630 = vld [vmem:[%s14 + $0x3c] sm:$0xf]
    %v3631 = vld [vmem:[%s15] sm:$0x1]
    %v3633 = vlaneseq
    %v3634 = vshrl.u32 %v3633, 7
    %v3635 = vsub.s32 0, %v3634
    %v3636 = vrot.slane %v3631, %v3635
    %v3654 = vunpack.c.l.b16 %v3615
    %v3655 = vunpack.c.l.b16 %v3616
    %v3656 = vunpack.c.l.b16 %v3617
    %v3657 = vunpack.c.l.b16 %v3618
    %v3658 = vunpack.c.l.b16 %v3619
    %v3659 = vunpack.c.l.b16 %v3620
    %v3660 = vunpack.c.l.b16 %v3621
    %v3661 = vunpack.c.l.b16 %v3622
    %v3662 = vunpack.c.l.b16 %v3623
    %v3663 = vunpack.c.l.b16 %v3624
    %v3664 = vunpack.c.l.b16 %v3625
    %v3665 = vunpack.c.l.b16 %v3626
    %v3666 = vunpack.c.l.b16 %v3627
    %v3667 = vunpack.c.l.b16 %v3628
    %v3668 = vunpack.c.l.b16 %v3629
    %v3669 = vunpack.c.l.b16 %v3630
    %v3670 = vpack.c.b16 %v3655, %v3654
    %v3671 = vpack.c.b16 %v3657, %v3656
    %v3672 = vpack.c.b16 %v3659, %v3658
    %v3673 = vpack.c.b16 %v3661, %v3660
    %v3674 = vpack.c.b16 %v3663, %v3662
    %v3675 = vpack.c.b16 %v3665, %v3664
    %v3676 = vpack.c.b16 %v3667, %v3666
    %v3677 = vpack.c.b16 %v3669, %v3668
    %3686 = vmatprep.subr.bf16.mxu0 0
    %3687 = vmatpush1.bf16.msra.mxu0 %v3670
    %3688 = vmatprep.subr.bf16.mxu0 0
    %3689 = vmatpush1.bf16.msra.mxu0 %v3671
    %3690 = vmatprep.subr.bf16.mxu0 0
    %3691 = vmatpush1.bf16.msra.mxu0 %v3672
    %3692 = vmatprep.subr.bf16.mxu0 0
    %3693 = vmatpush1.bf16.msra.mxu0 %v3673
    %3694 = vmatprep.subr.bf16.mxu0 0
    %3695 = vmatpush1.bf16.msra.mxu0 %v3674
    %3696 = vmatprep.subr.bf16.mxu0 0
    %3697 = vmatpush1.bf16.msra.mxu0 %v3675
    %3698 = vmatprep.subr.bf16.mxu0 0
    %3699 = vmatpush1.bf16.msra.mxu0 %v3676
    %3700 = vmatprep.subr.bf16.mxu0 0
    %3701 = vmatpush1.bf16.msra.mxu0 %v3677
    %3702 = vmatprep.subr.bf16.mxu0 0
    %3703 = vmatpush1.bf16.msra.mxu0 0
    %3704 = vmatprep.subr.bf16.mxu0 0
    %3705 = vmatpush1.bf16.msra.mxu0 0
    %3706 = vmatprep.subr.bf16.mxu0 0
    %3707 = vmatpush1.bf16.msra.mxu0 0
    %3708 = vmatprep.subr.bf16.mxu0 0
    %3709 = vmatpush1.bf16.msra.mxu0 0
    %3710 = vmatprep.subr.bf16.mxu0 0
    %3711 = vmatpush1.bf16.msra.mxu0 0
    %3712 = vmatprep.subr.bf16.mxu0 0
    %3713 = vmatpush1.bf16.msra.mxu0 0
    %3714 = vmatprep.subr.bf16.mxu0 0
    %3715 = vmatpush1.bf16.msra.mxu0 0
    %3716 = vmatprep.subr.bf16.mxu0 0
    %3717 = vmatpush1.bf16.msra.mxu0 0
    %3718 = vmatprep.mubr.bf16.mxu0 0
    %3719 = vmatmul.mubr.bf16.gmra.mrb[0].mxu0 %v3614
    %v3720 = vpop.f32.mrb[0].mxu0
    %v3721 = vadd.f32 %v3636, %v3720
    %v3722 = vpop.f32.mrb[0].mxu0
    %v3723 = vpop.f32.mrb[0].mxu0
    %v3724 = vadd.f32 %v3636, %v3723
    %v3725 = vpop.f32.mrb[0].mxu0
    %3726 = vdwg.mxu0
    %vm3727 = vcmp.gt.f32.partialorder %v3721, 0.0
    %vm3728 = vcmp.gt.f32.partialorder %v3724, 0.0
    %v3729 = vmul.f32 %v3721, 0.01
    %v3730 = vmul.f32 %v3724, 0.01
    %v3731 = vsel %vm3727, %v3721, %v3729
    %v3732 = vsel %vm3728, %v3724, %v3730
    %v3733 = vpack.c.bf16 %v3732, %v3731
    %v3734 = vld [vmem:[%s16] sm:$0xf]
    %v3735 = vld [vmem:[%s16 + $0x4] sm:$0xf]
    %v3736 = vld [vmem:[%s16 + $0x8] sm:$0xf]
    %v3737 = vld [vmem:[%s16 + $0xc] sm:$0xf]
    %v3738 = vld [vmem:[%s16 + $0x10] sm:$0xf]
    %v3739 = vld [vmem:[%s16 + $0x14] sm:$0xf]
    %v3740 = vld [vmem:[%s16 + $0x18] sm:$0xf]
    %v3741 = vld [vmem:[%s16 + $0x1c] sm:$0xf]
    %v3742 = vld [vmem:[%s17] sm:$0x1]
    %v3744 = vlaneseq
    %v3745 = vshrl.u32 %v3744, 7
    %v3746 = vsub.s32 0, %v3745
    %v3747 = vrot.slane %v3742, %v3746
    %v3757 = vunpack.c.l.b16 %v3734
    %v3758 = vunpack.c.l.b16 %v3735
    %v3759 = vunpack.c.l.b16 %v3736
    %v3760 = vunpack.c.l.b16 %v3737
    %v3761 = vunpack.c.l.b16 %v3738
    %v3762 = vunpack.c.l.b16 %v3739
    %v3763 = vunpack.c.l.b16 %v3740
    %v3764 = vunpack.c.l.b16 %v3741
    %v3765 = vpack.c.b16 %v3758, %v3757
    %v3766 = vpack.c.b16 %v3760, %v3759
    %v3767 = vpack.c.b16 %v3762, %v3761
    %v3768 = vpack.c.b16 %v3764, %v3763
    %v3774 = vsel %vm3371, %v3733, 0
    %3776 = vmatprep.subr.bf16.mxu0 0
    %3777 = vmatpush1.bf16.msra.mxu0 %v3765
    %3778 = vmatprep.subr.bf16.mxu0 0
    %3779 = vmatpush1.bf16.msra.mxu0 %v3766
    %3780 = vmatprep.subr.bf16.mxu0 0
    %3781 = vmatpush1.bf16.msra.mxu0 %v3767
    %3782 = vmatprep.subr.bf16.mxu0 0
    %3783 = vmatpush1.bf16.msra.mxu0 %v3768
    %3784 = vmatprep.subr.bf16.mxu0 0
    %3785 = vmatpush1.bf16.msra.mxu0 0
    %3786 = vmatprep.subr.bf16.mxu0 0
    %3787 = vmatpush1.bf16.msra.mxu0 0
    %3788 = vmatprep.subr.bf16.mxu0 0
    %3789 = vmatpush1.bf16.msra.mxu0 0
    %3790 = vmatprep.subr.bf16.mxu0 0
    %3791 = vmatpush1.bf16.msra.mxu0 0
    %3792 = vmatprep.subr.bf16.mxu0 0
    %3793 = vmatpush1.bf16.msra.mxu0 0
    %3794 = vmatprep.subr.bf16.mxu0 0
    %3795 = vmatpush1.bf16.msra.mxu0 0
    %3796 = vmatprep.subr.bf16.mxu0 0
    %3797 = vmatpush1.bf16.msra.mxu0 0
    %3798 = vmatprep.subr.bf16.mxu0 0
    %3799 = vmatpush1.bf16.msra.mxu0 0
    %3800 = vmatprep.subr.bf16.mxu0 0
    %3801 = vmatpush1.bf16.msra.mxu0 0
    %3802 = vmatprep.subr.bf16.mxu0 0
    %3803 = vmatpush1.bf16.msra.mxu0 0
    %3804 = vmatprep.subr.bf16.mxu0 0
    %3805 = vmatpush1.bf16.msra.mxu0 0
    %3806 = vmatprep.subr.bf16.mxu0 0
    %3807 = vmatpush1.bf16.msra.mxu0 0
    %3808 = vmatprep.mubr.bf16.mxu0 0
    %3809 = vmatmul.mubr.bf16.gmra.mrb[0].mxu0 %v3774
    %v3810 = vpop.f32.mrb[0].mxu0
    %v3811 = vadd.f32 %v3747, %v3810
    %v3812 = vpop.f32.mrb[0].mxu0
    %v3813 = vpop.f32.mrb[0].mxu0
    %v3814 = vadd.f32 %v3747, %v3813
    %v3815 = vpop.f32.mrb[0].mxu0
    %3816 = vdwg.mxu0
    %vm3817 = vcmp.gt.f32.partialorder %v3811, 0.0
    %vm3818 = vcmp.gt.f32.partialorder %v3814, 0.0
    %v3819 = vmul.f32 %v3811, 0.01
    %v3820 = vmul.f32 %v3814, 0.01
    %v3821 = vsel %vm3817, %v3811, %v3819
    %v3822 = vsel %vm3818, %v3814, %v3820
    %3825 = vrot.lane.b32.xlu0 %v3821, 1
    %v3826 = vpop.permute.xlu0 %3825
    %3827 = vrot.lane.b32.xlu0 %v3822, 1
    %v3828 = vpop.permute.xlu0 %3827
    %v3831 = vsub.f32 %v3821, %v3826
    %v3832 = vsub.f32 %v3822, %v3828
    %v3833 = vmul.f32 %v3831, 1.442695
    %v3834 = vpow.pop %v3833
    %v3835 = vmul.f32 %v3832, 1.442695
    %v3836 = vpow.pop %v3835
    %v3837 = vadd.f32 %v3834, 1.0
    %v3838 = vadd.f32 %v3836, 1.0
    %v3839 = vrcp.pop %v3837
    %v3840 = vmul.f32 1.0, %v3839
    %v3841 = vrcp.pop %v3838
    %v3842 = vmul.f32 1.0, %v3841
    %3845 = vrot.lane.b32.xlu0 %v3840, 127
    %v3846 = vpop.permute.xlu0 %3845
    %3847 = vrot.lane.b32.xlu0 %v3842, 127
    %v3848 = vpop.permute.xlu0 %3847
    %vm3851 = vcmask 7168
    %3852 = vst.msk [vmem:[%s18] sm:$0xff] %vm3851, %v3846
    %3853 = vst.msk [vmem:[%s18 + $0x8] sm:$0xff] %vm3851, %v3848
    %v3854 = vsub.f32 1.0, %v3840
    %v3855 = vsub.f32 1.0, %v3842
    %vm3856 = vcmask 15368
    %3857 = vst.msk [vmem:[%s18] sm:$0xff] %vm3856, %v3854
    %3858 = vst.msk [vmem:[%s18 + $0x8] sm:$0xff] %vm3856, %v3855
    // Predicated region
    $region98: #{tpu_custom_call.1} parent=1 // pred_check
      _
    $region99: #{tpu_custom_call.1} parent=1 // pred_check_branch
      %3860 = sbr.rel (0) target = $region101
    $region100: #{tpu_custom_call.1} parent=1 // pred_region
      _
    $region101: #{tpu_custom_call.1} parent=1 // pred_fallthru
      _
    // Predicated region
    $region102: #{tpu_custom_call.1} parent=1 // pred_check
      _
    $region103: #{tpu_custom_call.1} parent=1 // pred_check_branch
      %3862 = sbr.rel (0) target = $region105
    $region104: #{tpu_custom_call.1} parent=1 // pred_region
      _
    $region105: #{tpu_custom_call.1} parent=1 // pred_fallthru
      _
    %3863 = vsyncpa [#allocation3], 1
    %3864 = vsyncpa [#allocation5], 1
    %3865 = vsyncpa [#allocation8], 1
    %3866 = vsyncpa [#allocation11], 1

</llo_original>
